<compile_context>
chip_gen: v7x
topology: tpu7x:2x2x1
jax: 0.10.0
libtpu: 0.0.40
codegen_flags: <defaults>
</compile_context>

<pallas_src>
import functools

import jax
import jax.numpy as jnp
from jax import lax
from jax.experimental import pallas as pl
from jax.experimental.pallas import tpu as pltpu


# ----------------------------- small helpers --------------------------------
def _round_up(x, m):
    return ((x + m - 1) // m) * m


def _tile_and_pad(d, cap):
    """Pad dim d to a multiple of 128 and pick a tile (<=cap) that divides it."""
    dp = _round_up(d, 128)
    t = min(cap, dp)
    while dp % t != 0:
        t -= 128
    return t, dp


# ----------------------- Pallas tiled matmul kernels -------------------------
# Contraction layouts (2-D dot_general dimension numbers):
_DIMS = {
    "nn": (((1,), (0,)), ((), ())),   # A @ B
    "nt": (((1,), (1,)), ((), ())),   # A @ B.T   (contract last dims)
    "tn": (((0,), (0,)), ((), ())),   # A.T @ B   (contract first dims)
}


def _make_mm_kernel(dims):
    def kernel(a_ref, b_ref, o_ref, acc_ref):
        @pl.when(pl.program_id(2) == 0)
        def _init():
            acc_ref[...] = jnp.zeros_like(acc_ref)

        acc_ref[...] += lax.dot_general(
            a_ref[...], b_ref[...], dims, preferred_element_type=jnp.float32)

        @pl.when(pl.program_id(2) == pl.num_programs(2) - 1)
        def _store():
            o_ref[...] = acc_ref[...].astype(o_ref.dtype)
    return kernel


_MM_KERNELS = {m: _make_mm_kernel(d) for m, d in _DIMS.items()}


def _tiled_matmul(a, b, mode):
    """Tiled MXU matmul. mode: 'nn' -> a@b, 'nt' -> a@b.T, 'tn' -> a.T@b.

    bf16 operands, f32 accumulate, all dims padded to multiples of 128.
    """
    if mode == "nn":
        (M, C), (C2, N) = a.shape, b.shape
    elif mode == "nt":
        (M, C), (N, C2) = a.shape, b.shape
    else:  # "tn"
        (C, M), (C2, N) = a.shape, b.shape
    assert C == C2, (a.shape, b.shape, mode)

    tm, Mp = _tile_and_pad(M, 256)
    tn, Np = _tile_and_pad(N, 256)
    tc, Cp = _tile_and_pad(C, 512)

    a16 = a.astype(jnp.bfloat16)
    b16 = b.astype(jnp.bfloat16)
    if mode == "nn":
        a16 = jnp.pad(a16, ((0, Mp - M), (0, Cp - C)))
        b16 = jnp.pad(b16, ((0, Cp - C), (0, Np - N)))
        a_bs = pl.BlockSpec((tm, tc), lambda i, j, l: (i, l))
        b_bs = pl.BlockSpec((tc, tn), lambda i, j, l: (l, j))
    elif mode == "nt":
        a16 = jnp.pad(a16, ((0, Mp - M), (0, Cp - C)))
        b16 = jnp.pad(b16, ((0, Np - N), (0, Cp - C)))
        a_bs = pl.BlockSpec((tm, tc), lambda i, j, l: (i, l))
        b_bs = pl.BlockSpec((tn, tc), lambda i, j, l: (j, l))
    else:  # "tn"
        a16 = jnp.pad(a16, ((0, Cp - C), (0, Mp - M)))
        b16 = jnp.pad(b16, ((0, Cp - C), (0, Np - N)))
        a_bs = pl.BlockSpec((tc, tm), lambda i, j, l: (l, i))
        b_bs = pl.BlockSpec((tc, tn), lambda i, j, l: (l, j))

    grid = (Mp // tm, Np // tn, Cp // tc)
    flops = 2 * Mp * Np * Cp
    bytes_accessed = a16.size * 2 + b16.size * 2 + Mp * Np * 4

    out = pl.pallas_call(
        _MM_KERNELS[mode],
        out_shape=jax.ShapeDtypeStruct((Mp, Np), jnp.float32),
        grid_spec=pltpu.PrefetchScalarGridSpec(
            num_scalar_prefetch=0,
            grid=grid,
            in_specs=[a_bs, b_bs],
            out_specs=pl.BlockSpec((tm, tn), lambda i, j, l: (i, j)),
            scratch_shapes=[pltpu.VMEM((tm, tn), jnp.float32)]),
        compiler_params=pltpu.CompilerParams(
            dimension_semantics=("parallel", "parallel", "arbitrary"),
            vmem_limit_bytes=32 * 1024 * 1024),
        cost_estimate=pl.CostEstimate(
            flops=flops, transcendentals=0, bytes_accessed=bytes_accessed),
    )(a16, b16)
    return out[:M, :N]


# custom VJP: forward NN matmul, backward uses NT/TN kernels (no HBM transposes)
@jax.custom_vjp
def pallas_matmul(a, b):
    return _tiled_matmul(a, b, "nn")


def _mm_fwd(a, b):
    return _tiled_matmul(a, b, "nn"), (a, b)


def _mm_bwd(res, g):
    a, b = res
    da = _tiled_matmul(g, b, "nt")      # g @ b.T  -> shape of a
    db = _tiled_matmul(a, g, "tn")      # a.T @ g  -> shape of b
    return da.astype(a.dtype), db.astype(b.dtype)


pallas_matmul.defvjp(_mm_fwd, _mm_bwd)


# --------------------- Pallas gradient-mask multiply kernel ------------------
def _mask_mul_kernel(x_ref, g_ref, o_ref):
    # (relu(g) > 0) == (g > 0)
    o_ref[...] = x_ref[...] * (g_ref[...] > 0.0).astype(x_ref.dtype)


def pallas_mask_mul(x, grads):
    shape = x.shape
    total = x.size
    lanes = 512                                   # lane-dense slab, mult of 128
    rows = -(-total // lanes)
    block_rows = 512
    if rows <= block_rows:
        rows_p = _round_up(rows, 8)
        block_rows = rows_p
    else:
        rows_p = _round_up(rows, block_rows)
    pad = rows_p * lanes - total
    xf = jnp.pad(x.reshape(-1).astype(jnp.float32), (0, pad)).reshape(rows_p, lanes)
    gf = jnp.pad(grads.reshape(-1).astype(jnp.float32), (0, pad)).reshape(rows_p, lanes)
    out = pl.pallas_call(
        _mask_mul_kernel,
        out_shape=jax.ShapeDtypeStruct((rows_p, lanes), jnp.float32),
        grid=(rows_p // block_rows,),
        in_specs=[pl.BlockSpec((block_rows, lanes), lambda i: (i, 0)),
                  pl.BlockSpec((block_rows, lanes), lambda i: (i, 0))],
        out_specs=pl.BlockSpec((block_rows, lanes), lambda i: (i, 0)),
        compiler_params=pltpu.CompilerParams(
            dimension_semantics=("parallel",)),
    )(xf, gf)
    return out.reshape(-1)[:total].reshape(shape)


# ------------------------------ ResNet building blocks -----------------------
def conv2d_nhwc(x, w, stride, padding):
    """x: (N,H,W,Cin), w: (kh,kw,Cin,Cout). 1x1 -> direct Pallas matmul,
    kxk -> im2col + tiled Pallas matmul."""
    N, H, W, C = x.shape
    kh, kw, cin, cout = w.shape
    if kh == 1 and kw == 1 and padding == 0:
        xs = x[:, ::stride, ::stride, :] if stride != 1 else x
        n, ho, wo, _ = xs.shape
        y = pallas_matmul(xs.reshape(n * ho * wo, cin), w.reshape(cin, cout))
        return y.reshape(n, ho, wo, cout)
    # TODO(synk): fold the kh*kw taps into the Pallas K grid axis (or BN/ReLU
    # into the matmul epilogue) to avoid materializing the im2col copy for 3x3.
    xp = jnp.pad(x, ((0, 0), (padding, padding), (padding, padding), (0, 0)))
    Ho = (H + 2 * padding - kh) // stride + 1
    Wo = (W + 2 * padding - kw) // stride + 1
    cols = []
    for i in range(kh):
        for j in range(kw):
            cols.append(xp[:, i:i + stride * Ho:stride,
                           j:j + stride * Wo:stride, :])
    patches = jnp.concatenate(cols, axis=-1)            # (N, Ho, Wo, kh*kw*C)
    a = patches.reshape(N * Ho * Wo, kh * kw * cin)
    y = pallas_matmul(a, w.reshape(kh * kw * cin, cout))
    return y.reshape(N, Ho, Wo, cout)


def batchnorm(x, p, eps=1e-5):
    gamma, beta, mean, var = p
    inv = gamma / jnp.sqrt(var + eps)
    return x * inv + (beta - mean * inv)


def maxpool_3x3_s2_p1(x):
    return lax.reduce_window(
        x, -jnp.inf, lax.max,
        window_dimensions=(1, 3, 3, 1),
        window_strides=(1, 2, 2, 1),
        padding=((0, 0), (1, 1), (1, 1), (0, 0)))


def bottleneck(x, p, stride):
    out = conv2d_nhwc(x, p['conv1_w'], 1, 0)
    out = jax.nn.relu(batchnorm(out, p['bn1']))
    out = conv2d_nhwc(out, p['conv2_w'], stride, 1)
    out = jax.nn.relu(batchnorm(out, p['bn2']))
    out = conv2d_nhwc(out, p['conv3_w'], 1, 0)
    out = batchnorm(out, p['bn3'])
    if 'down_w' in p:
        identity = batchnorm(conv2d_nhwc(x, p['down_w'], stride, 0), p['down_bn'])
    else:
        identity = x
    return jax.nn.relu(out + identity)


def resnet_forward(params, x_nchw):
    x = jnp.transpose(x_nchw, (0, 2, 3, 1))            # NCHW -> NHWC
    x = conv2d_nhwc(x, params['conv1_w'], 2, 1)        # custom conv1: 3->64 k3 s2 p1
    x = jax.nn.relu(batchnorm(x, params['bn1']))
    x = maxpool_3x3_s2_p1(x)
    for blk, stride in zip(params['blocks'], params['block_strides']):
        x = bottleneck(x, blk, stride)
    x = jnp.mean(x, axis=(1, 2))                       # adaptive avg pool -> (N, C)
    # num_classes=1: lane-width-1 output is a bad Pallas fit; use XLA dot here.
    logits = jnp.dot(x, params['fc_w']) + params['fc_b']
    return logits                                      # (N, num_classes=1)


# --------------------------------- parameter init ----------------------------
def _init_bn(key, c):
    k1, k2, k3, k4 = jax.random.split(key, 4)
    gamma = 1.0 + 0.1 * jax.random.normal(k1, (c,), jnp.float32)
    beta = 0.1 * jax.random.normal(k2, (c,), jnp.float32)
    mean = 0.1 * jax.random.normal(k3, (c,), jnp.float32)
    var = 1.0 + 0.1 * jnp.abs(jax.random.normal(k4, (c,), jnp.float32))
    return (gamma, beta, mean, var)


def _init_conv(key, kh, kw, cin, cout):
    scale = 1.0 / jnp.sqrt(float(kh * kw * cin))
    return scale * jax.random.normal(key, (kh, kw, cin, cout), jnp.float32)


def init_resnet_params(key, stages=((32, 128, 1), (64, 256, 2)),
                       conv1_out=64, num_classes=1):
    keys = iter(jax.random.split(key, 64))
    params = {
        'conv1_w': _init_conv(next(keys), 3, 3, 3, conv1_out),
        'bn1': _init_bn(next(keys), conv1_out),
    }
    blocks, strides = [], []
    cin = conv1_out
    for mid, cout, stride in stages:
        blk = {
            'conv1_w': _init_conv(next(keys), 1, 1, cin, mid),
            'bn1': _init_bn(next(keys), mid),
            'conv2_w': _init_conv(next(keys), 3, 3, mid, mid),
            'bn2': _init_bn(next(keys), mid),
            'conv3_w': _init_conv(next(keys), 1, 1, mid, cout),
            'bn3': _init_bn(next(keys), cout),
        }
        if stride != 1 or cin != cout:
            blk['down_w'] = _init_conv(next(keys), 1, 1, cin, cout)
            blk['down_bn'] = _init_bn(next(keys), cout)
        blocks.append(blk)
        strides.append(stride)
        cin = cout
    params['blocks'] = blocks
    params['block_strides'] = tuple(strides)
    params['fc_w'] = _init_conv(next(keys), 1, 1, cin, num_classes).reshape(cin, num_classes)
    params['fc_b'] = 0.1 * jax.random.normal(next(keys), (num_classes,), jnp.float32)
    return params


# ------------------------------- ResnetGrad.forward --------------------------
def resnet_grad_forward(params_A, params_B, x):
    # model_A is frozen (eval); only the gradient w.r.t. the input is needed.
    def loss_fn(inp):
        out_A = resnet_forward(params_A, inp)          # (N, 1)
        return out_A.sum()                             # == sum(dim=1).backward(ones)

    gradients = jax.grad(loss_fn)(x)
    x_masked = pallas_mask_mul(x, gradients)           # x * (relu(grad) > 0).float()
    return resnet_forward(params_B, x_masked)


if __name__ == "__main__":
    key = jax.random.PRNGKey(0)
    kA, kB, kx = jax.random.split(key, 3)
    params_A = init_resnet_params(kA)
    params_B = init_resnet_params(kB)
    x = jax.random.normal(kx, (2, 3, 16, 16), jnp.float32)   # NCHW input

    fwd = jax.jit(functools.partial(resnet_grad_forward, params_A, params_B))
    out = fwd(x)
    jax.block_until_ready(out)
    assert out.shape == (2, 1) and out.dtype == jnp.float32
    print("KERNEL_OK")
</pallas_src>

<mosaic_0001>
module attributes {stable_mosaic.version = 11 : i64} {
  func.func @kernel(%arg0: i32, %arg1: i32, %arg2: i32, %arg3: memref<128x128xbf16, #tpu.memory_space<vmem>>, %arg4: memref<128x128xbf16, #tpu.memory_space<vmem>>, %arg5: memref<128x128xf32, #tpu.memory_space<vmem>>, %arg6: memref<128x128xf32, #tpu.memory_space<vmem>>) attributes {dimension_semantics = [#tpu.dimension_semantics<parallel>, #tpu.dimension_semantics<parallel>, #tpu.dimension_semantics<arbitrary>], iteration_bounds = array<i64: 1, 1, 1>, scalar_prefetch = 0 : i64, scratch_operands = 1 : i64, tpu.core_type = #tpu.core_type<tc>, window_params = [{transform_indices = @transform_0, window_bounds = array<i64: 128, 128>}, {transform_indices = @transform_1, window_bounds = array<i64: 128, 128>}, {transform_indices = @transform_2, window_bounds = array<i64: 128, 128>}]} {
    %c0_i32 = arith.constant 0 : i32
    %0 = arith.cmpi eq, %arg2, %c0_i32 : i32
    %1 = arith.extui %0 : i1 to i32
    %c0_i32_0 = arith.constant 0 : i32
    %2 = arith.cmpi ne, %1, %c0_i32_0 : i32
    scf.if %2 {
      %cst_10 = arith.constant 0.000000e+00 : f32
      %12 = vector.broadcast %cst_10 : f32 to vector<128x128xf32>
      %c0_11 = arith.constant 0 : index
      %c0_12 = arith.constant 0 : index
      %13 = vector.load %arg6[%c0_11, %c0_12] : memref<128x128xf32, #tpu.memory_space<vmem>>, vector<128x128xf32>
      tpu.vector_store %arg6[%c0_11, %c0_12], %12 {strides = array<i32>} : memref<128x128xf32, #tpu.memory_space<vmem>>, vector<128x128xf32>,
    } else {
    }
    %c0 = arith.constant 0 : index
    %c0_1 = arith.constant 0 : index
    %3 = vector.load %arg6[%c0, %c0_1] : memref<128x128xf32, #tpu.memory_space<vmem>>, vector<128x128xf32>
    %c0_2 = arith.constant 0 : index
    %c0_3 = arith.constant 0 : index
    %4 = vector.load %arg3[%c0_2, %c0_3] : memref<128x128xbf16, #tpu.memory_space<vmem>>, vector<128x128xbf16>
    %c0_4 = arith.constant 0 : index
    %c0_5 = arith.constant 0 : index
    %5 = vector.load %arg4[%c0_4, %c0_5] : memref<128x128xbf16, #tpu.memory_space<vmem>>, vector<128x128xbf16>
    %cst = arith.constant dense<0.000000e+00> : vector<128x128xf32>
    %6 = tpu.matmul %4, %5, %cst {dimension_numbers = #tpu.dot_dimension_numbers<[1], [0], [0], [1], [0, 0, 1, 1], [], []>} : vector<128x128xbf16>, vector<128x128xbf16>, vector<128x128xf32> -> vector<128x128xf32>
    %7 = arith.addf %3, %6 : vector<128x128xf32>
    %c0_6 = arith.constant 0 : index
    %c0_7 = arith.constant 0 : index
    %8 = vector.load %arg6[%c0_6, %c0_7] : memref<128x128xf32, #tpu.memory_space<vmem>>, vector<128x128xf32>
    tpu.vector_store %arg6[%c0_6, %c0_7], %7 {strides = array<i32>} : memref<128x128xf32, #tpu.memory_space<vmem>>, vector<128x128xf32>,
    %c0_i32_8 = arith.constant 0 : i32
    %9 = arith.cmpi eq, %arg2, %c0_i32_8 : i32
    %10 = arith.extui %9 : i1 to i32
    %c0_i32_9 = arith.constant 0 : i32
    %11 = arith.cmpi ne, %10, %c0_i32_9 : i32
    scf.if %11 {
      %c0_10 = arith.constant 0 : index
      %c0_11 = arith.constant 0 : index
      %12 = vector.load %arg6[%c0_10, %c0_11] : memref<128x128xf32, #tpu.memory_space<vmem>>, vector<128x128xf32>
      %c0_12 = arith.constant 0 : index
      %c0_13 = arith.constant 0 : index
      %13 = vector.load %arg5[%c0_12, %c0_13] : memref<128x128xf32, #tpu.memory_space<vmem>>, vector<128x128xf32>
      tpu.vector_store %arg5[%c0_12, %c0_13], %12 {strides = array<i32>} : memref<128x128xf32, #tpu.memory_space<vmem>>, vector<128x128xf32>,
    } else {
    }
    return
  }
  func.func @transform_0(%arg0: i32, %arg1: i32, %arg2: i32) -> (i32, i32) {
    %c0_i32 = arith.constant 0 : i32
    return %arg0, %arg2 : i32, i32
  }
  func.func @transform_1(%arg0: i32, %arg1: i32, %arg2: i32) -> (i32, i32) {
    %c0_i32 = arith.constant 0 : i32
    return %arg2, %arg1 : i32, i32
  }
  func.func @transform_2(%arg0: i32, %arg1: i32, %arg2: i32) -> (i32, i32) {
    %c0_i32 = arith.constant 0 : i32
    return %arg0, %arg1 : i32, i32
  }
}

module attributes {stable_mosaic.version = 11 : i64} {
  func.func @kernel(%arg0: i32, %arg1: i32, %arg2: i32, %arg3: memref<128x384xbf16, #tpu.memory_space<vmem>>, %arg4: memref<384x128xbf16, #tpu.memory_space<vmem>>, %arg5: memref<128x128xf32, #tpu.memory_space<vmem>>, %arg6: memref<128x128xf32, #tpu.memory_space<vmem>>) attributes {dimension_semantics = [#tpu.dimension_semantics<parallel>, #tpu.dimension_semantics<parallel>, #tpu.dimension_semantics<arbitrary>], iteration_bounds = array<i64: 1, 1, 1>, scalar_prefetch = 0 : i64, scratch_operands = 1 : i64, tpu.core_type = #tpu.core_type<tc>, window_params = [{transform_indices = @transform_0, window_bounds = array<i64: 128, 384>}, {transform_indices = @transform_1, window_bounds = array<i64: 384, 128>}, {transform_indices = @transform_2, window_bounds = array<i64: 128, 128>}]} {
    %c0_i32 = arith.constant 0 : i32
    %0 = arith.cmpi eq, %arg2, %c0_i32 : i32
    %1 = arith.extui %0 : i1 to i32
    %c0_i32_0 = arith.constant 0 : i32
    %2 = arith.cmpi ne, %1, %c0_i32_0 : i32
    scf.if %2 {
      %cst_10 = arith.constant 0.000000e+00 : f32
      %12 = vector.broadcast %cst_10 : f32 to vector<128x128xf32>
      %c0_11 = arith.constant 0 : index
      %c0_12 = arith.constant 0 : index
      %13 = vector.load %arg6[%c0_11, %c0_12] : memref<128x128xf32, #tpu.memory_space<vmem>>, vector<128x128xf32>
      tpu.vector_store %arg6[%c0_11, %c0_12], %12 {strides = array<i32>} : memref<128x128xf32, #tpu.memory_space<vmem>>, vector<128x128xf32>,
    } else {
    }
    %c0 = arith.constant 0 : index
    %c0_1 = arith.constant 0 : index
    %3 = vector.load %arg6[%c0, %c0_1] : memref<128x128xf32, #tpu.memory_space<vmem>>, vector<128x128xf32>
    %c0_2 = arith.constant 0 : index
    %c0_3 = arith.constant 0 : index
    %4 = vector.load %arg3[%c0_2, %c0_3] : memref<128x384xbf16, #tpu.memory_space<vmem>>, vector<128x384xbf16>
    %c0_4 = arith.constant 0 : index
    %c0_5 = arith.constant 0 : index
    %5 = vector.load %arg4[%c0_4, %c0_5] : memref<384x128xbf16, #tpu.memory_space<vmem>>, vector<384x128xbf16>
    %cst = arith.constant dense<0.000000e+00> : vector<128x128xf32>
    %6 = tpu.matmul %4, %5, %cst {dimension_numbers = #tpu.dot_dimension_numbers<[1], [0], [0], [1], [0, 0, 1, 1], [], []>} : vector<128x384xbf16>, vector<384x128xbf16>, vector<128x128xf32> -> vector<128x128xf32>
    %7 = arith.addf %3, %6 : vector<128x128xf32>
    %c0_6 = arith.constant 0 : index
    %c0_7 = arith.constant 0 : index
    %8 = vector.load %arg6[%c0_6, %c0_7] : memref<128x128xf32, #tpu.memory_space<vmem>>, vector<128x128xf32>
    tpu.vector_store %arg6[%c0_6, %c0_7], %7 {strides = array<i32>} : memref<128x128xf32, #tpu.memory_space<vmem>>, vector<128x128xf32>,
    %c0_i32_8 = arith.constant 0 : i32
    %9 = arith.cmpi eq, %arg2, %c0_i32_8 : i32
    %10 = arith.extui %9 : i1 to i32
    %c0_i32_9 = arith.constant 0 : i32
    %11 = arith.cmpi ne, %10, %c0_i32_9 : i32
    scf.if %11 {
      %c0_10 = arith.constant 0 : index
      %c0_11 = arith.constant 0 : index
      %12 = vector.load %arg6[%c0_10, %c0_11] : memref<128x128xf32, #tpu.memory_space<vmem>>, vector<128x128xf32>
      %c0_12 = arith.constant 0 : index
      %c0_13 = arith.constant 0 : index
      %13 = vector.load %arg5[%c0_12, %c0_13] : memref<128x128xf32, #tpu.memory_space<vmem>>, vector<128x128xf32>
      tpu.vector_store %arg5[%c0_12, %c0_13], %12 {strides = array<i32>} : memref<128x128xf32, #tpu.memory_space<vmem>>, vector<128x128xf32>,
    } else {
    }
    return
  }
  func.func @transform_0(%arg0: i32, %arg1: i32, %arg2: i32) -> (i32, i32) {
    %c0_i32 = arith.constant 0 : i32
    return %arg0, %arg2 : i32, i32
  }
  func.func @transform_1(%arg0: i32, %arg1: i32, %arg2: i32) -> (i32, i32) {
    %c0_i32 = arith.constant 0 : i32
    return %arg2, %arg1 : i32, i32
  }
  func.func @transform_2(%arg0: i32, %arg1: i32, %arg2: i32) -> (i32, i32) {
    %c0_i32 = arith.constant 0 : i32
    return %arg0, %arg1 : i32, i32
  }
}

module attributes {stable_mosaic.version = 11 : i64} {
  func.func @kernel(%arg0: i32, %arg1: i32, %arg2: i32, %arg3: memref<128x128xbf16, #tpu.memory_space<vmem>>, %arg4: memref<128x256xbf16, #tpu.memory_space<vmem>>, %arg5: memref<128x256xf32, #tpu.memory_space<vmem>>, %arg6: memref<128x256xf32, #tpu.memory_space<vmem>>) attributes {dimension_semantics = [#tpu.dimension_semantics<parallel>, #tpu.dimension_semantics<parallel>, #tpu.dimension_semantics<arbitrary>], iteration_bounds = array<i64: 1, 1, 1>, scalar_prefetch = 0 : i64, scratch_operands = 1 : i64, tpu.core_type = #tpu.core_type<tc>, window_params = [{transform_indices = @transform_0, window_bounds = array<i64: 128, 128>}, {transform_indices = @transform_1, window_bounds = array<i64: 128, 256>}, {transform_indices = @transform_2, window_bounds = array<i64: 128, 256>}]} {
    %c0_i32 = arith.constant 0 : i32
    %0 = arith.cmpi eq, %arg2, %c0_i32 : i32
    %1 = arith.extui %0 : i1 to i32
    %c0_i32_0 = arith.constant 0 : i32
    %2 = arith.cmpi ne, %1, %c0_i32_0 : i32
    scf.if %2 {
      %cst_10 = arith.constant 0.000000e+00 : f32
      %12 = vector.broadcast %cst_10 : f32 to vector<128x256xf32>
      %c0_11 = arith.constant 0 : index
      %c0_12 = arith.constant 0 : index
      %13 = vector.load %arg6[%c0_11, %c0_12] : memref<128x256xf32, #tpu.memory_space<vmem>>, vector<128x256xf32>
      tpu.vector_store %arg6[%c0_11, %c0_12], %12 {strides = array<i32>} : memref<128x256xf32, #tpu.memory_space<vmem>>, vector<128x256xf32>,
    } else {
    }
    %c0 = arith.constant 0 : index
    %c0_1 = arith.constant 0 : index
    %3 = vector.load %arg6[%c0, %c0_1] : memref<128x256xf32, #tpu.memory_space<vmem>>, vector<128x256xf32>
    %c0_2 = arith.constant 0 : index
    %c0_3 = arith.constant 0 : index
    %4 = vector.load %arg3[%c0_2, %c0_3] : memref<128x128xbf16, #tpu.memory_space<vmem>>, vector<128x128xbf16>
    %c0_4 = arith.constant 0 : index
    %c0_5 = arith.constant 0 : index
    %5 = vector.load %arg4[%c0_4, %c0_5] : memref<128x256xbf16, #tpu.memory_space<vmem>>, vector<128x256xbf16>
    %cst = arith.constant dense<0.000000e+00> : vector<128x256xf32>
    %6 = tpu.matmul %4, %5, %cst {dimension_numbers = #tpu.dot_dimension_numbers<[1], [0], [0], [1], [0, 0, 1, 1], [], []>} : vector<128x128xbf16>, vector<128x256xbf16>, vector<128x256xf32> -> vector<128x256xf32>
    %7 = arith.addf %3, %6 : vector<128x256xf32>
    %c0_6 = arith.constant 0 : index
    %c0_7 = arith.constant 0 : index
    %8 = vector.load %arg6[%c0_6, %c0_7] : memref<128x256xf32, #tpu.memory_space<vmem>>, vector<128x256xf32>
    tpu.vector_store %arg6[%c0_6, %c0_7], %7 {strides = array<i32>} : memref<128x256xf32, #tpu.memory_space<vmem>>, vector<128x256xf32>,
    %c0_i32_8 = arith.constant 0 : i32
    %9 = arith.cmpi eq, %arg2, %c0_i32_8 : i32
    %10 = arith.extui %9 : i1 to i32
    %c0_i32_9 = arith.constant 0 : i32
    %11 = arith.cmpi ne, %10, %c0_i32_9 : i32
    scf.if %11 {
      %c0_10 = arith.constant 0 : index
      %c0_11 = arith.constant 0 : index
      %12 = vector.load %arg6[%c0_10, %c0_11] : memref<128x256xf32, #tpu.memory_space<vmem>>, vector<128x256xf32>
      %c0_12 = arith.constant 0 : index
      %c0_13 = arith.constant 0 : index
      %13 = vector.load %arg5[%c0_12, %c0_13] : memref<128x256xf32, #tpu.memory_space<vmem>>, vector<128x256xf32>
      tpu.vector_store %arg5[%c0_12, %c0_13], %12 {strides = array<i32>} : memref<128x256xf32, #tpu.memory_space<vmem>>, vector<128x256xf32>,
    } else {
    }
    return
  }
  func.func @transform_0(%arg0: i32, %arg1: i32, %arg2: i32) -> (i32, i32) {
    %c0_i32 = arith.constant 0 : i32
    return %arg0, %arg2 : i32, i32
  }
  func.func @transform_1(%arg0: i32, %arg1: i32, %arg2: i32) -> (i32, i32) {
    %c0_i32 = arith.constant 0 : i32
    return %arg2, %arg1 : i32, i32
  }
  func.func @transform_2(%arg0: i32, %arg1: i32, %arg2: i32) -> (i32, i32) {
    %c0_i32 = arith.constant 0 : i32
    return %arg0, %arg1 : i32, i32
  }
}

module attributes {stable_mosaic.version = 11 : i64} {
  func.func @kernel(%arg0: i32, %arg1: i32, %arg2: i32, %arg3: memref<128x128xbf16, #tpu.memory_space<vmem>>, %arg4: memref<128x128xbf16, #tpu.memory_space<vmem>>, %arg5: memref<128x128xf32, #tpu.memory_space<vmem>>, %arg6: memref<128x128xf32, #tpu.memory_space<vmem>>) attributes {dimension_semantics = [#tpu.dimension_semantics<parallel>, #tpu.dimension_semantics<parallel>, #tpu.dimension_semantics<arbitrary>], iteration_bounds = array<i64: 1, 1, 5>, scalar_prefetch = 0 : i64, scratch_operands = 1 : i64, tpu.core_type = #tpu.core_type<tc>, window_params = [{transform_indices = @transform_0, window_bounds = array<i64: 128, 128>}, {transform_indices = @transform_1, window_bounds = array<i64: 128, 128>}, {transform_indices = @transform_2, window_bounds = array<i64: 128, 128>}]} {
    %c0_i32 = arith.constant 0 : i32
    %0 = arith.cmpi eq, %arg2, %c0_i32 : i32
    %1 = arith.extui %0 : i1 to i32
    %c0_i32_0 = arith.constant 0 : i32
    %2 = arith.cmpi ne, %1, %c0_i32_0 : i32
    scf.if %2 {
      %cst_9 = arith.constant 0.000000e+00 : f32
      %12 = vector.broadcast %cst_9 : f32 to vector<128x128xf32>
      %c0_10 = arith.constant 0 : index
      %c0_11 = arith.constant 0 : index
      %13 = vector.load %arg6[%c0_10, %c0_11] : memref<128x128xf32, #tpu.memory_space<vmem>>, vector<128x128xf32>
      tpu.vector_store %arg6[%c0_10, %c0_11], %12 {strides = array<i32>} : memref<128x128xf32, #tpu.memory_space<vmem>>, vector<128x128xf32>,
    } else {
    }
    %c0 = arith.constant 0 : index
    %c0_1 = arith.constant 0 : index
    %3 = vector.load %arg6[%c0, %c0_1] : memref<128x128xf32, #tpu.memory_space<vmem>>, vector<128x128xf32>
    %c0_2 = arith.constant 0 : index
    %c0_3 = arith.constant 0 : index
    %4 = vector.load %arg3[%c0_2, %c0_3] : memref<128x128xbf16, #tpu.memory_space<vmem>>, vector<128x128xbf16>
    %c0_4 = arith.constant 0 : index
    %c0_5 = arith.constant 0 : index
    %5 = vector.load %arg4[%c0_4, %c0_5] : memref<128x128xbf16, #tpu.memory_space<vmem>>, vector<128x128xbf16>
    %cst = arith.constant dense<0.000000e+00> : vector<128x128xf32>
    %6 = tpu.matmul %4, %5, %cst {dimension_numbers = #tpu.dot_dimension_numbers<[1], [0], [0], [1], [0, 0, 1, 1], [], []>} : vector<128x128xbf16>, vector<128x128xbf16>, vector<128x128xf32> -> vector<128x128xf32>
    %7 = arith.addf %3, %6 : vector<128x128xf32>
    %c0_6 = arith.constant 0 : index
    %c0_7 = arith.constant 0 : index
    %8 = vector.load %arg6[%c0_6, %c0_7] : memref<128x128xf32, #tpu.memory_space<vmem>>, vector<128x128xf32>
    tpu.vector_store %arg6[%c0_6, %c0_7], %7 {strides = array<i32>} : memref<128x128xf32, #tpu.memory_space<vmem>>, vector<128x128xf32>,
    %c4_i32 = arith.constant 4 : i32
    %9 = arith.cmpi eq, %arg2, %c4_i32 : i32
    %10 = arith.extui %9 : i1 to i32
    %c0_i32_8 = arith.constant 0 : i32
    %11 = arith.cmpi ne, %10, %c0_i32_8 : i32
    scf.if %11 {
      %c0_9 = arith.constant 0 : index
      %c0_10 = arith.constant 0 : index
      %12 = vector.load %arg6[%c0_9, %c0_10] : memref<128x128xf32, #tpu.memory_space<vmem>>, vector<128x128xf32>
      %c0_11 = arith.constant 0 : index
      %c0_12 = arith.constant 0 : index
      %13 = vector.load %arg5[%c0_11, %c0_12] : memref<128x128xf32, #tpu.memory_space<vmem>>, vector<128x128xf32>
      tpu.vector_store %arg5[%c0_11, %c0_12], %12 {strides = array<i32>} : memref<128x128xf32, #tpu.memory_space<vmem>>, vector<128x128xf32>,
    } else {
    }
    return
  }
  func.func @transform_0(%arg0: i32, %arg1: i32, %arg2: i32) -> (i32, i32) {
    %c0_i32 = arith.constant 0 : i32
    return %arg0, %arg2 : i32, i32
  }
  func.func @transform_1(%arg0: i32, %arg1: i32, %arg2: i32) -> (i32, i32) {
    %c0_i32 = arith.constant 0 : i32
    return %arg2, %arg1 : i32, i32
  }
  func.func @transform_2(%arg0: i32, %arg1: i32, %arg2: i32) -> (i32, i32) {
    %c0_i32 = arith.constant 0 : i32
    return %arg0, %arg1 : i32, i32
  }
}

module attributes {stable_mosaic.version = 11 : i64} {
  func.func @kernel(%arg0: i32, %arg1: i32, %arg2: i32, %arg3: memref<128x256xbf16, #tpu.memory_space<vmem>>, %arg4: memref<128x256xbf16, #tpu.memory_space<vmem>>, %arg5: memref<128x128xf32, #tpu.memory_space<vmem>>, %arg6: memref<128x128xf32, #tpu.memory_space<vmem>>) attributes {dimension_semantics = [#tpu.dimension_semantics<parallel>, #tpu.dimension_semantics<parallel>, #tpu.dimension_semantics<arbitrary>], iteration_bounds = array<i64: 1, 1, 1>, scalar_prefetch = 0 : i64, scratch_operands = 1 : i64, tpu.core_type = #tpu.core_type<tc>, window_params = [{transform_indices = @transform_0, window_bounds = array<i64: 128, 256>}, {transform_indices = @transform_1, window_bounds = array<i64: 128, 256>}, {transform_indices = @transform_2, window_bounds = array<i64: 128, 128>}]} {
    %c0_i32 = arith.constant 0 : i32
    %0 = arith.cmpi eq, %arg2, %c0_i32 : i32
    %1 = arith.extui %0 : i1 to i32
    %c0_i32_0 = arith.constant 0 : i32
    %2 = arith.cmpi ne, %1, %c0_i32_0 : i32
    scf.if %2 {
      %cst_10 = arith.constant 0.000000e+00 : f32
      %12 = vector.broadcast %cst_10 : f32 to vector<128x128xf32>
      %c0_11 = arith.constant 0 : index
      %c0_12 = arith.constant 0 : index
      %13 = vector.load %arg6[%c0_11, %c0_12] : memref<128x128xf32, #tpu.memory_space<vmem>>, vector<128x128xf32>
      tpu.vector_store %arg6[%c0_11, %c0_12], %12 {strides = array<i32>} : memref<128x128xf32, #tpu.memory_space<vmem>>, vector<128x128xf32>,
    } else {
    }
    %c0 = arith.constant 0 : index
    %c0_1 = arith.constant 0 : index
    %3 = vector.load %arg6[%c0, %c0_1] : memref<128x128xf32, #tpu.memory_space<vmem>>, vector<128x128xf32>
    %c0_2 = arith.constant 0 : index
    %c0_3 = arith.constant 0 : index
    %4 = vector.load %arg3[%c0_2, %c0_3] : memref<128x256xbf16, #tpu.memory_space<vmem>>, vector<128x256xbf16>
    %c0_4 = arith.constant 0 : index
    %c0_5 = arith.constant 0 : index
    %5 = vector.load %arg4[%c0_4, %c0_5] : memref<128x256xbf16, #tpu.memory_space<vmem>>, vector<128x256xbf16>
    %cst = arith.constant dense<0.000000e+00> : vector<128x128xf32>
    %6 = tpu.matmul %4, %5, %cst {dimension_numbers = #tpu.dot_dimension_numbers<[1], [1], [0], [0], [0, 0, 1, 0], [], []>} : vector<128x256xbf16>, vector<128x256xbf16>, vector<128x128xf32> -> vector<128x128xf32>
    %7 = arith.addf %3, %6 : vector<128x128xf32>
    %c0_6 = arith.constant 0 : index
    %c0_7 = arith.constant 0 : index
    %8 = vector.load %arg6[%c0_6, %c0_7] : memref<128x128xf32, #tpu.memory_space<vmem>>, vector<128x128xf32>
    tpu.vector_store %arg6[%c0_6, %c0_7], %7 {strides = array<i32>} : memref<128x128xf32, #tpu.memory_space<vmem>>, vector<128x128xf32>,
    %c0_i32_8 = arith.constant 0 : i32
    %9 = arith.cmpi eq, %arg2, %c0_i32_8 : i32
    %10 = arith.extui %9 : i1 to i32
    %c0_i32_9 = arith.constant 0 : i32
    %11 = arith.cmpi ne, %10, %c0_i32_9 : i32
    scf.if %11 {
      %c0_10 = arith.constant 0 : index
      %c0_11 = arith.constant 0 : index
      %12 = vector.load %arg6[%c0_10, %c0_11] : memref<128x128xf32, #tpu.memory_space<vmem>>, vector<128x128xf32>
      %c0_12 = arith.constant 0 : index
      %c0_13 = arith.constant 0 : index
      %13 = vector.load %arg5[%c0_12, %c0_13] : memref<128x128xf32, #tpu.memory_space<vmem>>, vector<128x128xf32>
      tpu.vector_store %arg5[%c0_12, %c0_13], %12 {strides = array<i32>} : memref<128x128xf32, #tpu.memory_space<vmem>>, vector<128x128xf32>,
    } else {
    }
    return
  }
  func.func @transform_0(%arg0: i32, %arg1: i32, %arg2: i32) -> (i32, i32) {
    %c0_i32 = arith.constant 0 : i32
    return %arg0, %arg2 : i32, i32
  }
  func.func @transform_1(%arg0: i32, %arg1: i32, %arg2: i32) -> (i32, i32) {
    %c0_i32 = arith.constant 0 : i32
    return %arg1, %arg2 : i32, i32
  }
  func.func @transform_2(%arg0: i32, %arg1: i32, %arg2: i32) -> (i32, i32) {
    %c0_i32 = arith.constant 0 : i32
    return %arg0, %arg1 : i32, i32
  }
}

module attributes {stable_mosaic.version = 11 : i64} {
  func.func @kernel(%arg0: i32, %arg1: i32, %arg2: i32, %arg3: memref<128x128xbf16, #tpu.memory_space<vmem>>, %arg4: memref<128x128xbf16, #tpu.memory_space<vmem>>, %arg5: memref<128x128xf32, #tpu.memory_space<vmem>>, %arg6: memref<128x128xf32, #tpu.memory_space<vmem>>) attributes {dimension_semantics = [#tpu.dimension_semantics<parallel>, #tpu.dimension_semantics<parallel>, #tpu.dimension_semantics<arbitrary>], iteration_bounds = array<i64: 1, 5, 1>, scalar_prefetch = 0 : i64, scratch_operands = 1 : i64, tpu.core_type = #tpu.core_type<tc>, window_params = [{transform_indices = @transform_0, window_bounds = array<i64: 128, 128>}, {transform_indices = @transform_1, window_bounds = array<i64: 128, 128>}, {transform_indices = @transform_2, window_bounds = array<i64: 128, 128>}]} {
    %c0_i32 = arith.constant 0 : i32
    %0 = arith.cmpi eq, %arg2, %c0_i32 : i32
    %1 = arith.extui %0 : i1 to i32
    %c0_i32_0 = arith.constant 0 : i32
    %2 = arith.cmpi ne, %1, %c0_i32_0 : i32
    scf.if %2 {
      %cst_10 = arith.constant 0.000000e+00 : f32
      %12 = vector.broadcast %cst_10 : f32 to vector<128x128xf32>
      %c0_11 = arith.constant 0 : index
      %c0_12 = arith.constant 0 : index
      %13 = vector.load %arg6[%c0_11, %c0_12] : memref<128x128xf32, #tpu.memory_space<vmem>>, vector<128x128xf32>
      tpu.vector_store %arg6[%c0_11, %c0_12], %12 {strides = array<i32>} : memref<128x128xf32, #tpu.memory_space<vmem>>, vector<128x128xf32>,
    } else {
    }
    %c0 = arith.constant 0 : index
    %c0_1 = arith.constant 0 : index
    %3 = vector.load %arg6[%c0, %c0_1] : memref<128x128xf32, #tpu.memory_space<vmem>>, vector<128x128xf32>
    %c0_2 = arith.constant 0 : index
    %c0_3 = arith.constant 0 : index
    %4 = vector.load %arg3[%c0_2, %c0_3] : memref<128x128xbf16, #tpu.memory_space<vmem>>, vector<128x128xbf16>
    %c0_4 = arith.constant 0 : index
    %c0_5 = arith.constant 0 : index
    %5 = vector.load %arg4[%c0_4, %c0_5] : memref<128x128xbf16, #tpu.memory_space<vmem>>, vector<128x128xbf16>
    %cst = arith.constant dense<0.000000e+00> : vector<128x128xf32>
    %6 = tpu.matmul %4, %5, %cst {dimension_numbers = #tpu.dot_dimension_numbers<[1], [1], [0], [0], [0, 0, 1, 0], [], []>} : vector<128x128xbf16>, vector<128x128xbf16>, vector<128x128xf32> -> vector<128x128xf32>
    %7 = arith.addf %3, %6 : vector<128x128xf32>
    %c0_6 = arith.constant 0 : index
    %c0_7 = arith.constant 0 : index
    %8 = vector.load %arg6[%c0_6, %c0_7] : memref<128x128xf32, #tpu.memory_space<vmem>>, vector<128x128xf32>
    tpu.vector_store %arg6[%c0_6, %c0_7], %7 {strides = array<i32>} : memref<128x128xf32, #tpu.memory_space<vmem>>, vector<128x128xf32>,
    %c0_i32_8 = arith.constant 0 : i32
    %9 = arith.cmpi eq, %arg2, %c0_i32_8 : i32
    %10 = arith.extui %9 : i1 to i32
    %c0_i32_9 = arith.constant 0 : i32
    %11 = arith.cmpi ne, %10, %c0_i32_9 : i32
    scf.if %11 {
      %c0_10 = arith.constant 0 : index
      %c0_11 = arith.constant 0 : index
      %12 = vector.load %arg6[%c0_10, %c0_11] : memref<128x128xf32, #tpu.memory_space<vmem>>, vector<128x128xf32>
      %c0_12 = arith.constant 0 : index
      %c0_13 = arith.constant 0 : index
      %13 = vector.load %arg5[%c0_12, %c0_13] : memref<128x128xf32, #tpu.memory_space<vmem>>, vector<128x128xf32>
      tpu.vector_store %arg5[%c0_12, %c0_13], %12 {strides = array<i32>} : memref<128x128xf32, #tpu.memory_space<vmem>>, vector<128x128xf32>,
    } else {
    }
    return
  }
  func.func @transform_0(%arg0: i32, %arg1: i32, %arg2: i32) -> (i32, i32) {
    %c0_i32 = arith.constant 0 : i32
    return %arg0, %arg2 : i32, i32
  }
  func.func @transform_1(%arg0: i32, %arg1: i32, %arg2: i32) -> (i32, i32) {
    %c0_i32 = arith.constant 0 : i32
    return %arg1, %arg2 : i32, i32
  }
  func.func @transform_2(%arg0: i32, %arg1: i32, %arg2: i32) -> (i32, i32) {
    %c0_i32 = arith.constant 0 : i32
    return %arg0, %arg1 : i32, i32
  }
}

module attributes {stable_mosaic.version = 11 : i64} {
  func.func @kernel(%arg0: i32, %arg1: i32, %arg2: i32, %arg3: memref<128x256xbf16, #tpu.memory_space<vmem>>, %arg4: memref<128x256xbf16, #tpu.memory_space<vmem>>, %arg5: memref<128x128xf32, #tpu.memory_space<vmem>>, %arg6: memref<128x128xf32, #tpu.memory_space<vmem>>) attributes {dimension_semantics = [#tpu.dimension_semantics<parallel>, #tpu.dimension_semantics<parallel>, #tpu.dimension_semantics<arbitrary>], iteration_bounds = array<i64: 1, 1, 1>, scalar_prefetch = 0 : i64, scratch_operands = 1 : i64, tpu.core_type = #tpu.core_type<tc>, window_params = [{transform_indices = @transform_0, window_bounds = array<i64: 128, 256>}, {transform_indices = @transform_1, window_bounds = array<i64: 128, 256>}, {transform_indices = @transform_2, window_bounds = array<i64: 128, 128>}]} {
    %c0_i32 = arith.constant 0 : i32
    %0 = arith.cmpi eq, %arg2, %c0_i32 : i32
    %1 = arith.extui %0 : i1 to i32
    %c0_i32_0 = arith.constant 0 : i32
    %2 = arith.cmpi ne, %1, %c0_i32_0 : i32
    scf.if %2 {
      %cst_10 = arith.constant 0.000000e+00 : f32
      %12 = vector.broadcast %cst_10 : f32 to vector<128x128xf32>
      %c0_11 = arith.constant 0 : index
      %c0_12 = arith.constant 0 : index
      %13 = vector.load %arg6[%c0_11, %c0_12] : memref<128x128xf32, #tpu.memory_space<vmem>>, vector<128x128xf32>
      tpu.vector_store %arg6[%c0_11, %c0_12], %12 {strides = array<i32>} : memref<128x128xf32, #tpu.memory_space<vmem>>, vector<128x128xf32>,
    } else {
    }
    %c0 = arith.constant 0 : index
    %c0_1 = arith.constant 0 : index
    %3 = vector.load %arg6[%c0, %c0_1] : memref<128x128xf32, #tpu.memory_space<vmem>>, vector<128x128xf32>
    %c0_2 = arith.constant 0 : index
    %c0_3 = arith.constant 0 : index
    %4 = vector.load %arg3[%c0_2, %c0_3] : memref<128x256xbf16, #tpu.memory_space<vmem>>, vector<128x256xbf16>
    %c0_4 = arith.constant 0 : index
    %c0_5 = arith.constant 0 : index
    %5 = vector.load %arg4[%c0_4, %c0_5] : memref<128x256xbf16, #tpu.memory_space<vmem>>, vector<128x256xbf16>
    %cst = arith.constant dense<0.000000e+00> : vector<128x128xf32>
    %6 = tpu.matmul %4, %5, %cst {dimension_numbers = #tpu.dot_dimension_numbers<[1], [1], [0], [0], [0, 0, 1, 0], [], []>} : vector<128x256xbf16>, vector<128x256xbf16>, vector<128x128xf32> -> vector<128x128xf32>
    %7 = arith.addf %3, %6 : vector<128x128xf32>
    %c0_6 = arith.constant 0 : index
    %c0_7 = arith.constant 0 : index
    %8 = vector.load %arg6[%c0_6, %c0_7] : memref<128x128xf32, #tpu.memory_space<vmem>>, vector<128x128xf32>
    tpu.vector_store %arg6[%c0_6, %c0_7], %7 {strides = array<i32>} : memref<128x128xf32, #tpu.memory_space<vmem>>, vector<128x128xf32>,
    %c0_i32_8 = arith.constant 0 : i32
    %9 = arith.cmpi eq, %arg2, %c0_i32_8 : i32
    %10 = arith.extui %9 : i1 to i32
    %c0_i32_9 = arith.constant 0 : i32
    %11 = arith.cmpi ne, %10, %c0_i32_9 : i32
    scf.if %11 {
      %c0_10 = arith.constant 0 : index
      %c0_11 = arith.constant 0 : index
      %12 = vector.load %arg6[%c0_10, %c0_11] : memref<128x128xf32, #tpu.memory_space<vmem>>, vector<128x128xf32>
      %c0_12 = arith.constant 0 : index
      %c0_13 = arith.constant 0 : index
      %13 = vector.load %arg5[%c0_12, %c0_13] : memref<128x128xf32, #tpu.memory_space<vmem>>, vector<128x128xf32>
      tpu.vector_store %arg5[%c0_12, %c0_13], %12 {strides = array<i32>} : memref<128x128xf32, #tpu.memory_space<vmem>>, vector<128x128xf32>,
    } else {
    }
    return
  }
  func.func @transform_0(%arg0: i32, %arg1: i32, %arg2: i32) -> (i32, i32) {
    %c0_i32 = arith.constant 0 : i32
    return %arg0, %arg2 : i32, i32
  }
  func.func @transform_1(%arg0: i32, %arg1: i32, %arg2: i32) -> (i32, i32) {
    %c0_i32 = arith.constant 0 : i32
    return %arg1, %arg2 : i32, i32
  }
  func.func @transform_2(%arg0: i32, %arg1: i32, %arg2: i32) -> (i32, i32) {
    %c0_i32 = arith.constant 0 : i32
    return %arg0, %arg1 : i32, i32
  }
}

module attributes {stable_mosaic.version = 11 : i64} {
  func.func @kernel(%arg0: i32, %arg1: i32, %arg2: i32, %arg3: memref<128x128xbf16, #tpu.memory_space<vmem>>, %arg4: memref<128x128xbf16, #tpu.memory_space<vmem>>, %arg5: memref<128x128xf32, #tpu.memory_space<vmem>>, %arg6: memref<128x128xf32, #tpu.memory_space<vmem>>) attributes {dimension_semantics = [#tpu.dimension_semantics<parallel>, #tpu.dimension_semantics<parallel>, #tpu.dimension_semantics<arbitrary>], iteration_bounds = array<i64: 1, 1, 1>, scalar_prefetch = 0 : i64, scratch_operands = 1 : i64, tpu.core_type = #tpu.core_type<tc>, window_params = [{transform_indices = @transform_0, window_bounds = array<i64: 128, 128>}, {transform_indices = @transform_1, window_bounds = array<i64: 128, 128>}, {transform_indices = @transform_2, window_bounds = array<i64: 128, 128>}]} {
    %c0_i32 = arith.constant 0 : i32
    %0 = arith.cmpi eq, %arg2, %c0_i32 : i32
    %1 = arith.extui %0 : i1 to i32
    %c0_i32_0 = arith.constant 0 : i32
    %2 = arith.cmpi ne, %1, %c0_i32_0 : i32
    scf.if %2 {
      %cst_10 = arith.constant 0.000000e+00 : f32
      %12 = vector.broadcast %cst_10 : f32 to vector<128x128xf32>
      %c0_11 = arith.constant 0 : index
      %c0_12 = arith.constant 0 : index
      %13 = vector.load %arg6[%c0_11, %c0_12] : memref<128x128xf32, #tpu.memory_space<vmem>>, vector<128x128xf32>
      tpu.vector_store %arg6[%c0_11, %c0_12], %12 {strides = array<i32>} : memref<128x128xf32, #tpu.memory_space<vmem>>, vector<128x128xf32>,
    } else {
    }
    %c0 = arith.constant 0 : index
    %c0_1 = arith.constant 0 : index
    %3 = vector.load %arg6[%c0, %c0_1] : memref<128x128xf32, #tpu.memory_space<vmem>>, vector<128x128xf32>
    %c0_2 = arith.constant 0 : index
    %c0_3 = arith.constant 0 : index
    %4 = vector.load %arg3[%c0_2, %c0_3] : memref<128x128xbf16, #tpu.memory_space<vmem>>, vector<128x128xbf16>
    %c0_4 = arith.constant 0 : index
    %c0_5 = arith.constant 0 : index
    %5 = vector.load %arg4[%c0_4, %c0_5] : memref<128x128xbf16, #tpu.memory_space<vmem>>, vector<128x128xbf16>
    %cst = arith.constant dense<0.000000e+00> : vector<128x128xf32>
    %6 = tpu.matmul %4, %5, %cst {dimension_numbers = #tpu.dot_dimension_numbers<[1], [1], [0], [0], [0, 0, 1, 0], [], []>} : vector<128x128xbf16>, vector<128x128xbf16>, vector<128x128xf32> -> vector<128x128xf32>
    %7 = arith.addf %3, %6 : vector<128x128xf32>
    %c0_6 = arith.constant 0 : index
    %c0_7 = arith.constant 0 : index
    %8 = vector.load %arg6[%c0_6, %c0_7] : memref<128x128xf32, #tpu.memory_space<vmem>>, vector<128x128xf32>
    tpu.vector_store %arg6[%c0_6, %c0_7], %7 {strides = array<i32>} : memref<128x128xf32, #tpu.memory_space<vmem>>, vector<128x128xf32>,
    %c0_i32_8 = arith.constant 0 : i32
    %9 = arith.cmpi eq, %arg2, %c0_i32_8 : i32
    %10 = arith.extui %9 : i1 to i32
    %c0_i32_9 = arith.constant 0 : i32
    %11 = arith.cmpi ne, %10, %c0_i32_9 : i32
    scf.if %11 {
      %c0_10 = arith.constant 0 : index
      %c0_11 = arith.constant 0 : index
      %12 = vector.load %arg6[%c0_10, %c0_11] : memref<128x128xf32, #tpu.memory_space<vmem>>, vector<128x128xf32>
      %c0_12 = arith.constant 0 : index
      %c0_13 = arith.constant 0 : index
      %13 = vector.load %arg5[%c0_12, %c0_13] : memref<128x128xf32, #tpu.memory_space<vmem>>, vector<128x128xf32>
      tpu.vector_store %arg5[%c0_12, %c0_13], %12 {strides = array<i32>} : memref<128x128xf32, #tpu.memory_space<vmem>>, vector<128x128xf32>,
    } else {
    }
    return
  }
  func.func @transform_0(%arg0: i32, %arg1: i32, %arg2: i32) -> (i32, i32) {
    %c0_i32 = arith.constant 0 : i32
    return %arg0, %arg2 : i32, i32
  }
  func.func @transform_1(%arg0: i32, %arg1: i32, %arg2: i32) -> (i32, i32) {
    %c0_i32 = arith.constant 0 : i32
    return %arg1, %arg2 : i32, i32
  }
  func.func @transform_2(%arg0: i32, %arg1: i32, %arg2: i32) -> (i32, i32) {
    %c0_i32 = arith.constant 0 : i32
    return %arg0, %arg1 : i32, i32
  }
}

module attributes {stable_mosaic.version = 11 : i64} {
  func.func @kernel(%arg0: i32, %arg1: i32, %arg2: i32, %arg3: memref<128x128xbf16, #tpu.memory_space<vmem>>, %arg4: memref<128x128xbf16, #tpu.memory_space<vmem>>, %arg5: memref<128x128xf32, #tpu.memory_space<vmem>>, %arg6: memref<128x128xf32, #tpu.memory_space<vmem>>) attributes {dimension_semantics = [#tpu.dimension_semantics<parallel>, #tpu.dimension_semantics<parallel>, #tpu.dimension_semantics<arbitrary>], iteration_bounds = array<i64: 1, 3, 1>, scalar_prefetch = 0 : i64, scratch_operands = 1 : i64, tpu.core_type = #tpu.core_type<tc>, window_params = [{transform_indices = @transform_0, window_bounds = array<i64: 128, 128>}, {transform_indices = @transform_1, window_bounds = array<i64: 128, 128>}, {transform_indices = @transform_2, window_bounds = array<i64: 128, 128>}]} {
    %c0_i32 = arith.constant 0 : i32
    %0 = arith.cmpi eq, %arg2, %c0_i32 : i32
    %1 = arith.extui %0 : i1 to i32
    %c0_i32_0 = arith.constant 0 : i32
    %2 = arith.cmpi ne, %1, %c0_i32_0 : i32
    scf.if %2 {
      %cst_10 = arith.constant 0.000000e+00 : f32
      %12 = vector.broadcast %cst_10 : f32 to vector<128x128xf32>
      %c0_11 = arith.constant 0 : index
      %c0_12 = arith.constant 0 : index
      %13 = vector.load %arg6[%c0_11, %c0_12] : memref<128x128xf32, #tpu.memory_space<vmem>>, vector<128x128xf32>
      tpu.vector_store %arg6[%c0_11, %c0_12], %12 {strides = array<i32>} : memref<128x128xf32, #tpu.memory_space<vmem>>, vector<128x128xf32>,
    } else {
    }
    %c0 = arith.constant 0 : index
    %c0_1 = arith.constant 0 : index
    %3 = vector.load %arg6[%c0, %c0_1] : memref<128x128xf32, #tpu.memory_space<vmem>>, vector<128x128xf32>
    %c0_2 = arith.constant 0 : index
    %c0_3 = arith.constant 0 : index
    %4 = vector.load %arg3[%c0_2, %c0_3] : memref<128x128xbf16, #tpu.memory_space<vmem>>, vector<128x128xbf16>
    %c0_4 = arith.constant 0 : index
    %c0_5 = arith.constant 0 : index
    %5 = vector.load %arg4[%c0_4, %c0_5] : memref<128x128xbf16, #tpu.memory_space<vmem>>, vector<128x128xbf16>
    %cst = arith.constant dense<0.000000e+00> : vector<128x128xf32>
    %6 = tpu.matmul %4, %5, %cst {dimension_numbers = #tpu.dot_dimension_numbers<[1], [1], [0], [0], [0, 0, 1, 0], [], []>} : vector<128x128xbf16>, vector<128x128xbf16>, vector<128x128xf32> -> vector<128x128xf32>
    %7 = arith.addf %3, %6 : vector<128x128xf32>
    %c0_6 = arith.constant 0 : index
    %c0_7 = arith.constant 0 : index
    %8 = vector.load %arg6[%c0_6, %c0_7] : memref<128x128xf32, #tpu.memory_space<vmem>>, vector<128x128xf32>
    tpu.vector_store %arg6[%c0_6, %c0_7], %7 {strides = array<i32>} : memref<128x128xf32, #tpu.memory_space<vmem>>, vector<128x128xf32>,
    %c0_i32_8 = arith.constant 0 : i32
    %9 = arith.cmpi eq, %arg2, %c0_i32_8 : i32
    %10 = arith.extui %9 : i1 to i32
    %c0_i32_9 = arith.constant 0 : i32
    %11 = arith.cmpi ne, %10, %c0_i32_9 : i32
    scf.if %11 {
      %c0_10 = arith.constant 0 : index
      %c0_11 = arith.constant 0 : index
      %12 = vector.load %arg6[%c0_10, %c0_11] : memref<128x128xf32, #tpu.memory_space<vmem>>, vector<128x128xf32>
      %c0_12 = arith.constant 0 : index
      %c0_13 = arith.constant 0 : index
      %13 = vector.load %arg5[%c0_12, %c0_13] : memref<128x128xf32, #tpu.memory_space<vmem>>, vector<128x128xf32>
      tpu.vector_store %arg5[%c0_12, %c0_13], %12 {strides = array<i32>} : memref<128x128xf32, #tpu.memory_space<vmem>>, vector<128x128xf32>,
    } else {
    }
    return
  }
  func.func @transform_0(%arg0: i32, %arg1: i32, %arg2: i32) -> (i32, i32) {
    %c0_i32 = arith.constant 0 : i32
    return %arg0, %arg2 : i32, i32
  }
  func.func @transform_1(%arg0: i32, %arg1: i32, %arg2: i32) -> (i32, i32) {
    %c0_i32 = arith.constant 0 : i32
    return %arg1, %arg2 : i32, i32
  }
  func.func @transform_2(%arg0: i32, %arg1: i32, %arg2: i32) -> (i32, i32) {
    %c0_i32 = arith.constant 0 : i32
    return %arg0, %arg1 : i32, i32
  }
}

module attributes {stable_mosaic.version = 11 : i64} {
  func.func @kernel(%arg0: i32, %arg1: i32, %arg2: i32, %arg3: memref<128x128xbf16, #tpu.memory_space<vmem>>, %arg4: memref<128x128xbf16, #tpu.memory_space<vmem>>, %arg5: memref<128x128xf32, #tpu.memory_space<vmem>>, %arg6: memref<128x128xf32, #tpu.memory_space<vmem>>) attributes {dimension_semantics = [#tpu.dimension_semantics<parallel>, #tpu.dimension_semantics<parallel>, #tpu.dimension_semantics<arbitrary>], iteration_bounds = array<i64: 1, 1, 1>, scalar_prefetch = 0 : i64, scratch_operands = 1 : i64, tpu.core_type = #tpu.core_type<tc>, window_params = [{transform_indices = @transform_0, window_bounds = array<i64: 128, 128>}, {transform_indices = @transform_1, window_bounds = array<i64: 128, 128>}, {transform_indices = @transform_2, window_bounds = array<i64: 128, 128>}]} {
    %c0_i32 = arith.constant 0 : i32
    %0 = arith.cmpi eq, %arg2, %c0_i32 : i32
    %1 = arith.extui %0 : i1 to i32
    %c0_i32_0 = arith.constant 0 : i32
    %2 = arith.cmpi ne, %1, %c0_i32_0 : i32
    scf.if %2 {
      %cst_10 = arith.constant 0.000000e+00 : f32
      %12 = vector.broadcast %cst_10 : f32 to vector<128x128xf32>
      %c0_11 = arith.constant 0 : index
      %c0_12 = arith.constant 0 : index
      %13 = vector.load %arg6[%c0_11, %c0_12] : memref<128x128xf32, #tpu.memory_space<vmem>>, vector<128x128xf32>
      tpu.vector_store %arg6[%c0_11, %c0_12], %12 {strides = array<i32>} : memref<128x128xf32, #tpu.memory_space<vmem>>, vector<128x128xf32>,
    } else {
    }
    %c0 = arith.constant 0 : index
    %c0_1 = arith.constant 0 : index
    %3 = vector.load %arg6[%c0, %c0_1] : memref<128x128xf32, #tpu.memory_space<vmem>>, vector<128x128xf32>
    %c0_2 = arith.constant 0 : index
    %c0_3 = arith.constant 0 : index
    %4 = vector.load %arg3[%c0_2, %c0_3] : memref<128x128xbf16, #tpu.memory_space<vmem>>, vector<128x128xbf16>
    %c0_4 = arith.constant 0 : index
    %c0_5 = arith.constant 0 : index
    %5 = vector.load %arg4[%c0_4, %c0_5] : memref<128x128xbf16, #tpu.memory_space<vmem>>, vector<128x128xbf16>
    %cst = arith.constant dense<0.000000e+00> : vector<128x128xf32>
    %6 = tpu.matmul %4, %5, %cst {dimension_numbers = #tpu.dot_dimension_numbers<[1], [1], [0], [0], [0, 0, 1, 0], [], []>} : vector<128x128xbf16>, vector<128x128xbf16>, vector<128x128xf32> -> vector<128x128xf32>
    %7 = arith.addf %3, %6 : vector<128x128xf32>
    %c0_6 = arith.constant 0 : index
    %c0_7 = arith.constant 0 : index
    %8 = vector.load %arg6[%c0_6, %c0_7] : memref<128x128xf32, #tpu.memory_space<vmem>>, vector<128x128xf32>
    tpu.vector_store %arg6[%c0_6, %c0_7], %7 {strides = array<i32>} : memref<128x128xf32, #tpu.memory_space<vmem>>, vector<128x128xf32>,
    %c0_i32_8 = arith.constant 0 : i32
    %9 = arith.cmpi eq, %arg2, %c0_i32_8 : i32
    %10 = arith.extui %9 : i1 to i32
    %c0_i32_9 = arith.constant 0 : i32
    %11 = arith.cmpi ne, %10, %c0_i32_9 : i32
    scf.if %11 {
      %c0_10 = arith.constant 0 : index
      %c0_11 = arith.constant 0 : index
      %12 = vector.load %arg6[%c0_10, %c0_11] : memref<128x128xf32, #tpu.memory_space<vmem>>, vector<128x128xf32>
      %c0_12 = arith.constant 0 : index
      %c0_13 = arith.constant 0 : index
      %13 = vector.load %arg5[%c0_12, %c0_13] : memref<128x128xf32, #tpu.memory_space<vmem>>, vector<128x128xf32>
      tpu.vector_store %arg5[%c0_12, %c0_13], %12 {strides = array<i32>} : memref<128x128xf32, #tpu.memory_space<vmem>>, vector<128x128xf32>,
    } else {
    }
    return
  }
  func.func @transform_0(%arg0: i32, %arg1: i32, %arg2: i32) -> (i32, i32) {
    %c0_i32 = arith.constant 0 : i32
    return %arg0, %arg2 : i32, i32
  }
  func.func @transform_1(%arg0: i32, %arg1: i32, %arg2: i32) -> (i32, i32) {
    %c0_i32 = arith.constant 0 : i32
    return %arg1, %arg2 : i32, i32
  }
  func.func @transform_2(%arg0: i32, %arg1: i32, %arg2: i32) -> (i32, i32) {
    %c0_i32 = arith.constant 0 : i32
    return %arg0, %arg1 : i32, i32
  }
}

module attributes {stable_mosaic.version = 11 : i64} {
  func.func @kernel(%arg0: i32, %arg1: i32, %arg2: i32, %arg3: memref<128x128xbf16, #tpu.memory_space<vmem>>, %arg4: memref<128x128xbf16, #tpu.memory_space<vmem>>, %arg5: memref<128x128xf32, #tpu.memory_space<vmem>>, %arg6: memref<128x128xf32, #tpu.memory_space<vmem>>) attributes {dimension_semantics = [#tpu.dimension_semantics<parallel>, #tpu.dimension_semantics<parallel>, #tpu.dimension_semantics<arbitrary>], iteration_bounds = array<i64: 1, 1, 1>, scalar_prefetch = 0 : i64, scratch_operands = 1 : i64, tpu.core_type = #tpu.core_type<tc>, window_params = [{transform_indices = @transform_0, window_bounds = array<i64: 128, 128>}, {transform_indices = @transform_1, window_bounds = array<i64: 128, 128>}, {transform_indices = @transform_2, window_bounds = array<i64: 128, 128>}]} {
    %c0_i32 = arith.constant 0 : i32
    %0 = arith.cmpi eq, %arg2, %c0_i32 : i32
    %1 = arith.extui %0 : i1 to i32
    %c0_i32_0 = arith.constant 0 : i32
    %2 = arith.cmpi ne, %1, %c0_i32_0 : i32
    scf.if %2 {
      %cst_10 = arith.constant 0.000000e+00 : f32
      %12 = vector.broadcast %cst_10 : f32 to vector<128x128xf32>
      %c0_11 = arith.constant 0 : index
      %c0_12 = arith.constant 0 : index
      %13 = vector.load %arg6[%c0_11, %c0_12] : memref<128x128xf32, #tpu.memory_space<vmem>>, vector<128x128xf32>
      tpu.vector_store %arg6[%c0_11, %c0_12], %12 {strides = array<i32>} : memref<128x128xf32, #tpu.memory_space<vmem>>, vector<128x128xf32>,
    } else {
    }
    %c0 = arith.constant 0 : index
    %c0_1 = arith.constant 0 : index
    %3 = vector.load %arg6[%c0, %c0_1] : memref<128x128xf32, #tpu.memory_space<vmem>>, vector<128x128xf32>
    %c0_2 = arith.constant 0 : index
    %c0_3 = arith.constant 0 : index
    %4 = vector.load %arg3[%c0_2, %c0_3] : memref<128x128xbf16, #tpu.memory_space<vmem>>, vector<128x128xbf16>
    %c0_4 = arith.constant 0 : index
    %c0_5 = arith.constant 0 : index
    %5 = vector.load %arg4[%c0_4, %c0_5] : memref<128x128xbf16, #tpu.memory_space<vmem>>, vector<128x128xbf16>
    %cst = arith.constant dense<0.000000e+00> : vector<128x128xf32>
    %6 = tpu.matmul %4, %5, %cst {dimension_numbers = #tpu.dot_dimension_numbers<[1], [1], [0], [0], [0, 0, 1, 0], [], []>} : vector<128x128xbf16>, vector<128x128xbf16>, vector<128x128xf32> -> vector<128x128xf32>
    %7 = arith.addf %3, %6 : vector<128x128xf32>
    %c0_6 = arith.constant 0 : index
    %c0_7 = arith.constant 0 : index
    %8 = vector.load %arg6[%c0_6, %c0_7] : memref<128x128xf32, #tpu.memory_space<vmem>>, vector<128x128xf32>
    tpu.vector_store %arg6[%c0_6, %c0_7], %7 {strides = array<i32>} : memref<128x128xf32, #tpu.memory_space<vmem>>, vector<128x128xf32>,
    %c0_i32_8 = arith.constant 0 : i32
    %9 = arith.cmpi eq, %arg2, %c0_i32_8 : i32
    %10 = arith.extui %9 : i1 to i32
    %c0_i32_9 = arith.constant 0 : i32
    %11 = arith.cmpi ne, %10, %c0_i32_9 : i32
    scf.if %11 {
      %c0_10 = arith.constant 0 : index
      %c0_11 = arith.constant 0 : index
      %12 = vector.load %arg6[%c0_10, %c0_11] : memref<128x128xf32, #tpu.memory_space<vmem>>, vector<128x128xf32>
      %c0_12 = arith.constant 0 : index
      %c0_13 = arith.constant 0 : index
      %13 = vector.load %arg5[%c0_12, %c0_13] : memref<128x128xf32, #tpu.memory_space<vmem>>, vector<128x128xf32>
      tpu.vector_store %arg5[%c0_12, %c0_13], %12 {strides = array<i32>} : memref<128x128xf32, #tpu.memory_space<vmem>>, vector<128x128xf32>,
    } else {
    }
    return
  }
  func.func @transform_0(%arg0: i32, %arg1: i32, %arg2: i32) -> (i32, i32) {
    %c0_i32 = arith.constant 0 : i32
    return %arg0, %arg2 : i32, i32
  }
  func.func @transform_1(%arg0: i32, %arg1: i32, %arg2: i32) -> (i32, i32) {
    %c0_i32 = arith.constant 0 : i32
    return %arg1, %arg2 : i32, i32
  }
  func.func @transform_2(%arg0: i32, %arg1: i32, %arg2: i32) -> (i32, i32) {
    %c0_i32 = arith.constant 0 : i32
    return %arg0, %arg1 : i32, i32
  }
}

module attributes {stable_mosaic.version = 11 : i64} {
  func.func @kernel(%arg0: i32, %arg1: i32, %arg2: i32, %arg3: memref<128x128xbf16, #tpu.memory_space<vmem>>, %arg4: memref<128x128xbf16, #tpu.memory_space<vmem>>, %arg5: memref<128x128xf32, #tpu.memory_space<vmem>>, %arg6: memref<128x128xf32, #tpu.memory_space<vmem>>) attributes {dimension_semantics = [#tpu.dimension_semantics<parallel>, #tpu.dimension_semantics<parallel>, #tpu.dimension_semantics<arbitrary>], iteration_bounds = array<i64: 1, 1, 1>, scalar_prefetch = 0 : i64, scratch_operands = 1 : i64, tpu.core_type = #tpu.core_type<tc>, window_params = [{transform_indices = @transform_0, window_bounds = array<i64: 128, 128>}, {transform_indices = @transform_1, window_bounds = array<i64: 128, 128>}, {transform_indices = @transform_2, window_bounds = array<i64: 128, 128>}]} {
    %c0_i32 = arith.constant 0 : i32
    %0 = arith.cmpi eq, %arg2, %c0_i32 : i32
    %1 = arith.extui %0 : i1 to i32
    %c0_i32_0 = arith.constant 0 : i32
    %2 = arith.cmpi ne, %1, %c0_i32_0 : i32
    scf.if %2 {
      %cst_10 = arith.constant 0.000000e+00 : f32
      %12 = vector.broadcast %cst_10 : f32 to vector<128x128xf32>
      %c0_11 = arith.constant 0 : index
      %c0_12 = arith.constant 0 : index
      %13 = vector.load %arg6[%c0_11, %c0_12] : memref<128x128xf32, #tpu.memory_space<vmem>>, vector<128x128xf32>
      tpu.vector_store %arg6[%c0_11, %c0_12], %12 {strides = array<i32>} : memref<128x128xf32, #tpu.memory_space<vmem>>, vector<128x128xf32>,
    } else {
    }
    %c0 = arith.constant 0 : index
    %c0_1 = arith.constant 0 : index
    %3 = vector.load %arg6[%c0, %c0_1] : memref<128x128xf32, #tpu.memory_space<vmem>>, vector<128x128xf32>
    %c0_2 = arith.constant 0 : index
    %c0_3 = arith.constant 0 : index
    %4 = vector.load %arg3[%c0_2, %c0_3] : memref<128x128xbf16, #tpu.memory_space<vmem>>, vector<128x128xbf16>
    %c0_4 = arith.constant 0 : index
    %c0_5 = arith.constant 0 : index
    %5 = vector.load %arg4[%c0_4, %c0_5] : memref<128x128xbf16, #tpu.memory_space<vmem>>, vector<128x128xbf16>
    %cst = arith.constant dense<0.000000e+00> : vector<128x128xf32>
    %6 = tpu.matmul %4, %5, %cst {dimension_numbers = #tpu.dot_dimension_numbers<[1], [1], [0], [0], [0, 0, 1, 0], [], []>} : vector<128x128xbf16>, vector<128x128xbf16>, vector<128x128xf32> -> vector<128x128xf32>
    %7 = arith.addf %3, %6 : vector<128x128xf32>
    %c0_6 = arith.constant 0 : index
    %c0_7 = arith.constant 0 : index
    %8 = vector.load %arg6[%c0_6, %c0_7] : memref<128x128xf32, #tpu.memory_space<vmem>>, vector<128x128xf32>
    tpu.vector_store %arg6[%c0_6, %c0_7], %7 {strides = array<i32>} : memref<128x128xf32, #tpu.memory_space<vmem>>, vector<128x128xf32>,
    %c0_i32_8 = arith.constant 0 : i32
    %9 = arith.cmpi eq, %arg2, %c0_i32_8 : i32
    %10 = arith.extui %9 : i1 to i32
    %c0_i32_9 = arith.constant 0 : i32
    %11 = arith.cmpi ne, %10, %c0_i32_9 : i32
    scf.if %11 {
      %c0_10 = arith.constant 0 : index
      %c0_11 = arith.constant 0 : index
      %12 = vector.load %arg6[%c0_10, %c0_11] : memref<128x128xf32, #tpu.memory_space<vmem>>, vector<128x128xf32>
      %c0_12 = arith.constant 0 : index
      %c0_13 = arith.constant 0 : index
      %13 = vector.load %arg5[%c0_12, %c0_13] : memref<128x128xf32, #tpu.memory_space<vmem>>, vector<128x128xf32>
      tpu.vector_store %arg5[%c0_12, %c0_13], %12 {strides = array<i32>} : memref<128x128xf32, #tpu.memory_space<vmem>>, vector<128x128xf32>,
    } else {
    }
    return
  }
  func.func @transform_0(%arg0: i32, %arg1: i32, %arg2: i32) -> (i32, i32) {
    %c0_i32 = arith.constant 0 : i32
    return %arg0, %arg2 : i32, i32
  }
  func.func @transform_1(%arg0: i32, %arg1: i32, %arg2: i32) -> (i32, i32) {
    %c0_i32 = arith.constant 0 : i32
    return %arg1, %arg2 : i32, i32
  }
  func.func @transform_2(%arg0: i32, %arg1: i32, %arg2: i32) -> (i32, i32) {
    %c0_i32 = arith.constant 0 : i32
    return %arg0, %arg1 : i32, i32
  }
}

module attributes {stable_mosaic.version = 11 : i64} {
  func.func @_mask_mul_kernel(%arg0: i32, %arg1: memref<8x512xf32, #tpu.memory_space<vmem>>, %arg2: memref<8x512xf32, #tpu.memory_space<vmem>>, %arg3: memref<8x512xf32, #tpu.memory_space<vmem>>) attributes {dimension_semantics = [#tpu.dimension_semantics<parallel>], iteration_bounds = array<i64: 1>, scalar_prefetch = 0 : i64, scratch_operands = 0 : i64, tpu.core_type = #tpu.core_type<tc>, window_params = [{transform_indices = @transform_0, window_bounds = array<i64: 8, 512>}, {transform_indices = @transform_1, window_bounds = array<i64: 8, 512>}, {transform_indices = @transform_2, window_bounds = array<i64: 8, 512>}]} {
    %c0 = arith.constant 0 : index
    %c0_0 = arith.constant 0 : index
    %0 = vector.load %arg1[%c0, %c0_0] : memref<8x512xf32, #tpu.memory_space<vmem>>, vector<8x512xf32>
    %c0_1 = arith.constant 0 : index
    %c0_2 = arith.constant 0 : index
    %1 = vector.load %arg2[%c0_1, %c0_2] : memref<8x512xf32, #tpu.memory_space<vmem>>, vector<8x512xf32>
    %cst = arith.constant 0.000000e+00 : f32
    %2 = vector.broadcast %cst : f32 to vector<8x512xf32>
    %3 = arith.cmpf ogt, %1, %2 : vector<8x512xf32>
    %4 = arith.extui %3 : vector<8x512xi1> to vector<8x512xi32>
    %5 = arith.sitofp %4 : vector<8x512xi32> to vector<8x512xf32>
    %6 = arith.mulf %0, %5 : vector<8x512xf32>
    %c0_3 = arith.constant 0 : index
    %c0_4 = arith.constant 0 : index
    %7 = vector.load %arg3[%c0_3, %c0_4] : memref<8x512xf32, #tpu.memory_space<vmem>>, vector<8x512xf32>
    tpu.vector_store %arg3[%c0_3, %c0_4], %6 {strides = array<i32>} : memref<8x512xf32, #tpu.memory_space<vmem>>, vector<8x512xf32>,
    return
  }
  func.func @transform_0(%arg0: i32) -> (i32, i32) {
    %c0_i32 = arith.constant 0 : i32
    %c0_i32_0 = arith.constant 0 : i32
    return %arg0, %c0_i32 : i32, i32
  }
  func.func @transform_1(%arg0: i32) -> (i32, i32) {
    %c0_i32 = arith.constant 0 : i32
    %c0_i32_0 = arith.constant 0 : i32
    return %arg0, %c0_i32 : i32, i32
  }
  func.func @transform_2(%arg0: i32) -> (i32, i32) {
    %c0_i32 = arith.constant 0 : i32
    %c0_i32_0 = arith.constant 0 : i32
    return %arg0, %c0_i32 : i32, i32
  }
}

</mosaic_0001>

<llo_original>
// kernel: jvp__.9
$region0: #{jvp__.9}
  #allocation0 [shape = 'u32[]', space=smem, size = 0x4, offset = 0x4, fixed_abs, tag = 'smem constant byte address 0x4 - core index']
  #allocation1 [shape = 'u32[144,128]{1,0:T(1,128)}', space=vmem, size = 0x12000, scoped, tag = 'internal scratch']
  #allocation2 [shape = 'f32[128,128]{1,0:T(8,128)}', space=vmem, size = 0x10000, scoped, tag = 'scratch operand']
  %s0 = inlined_call_operand.vmem [shape: bf16[128,128], index: 0, kind: input, shape index: {}]
  %s1 = inlined_call_operand.vmem [shape: bf16[128,128], index: 1, kind: input, shape index: {}]
  %s2 = inlined_call_operand.vmem [shape: f32[128,128], index: 2, kind: output, shape index: {}]
  %s3 = sld [smem:[#allocation0]]
  $region26: #{jvp__.9} parent=0
    _
  %s5 = ssub.s32 1, %s3
  %s6 = scalar_select 0, %s5, %s3
  // Predicated region
  $region2: #{jvp__.9} parent=0 // pred_check
    _
  $region3: #{jvp__.9} parent=0 // pred_check_branch
    %8 = sbr.rel (0) target = $region5
  $region4: #{jvp__.9} parent=0 // pred_region
    _
  $region5: #{jvp__.9} parent=0 // pred_fallthru
    _
  // Predicated region
  $region6: #{jvp__.9} parent=0 // pred_check
    _
  $region7: #{jvp__.9} parent=0 // pred_check_branch
    %10 = sbr.rel (0) target = $region9
  $region8: #{jvp__.9} parent=0 // pred_region
    _
  $region9: #{jvp__.9} parent=0 // pred_fallthru
    _
  %p12 = scmp.eq.s32.totalorder 0, 0
  // Predicated region
  $region10: #{jvp__.9} parent=0 // pred_check
    %p13 = pneg %p12
  $region11: #{jvp__.9} parent=0 // pred_check_branch
    %15 = sbr.rel (%p13) target = $region13
  $region12: #{jvp__.9} parent=0 // pred_region
    %16 = vst [vmem:[#allocation2] sm:$0xff] 0.0
    %17 = vst [vmem:[#allocation2 + $0x8] sm:$0xff] 0.0
    %18 = vst [vmem:[#allocation2 + $0x10] sm:$0xff] 0.0
    %19 = vst [vmem:[#allocation2 + $0x18] sm:$0xff] 0.0
    %20 = vst [vmem:[#allocation2 + $0x20] sm:$0xff] 0.0
    %21 = vst [vmem:[#allocation2 + $0x28] sm:$0xff] 0.0
    %22 = vst [vmem:[#allocation2 + $0x30] sm:$0xff] 0.0
    %23 = vst [vmem:[#allocation2 + $0x38] sm:$0xff] 0.0
    %24 = vst [vmem:[#allocation2 + $0x40] sm:$0xff] 0.0
    %25 = vst [vmem:[#allocation2 + $0x48] sm:$0xff] 0.0
    %26 = vst [vmem:[#allocation2 + $0x50] sm:$0xff] 0.0
    %27 = vst [vmem:[#allocation2 + $0x58] sm:$0xff] 0.0
    %28 = vst [vmem:[#allocation2 + $0x60] sm:$0xff] 0.0
    %29 = vst [vmem:[#allocation2 + $0x68] sm:$0xff] 0.0
    %30 = vst [vmem:[#allocation2 + $0x70] sm:$0xff] 0.0
    %31 = vst [vmem:[#allocation2 + $0x78] sm:$0xff] 0.0
  $region13: #{jvp__.9} parent=0 // pred_fallthru
    _
  %v32 = vld [vmem:[#allocation2] sm:$0xff]
  %v33 = vld [vmem:[#allocation2 + $0x8] sm:$0xff]
  %v34 = vld [vmem:[#allocation2 + $0x10] sm:$0xff]
  %v35 = vld [vmem:[#allocation2 + $0x18] sm:$0xff]
  %v36 = vld [vmem:[#allocation2 + $0x20] sm:$0xff]
  %v37 = vld [vmem:[#allocation2 + $0x28] sm:$0xff]
  %v38 = vld [vmem:[#allocation2 + $0x30] sm:$0xff]
  %v39 = vld [vmem:[#allocation2 + $0x38] sm:$0xff]
  %v40 = vld [vmem:[#allocation2 + $0x40] sm:$0xff]
  %v41 = vld [vmem:[#allocation2 + $0x48] sm:$0xff]
  %v42 = vld [vmem:[#allocation2 + $0x50] sm:$0xff]
  %v43 = vld [vmem:[#allocation2 + $0x58] sm:$0xff]
  %v44 = vld [vmem:[#allocation2 + $0x60] sm:$0xff]
  %v45 = vld [vmem:[#allocation2 + $0x68] sm:$0xff]
  %v46 = vld [vmem:[#allocation2 + $0x70] sm:$0xff]
  %v47 = vld [vmem:[#allocation2 + $0x78] sm:$0xff]
  %v48 = vld [vmem:[%s0] sm:$0xf]
  %v49 = vld [vmem:[%s0 + $0x4] sm:$0xf]
  %v50 = vld [vmem:[%s0 + $0x8] sm:$0xf]
  %v51 = vld [vmem:[%s0 + $0xc] sm:$0xf]
  %v52 = vld [vmem:[%s0 + $0x10] sm:$0xf]
  %v53 = vld [vmem:[%s0 + $0x14] sm:$0xf]
  %v54 = vld [vmem:[%s0 + $0x18] sm:$0xf]
  %v55 = vld [vmem:[%s0 + $0x1c] sm:$0xf]
  %v56 = vld [vmem:[%s0 + $0x20] sm:$0xf]
  %v57 = vld [vmem:[%s0 + $0x24] sm:$0xf]
  %v58 = vld [vmem:[%s0 + $0x28] sm:$0xf]
  %v59 = vld [vmem:[%s0 + $0x2c] sm:$0xf]
  %v60 = vld [vmem:[%s0 + $0x30] sm:$0xf]
  %v61 = vld [vmem:[%s0 + $0x34] sm:$0xf]
  %v62 = vld [vmem:[%s0 + $0x38] sm:$0xf]
  %v63 = vld [vmem:[%s0 + $0x3c] sm:$0xf]
  %v64 = vld [vmem:[%s1] sm:$0xf]
  %v65 = vld [vmem:[%s1 + $0x4] sm:$0xf]
  %v66 = vld [vmem:[%s1 + $0x8] sm:$0xf]
  %v67 = vld [vmem:[%s1 + $0xc] sm:$0xf]
  %v68 = vld [vmem:[%s1 + $0x10] sm:$0xf]
  %v69 = vld [vmem:[%s1 + $0x14] sm:$0xf]
  %v70 = vld [vmem:[%s1 + $0x18] sm:$0xf]
  %v71 = vld [vmem:[%s1 + $0x1c] sm:$0xf]
  %v72 = vld [vmem:[%s1 + $0x20] sm:$0xf]
  %v73 = vld [vmem:[%s1 + $0x24] sm:$0xf]
  %v74 = vld [vmem:[%s1 + $0x28] sm:$0xf]
  %v75 = vld [vmem:[%s1 + $0x2c] sm:$0xf]
  %v76 = vld [vmem:[%s1 + $0x30] sm:$0xf]
  %v77 = vld [vmem:[%s1 + $0x34] sm:$0xf]
  %v78 = vld [vmem:[%s1 + $0x38] sm:$0xf]
  %v79 = vld [vmem:[%s1 + $0x3c] sm:$0xf]
  %v96 = vunpack.c.l.b16 %v48
  %v97 = vunpack.c.l.b16 %v49
  %v98 = vunpack.c.l.b16 %v50
  %v99 = vunpack.c.l.b16 %v51
  %v100 = vunpack.c.l.b16 %v52
  %v101 = vunpack.c.l.b16 %v53
  %v102 = vunpack.c.l.b16 %v54
  %v103 = vunpack.c.l.b16 %v55
  %v104 = vunpack.c.l.b16 %v56
  %v105 = vunpack.c.l.b16 %v57
  %v106 = vunpack.c.l.b16 %v58
  %v107 = vunpack.c.l.b16 %v59
  %v108 = vunpack.c.l.b16 %v60
  %v109 = vunpack.c.l.b16 %v61
  %v110 = vunpack.c.l.b16 %v62
  %v111 = vunpack.c.l.b16 %v63
  %v112 = vpack.c.b16 %v97, %v96
  %v113 = vpack.c.b16 %v99, %v98
  %v114 = vpack.c.b16 %v101, %v100
  %v115 = vpack.c.b16 %v103, %v102
  %v116 = vpack.c.b16 %v105, %v104
  %v117 = vpack.c.b16 %v107, %v106
  %v118 = vpack.c.b16 %v109, %v108
  %v119 = vpack.c.b16 %v111, %v110
  %v144 = vunpack.c.l.b16 %v64
  %v145 = vunpack.c.l.b16 %v65
  %v146 = vunpack.c.l.b16 %v66
  %v147 = vunpack.c.l.b16 %v67
  %v148 = vunpack.c.l.b16 %v68
  %v149 = vunpack.c.l.b16 %v69
  %v150 = vunpack.c.l.b16 %v70
  %v151 = vunpack.c.l.b16 %v71
  %v152 = vunpack.c.l.b16 %v72
  %v153 = vunpack.c.l.b16 %v73
  %v154 = vunpack.c.l.b16 %v74
  %v155 = vunpack.c.l.b16 %v75
  %v156 = vunpack.c.l.b16 %v76
  %v157 = vunpack.c.l.b16 %v77
  %v158 = vunpack.c.l.b16 %v78
  %v159 = vunpack.c.l.b16 %v79
  %v160 = vpack.c.b16 %v145, %v144
  %v161 = vpack.c.b16 %v147, %v146
  %v162 = vpack.c.b16 %v149, %v148
  %v163 = vpack.c.b16 %v151, %v150
  %v164 = vpack.c.b16 %v153, %v152
  %v165 = vpack.c.b16 %v155, %v154
  %v166 = vpack.c.b16 %v157, %v156
  %v167 = vpack.c.b16 %v159, %v158
  %176 = vmatprep.subr.bf16.mxu0 0
  %177 = vmatpush1.bf16.msra.mxu0 %v160
  %178 = vmatprep.subr.bf16.mxu0 0
  %179 = vmatpush1.bf16.msra.mxu0 %v161
  %180 = vmatprep.subr.bf16.mxu0 0
  %181 = vmatpush1.bf16.msra.mxu0 %v162
  %182 = vmatprep.subr.bf16.mxu0 0
  %183 = vmatpush1.bf16.msra.mxu0 %v163
  %184 = vmatprep.subr.bf16.mxu0 0
  %185 = vmatpush1.bf16.msra.mxu0 %v164
  %186 = vmatprep.subr.bf16.mxu0 0
  %187 = vmatpush1.bf16.msra.mxu0 %v165
  %188 = vmatprep.subr.bf16.mxu0 0
  %189 = vmatpush1.bf16.msra.mxu0 %v166
  %190 = vmatprep.subr.bf16.mxu0 0
  %191 = vmatpush1.bf16.msra.mxu0 %v167
  %192 = vmatprep.subr.bf16.mxu0 0
  %193 = vmatpush1.bf16.msra.mxu0 0
  %194 = vmatprep.subr.bf16.mxu0 0
  %195 = vmatpush1.bf16.msra.mxu0 0
  %196 = vmatprep.subr.bf16.mxu0 0
  %197 = vmatpush1.bf16.msra.mxu0 0
  %198 = vmatprep.subr.bf16.mxu0 0
  %199 = vmatpush1.bf16.msra.mxu0 0
  %200 = vmatprep.subr.bf16.mxu0 0
  %201 = vmatpush1.bf16.msra.mxu0 0
  %202 = vmatprep.subr.bf16.mxu0 0
  %203 = vmatpush1.bf16.msra.mxu0 0
  %204 = vmatprep.subr.bf16.mxu0 0
  %205 = vmatpush1.bf16.msra.mxu0 0
  %206 = vmatprep.subr.bf16.mxu0 0
  %207 = vmatpush1.bf16.msra.mxu0 0
  %208 = vmatprep.mubr.bf16.mxu0 0
  %209 = vmatmul.mubr.bf16.gmra.mrb[0].mxu0 %v112
  %v210 = vpop.f32.mrb[0].mxu0
  %v211 = vadd.f32 0.0, %v210
  %v212 = vpop.f32.mrb[0].mxu0
  %v213 = vpop.f32.mrb[0].mxu0
  %v214 = vadd.f32 0.0, %v213
  %v215 = vpop.f32.mrb[0].mxu0
  %216 = vmatprep.mubr.bf16.mxu0 0
  %217 = vmatmul.mubr.bf16.gmra.mrb[0].mxu0 %v113
  %v218 = vpop.f32.mrb[0].mxu0
  %v219 = vadd.f32 0.0, %v218
  %v220 = vpop.f32.mrb[0].mxu0
  %v221 = vpop.f32.mrb[0].mxu0
  %v222 = vadd.f32 0.0, %v221
  %v223 = vpop.f32.mrb[0].mxu0
  %224 = vmatprep.mubr.bf16.mxu0 0
  %225 = vmatmul.mubr.bf16.gmra.mrb[0].mxu0 %v114
  %v226 = vpop.f32.mrb[0].mxu0
  %v227 = vadd.f32 0.0, %v226
  %v228 = vpop.f32.mrb[0].mxu0
  %v229 = vpop.f32.mrb[0].mxu0
  %v230 = vadd.f32 0.0, %v229
  %v231 = vpop.f32.mrb[0].mxu0
  %232 = vmatprep.mubr.bf16.mxu0 0
  %233 = vmatmul.mubr.bf16.gmra.mrb[0].mxu0 %v115
  %v234 = vpop.f32.mrb[0].mxu0
  %v235 = vadd.f32 0.0, %v234
  %v236 = vpop.f32.mrb[0].mxu0
  %v237 = vpop.f32.mrb[0].mxu0
  %v238 = vadd.f32 0.0, %v237
  %v239 = vpop.f32.mrb[0].mxu0
  %240 = vmatprep.mubr.bf16.mxu0 0
  %241 = vmatmul.mubr.bf16.gmra.mrb[0].mxu0 %v116
  %v242 = vpop.f32.mrb[0].mxu0
  %v243 = vadd.f32 0.0, %v242
  %v244 = vpop.f32.mrb[0].mxu0
  %v245 = vpop.f32.mrb[0].mxu0
  %v246 = vadd.f32 0.0, %v245
  %v247 = vpop.f32.mrb[0].mxu0
  %248 = vmatprep.mubr.bf16.mxu0 0
  %249 = vmatmul.mubr.bf16.gmra.mrb[0].mxu0 %v117
  %v250 = vpop.f32.mrb[0].mxu0
  %v251 = vadd.f32 0.0, %v250
  %v252 = vpop.f32.mrb[0].mxu0
  %v253 = vpop.f32.mrb[0].mxu0
  %v254 = vadd.f32 0.0, %v253
  %v255 = vpop.f32.mrb[0].mxu0
  %256 = vmatprep.mubr.bf16.mxu0 0
  %257 = vmatmul.mubr.bf16.gmra.mrb[0].mxu0 %v118
  %v258 = vpop.f32.mrb[0].mxu0
  %v259 = vadd.f32 0.0, %v258
  %v260 = vpop.f32.mrb[0].mxu0
  %v261 = vpop.f32.mrb[0].mxu0
  %v262 = vadd.f32 0.0, %v261
  %v263 = vpop.f32.mrb[0].mxu0
  %264 = vmatprep.mubr.bf16.mxu0 0
  %265 = vmatmul.mubr.bf16.gmra.mrb[0].mxu0 %v119
  %v266 = vpop.f32.mrb[0].mxu0
  %v267 = vadd.f32 0.0, %v266
  %v268 = vpop.f32.mrb[0].mxu0
  %v269 = vpop.f32.mrb[0].mxu0
  %v270 = vadd.f32 0.0, %v269
  %v271 = vpop.f32.mrb[0].mxu0
  %272 = vdwg.mxu0
  %v273 = vadd.f32 %v32, %v211
  %v274 = vadd.f32 %v33, %v214
  %v275 = vadd.f32 %v34, %v219
  %v276 = vadd.f32 %v35, %v222
  %v277 = vadd.f32 %v36, %v227
  %v278 = vadd.f32 %v37, %v230
  %v279 = vadd.f32 %v38, %v235
  %v280 = vadd.f32 %v39, %v238
  %v281 = vadd.f32 %v40, %v243
  %v282 = vadd.f32 %v41, %v246
  %v283 = vadd.f32 %v42, %v251
  %v284 = vadd.f32 %v43, %v254
  %v285 = vadd.f32 %v44, %v259
  %v286 = vadd.f32 %v45, %v262
  %v287 = vadd.f32 %v46, %v267
  %v288 = vadd.f32 %v47, %v270
  %289 = vst [vmem:[#allocation2] sm:$0xff] %v273
  %290 = vst [vmem:[#allocation2 + $0x8] sm:$0xff] %v274
  %291 = vst [vmem:[#allocation2 + $0x10] sm:$0xff] %v275
  %292 = vst [vmem:[#allocation2 + $0x18] sm:$0xff] %v276
  %293 = vst [vmem:[#allocation2 + $0x20] sm:$0xff] %v277
  %294 = vst [vmem:[#allocation2 + $0x28] sm:$0xff] %v278
  %295 = vst [vmem:[#allocation2 + $0x30] sm:$0xff] %v279
  %296 = vst [vmem:[#allocation2 + $0x38] sm:$0xff] %v280
  %297 = vst [vmem:[#allocation2 + $0x40] sm:$0xff] %v281
  %298 = vst [vmem:[#allocation2 + $0x48] sm:$0xff] %v282
  %299 = vst [vmem:[#allocation2 + $0x50] sm:$0xff] %v283
  %300 = vst [vmem:[#allocation2 + $0x58] sm:$0xff] %v284
  %301 = vst [vmem:[#allocation2 + $0x60] sm:$0xff] %v285
  %302 = vst [vmem:[#allocation2 + $0x68] sm:$0xff] %v286
  %303 = vst [vmem:[#allocation2 + $0x70] sm:$0xff] %v287
  %304 = vst [vmem:[#allocation2 + $0x78] sm:$0xff] %v288
  // Predicated region
  $region14: #{jvp__.9} parent=0 // pred_check
    %p305 = pneg %p12
  $region15: #{jvp__.9} parent=0 // pred_check_branch
    %307 = sbr.rel (%p305) target = $region17
  $region16: #{jvp__.9} parent=0 // pred_region
    %v308 = vld [vmem:[#allocation2] sm:$0xff]
    %v309 = vld [vmem:[#allocation2 + $0x8] sm:$0xff]
    %v310 = vld [vmem:[#allocation2 + $0x10] sm:$0xff]
    %v311 = vld [vmem:[#allocation2 + $0x18] sm:$0xff]
    %v312 = vld [vmem:[#allocation2 + $0x20] sm:$0xff]
    %v313 = vld [vmem:[#allocation2 + $0x28] sm:$0xff]
    %v314 = vld [vmem:[#allocation2 + $0x30] sm:$0xff]
    %v315 = vld [vmem:[#allocation2 + $0x38] sm:$0xff]
    %v316 = vld [vmem:[#allocation2 + $0x40] sm:$0xff]
    %v317 = vld [vmem:[#allocation2 + $0x48] sm:$0xff]
    %v318 = vld [vmem:[#allocation2 + $0x50] sm:$0xff]
    %v319 = vld [vmem:[#allocation2 + $0x58] sm:$0xff]
    %v320 = vld [vmem:[#allocation2 + $0x60] sm:$0xff]
    %v321 = vld [vmem:[#allocation2 + $0x68] sm:$0xff]
    %v322 = vld [vmem:[#allocation2 + $0x70] sm:$0xff]
    %v323 = vld [vmem:[#allocation2 + $0x78] sm:$0xff]
    %324 = vst [vmem:[%s2] sm:$0xff] %v308
    %325 = vst [vmem:[%s2 + $0x8] sm:$0xff] %v309
    %326 = vst [vmem:[%s2 + $0x10] sm:$0xff] %v310
    %327 = vst [vmem:[%s2 + $0x18] sm:$0xff] %v311
    %328 = vst [vmem:[%s2 + $0x20] sm:$0xff] %v312
    %329 = vst [vmem:[%s2 + $0x28] sm:$0xff] %v313
    %330 = vst [vmem:[%s2 + $0x30] sm:$0xff] %v314
    %331 = vst [vmem:[%s2 + $0x38] sm:$0xff] %v315
    %332 = vst [vmem:[%s2 + $0x40] sm:$0xff] %v316
    %333 = vst [vmem:[%s2 + $0x48] sm:$0xff] %v317
    %334 = vst [vmem:[%s2 + $0x50] sm:$0xff] %v318
    %335 = vst [vmem:[%s2 + $0x58] sm:$0xff] %v319
    %336 = vst [vmem:[%s2 + $0x60] sm:$0xff] %v320
    %337 = vst [vmem:[%s2 + $0x68] sm:$0xff] %v321
    %338 = vst [vmem:[%s2 + $0x70] sm:$0xff] %v322
    %339 = vst [vmem:[%s2 + $0x78] sm:$0xff] %v323
  $region17: #{jvp__.9} parent=0 // pred_fallthru
    _
  // Predicated region
  $region18: #{jvp__.9} parent=0 // pred_check
    _
  $region19: #{jvp__.9} parent=0 // pred_check_branch
    %341 = sbr.rel (0) target = $region21
  $region20: #{jvp__.9} parent=0 // pred_region
    _
  $region21: #{jvp__.9} parent=0 // pred_fallthru
    _
  // Predicated region
  $region22: #{jvp__.9} parent=0 // pred_check
    _
  $region23: #{jvp__.9} parent=0 // pred_check_branch
    %343 = sbr.rel (0) target = $region25
  $region24: #{jvp__.9} parent=0 // pred_region
    _
  $region25: #{jvp__.9} parent=0 // pred_fallthru
    _

// kernel: jvp__.11
$region0: #{jvp__.11}
  #allocation0 [shape = 'u32[]', space=smem, size = 0x4, offset = 0x4, fixed_abs, tag = 'smem constant byte address 0x4 - core index']
  #allocation1 [shape = 'u32[144,128]{1,0:T(1,128)}', space=vmem, size = 0x12000, scoped, tag = 'internal scratch']
  #allocation2 [shape = 'f32[128,128]{1,0:T(8,128)}', space=vmem, size = 0x10000, scoped, tag = 'scratch operand']
  %s0 = inlined_call_operand.vmem [shape: bf16[128,384], index: 0, kind: input, shape index: {}]
  %s1 = inlined_call_operand.vmem [shape: bf16[384,128], index: 1, kind: input, shape index: {}]
  %s2 = inlined_call_operand.vmem [shape: f32[128,128], index: 2, kind: output, shape index: {}]
  %s3 = sld [smem:[#allocation0]]
  $region26: #{jvp__.11} parent=0
    _
  %s5 = ssub.s32 1, %s3
  %s6 = scalar_select 0, %s5, %s3
  // Predicated region
  $region2: #{jvp__.11} parent=0 // pred_check
    _
  $region3: #{jvp__.11} parent=0 // pred_check_branch
    %8 = sbr.rel (0) target = $region5
  $region4: #{jvp__.11} parent=0 // pred_region
    _
  $region5: #{jvp__.11} parent=0 // pred_fallthru
    _
  // Predicated region
  $region6: #{jvp__.11} parent=0 // pred_check
    _
  $region7: #{jvp__.11} parent=0 // pred_check_branch
    %10 = sbr.rel (0) target = $region9
  $region8: #{jvp__.11} parent=0 // pred_region
    _
  $region9: #{jvp__.11} parent=0 // pred_fallthru
    _
  %p12 = scmp.eq.s32.totalorder 0, 0
  // Predicated region
  $region10: #{jvp__.11} parent=0 // pred_check
    %p13 = pneg %p12
  $region11: #{jvp__.11} parent=0 // pred_check_branch
    %15 = sbr.rel (%p13) target = $region13
  $region12: #{jvp__.11} parent=0 // pred_region
    %16 = vst [vmem:[#allocation2] sm:$0xff] 0.0
    %17 = vst [vmem:[#allocation2 + $0x8] sm:$0xff] 0.0
    %18 = vst [vmem:[#allocation2 + $0x10] sm:$0xff] 0.0
    %19 = vst [vmem:[#allocation2 + $0x18] sm:$0xff] 0.0
    %20 = vst [vmem:[#allocation2 + $0x20] sm:$0xff] 0.0
    %21 = vst [vmem:[#allocation2 + $0x28] sm:$0xff] 0.0
    %22 = vst [vmem:[#allocation2 + $0x30] sm:$0xff] 0.0
    %23 = vst [vmem:[#allocation2 + $0x38] sm:$0xff] 0.0
    %24 = vst [vmem:[#allocation2 + $0x40] sm:$0xff] 0.0
    %25 = vst [vmem:[#allocation2 + $0x48] sm:$0xff] 0.0
    %26 = vst [vmem:[#allocation2 + $0x50] sm:$0xff] 0.0
    %27 = vst [vmem:[#allocation2 + $0x58] sm:$0xff] 0.0
    %28 = vst [vmem:[#allocation2 + $0x60] sm:$0xff] 0.0
    %29 = vst [vmem:[#allocation2 + $0x68] sm:$0xff] 0.0
    %30 = vst [vmem:[#allocation2 + $0x70] sm:$0xff] 0.0
    %31 = vst [vmem:[#allocation2 + $0x78] sm:$0xff] 0.0
  $region13: #{jvp__.11} parent=0 // pred_fallthru
    _
  %v32 = vld [vmem:[#allocation2] sm:$0xff]
  %v33 = vld [vmem:[#allocation2 + $0x8] sm:$0xff]
  %v34 = vld [vmem:[#allocation2 + $0x10] sm:$0xff]
  %v35 = vld [vmem:[#allocation2 + $0x18] sm:$0xff]
  %v36 = vld [vmem:[#allocation2 + $0x20] sm:$0xff]
  %v37 = vld [vmem:[#allocation2 + $0x28] sm:$0xff]
  %v38 = vld [vmem:[#allocation2 + $0x30] sm:$0xff]
  %v39 = vld [vmem:[#allocation2 + $0x38] sm:$0xff]
  %v40 = vld [vmem:[#allocation2 + $0x40] sm:$0xff]
  %v41 = vld [vmem:[#allocation2 + $0x48] sm:$0xff]
  %v42 = vld [vmem:[#allocation2 + $0x50] sm:$0xff]
  %v43 = vld [vmem:[#allocation2 + $0x58] sm:$0xff]
  %v44 = vld [vmem:[#allocation2 + $0x60] sm:$0xff]
  %v45 = vld [vmem:[#allocation2 + $0x68] sm:$0xff]
  %v46 = vld [vmem:[#allocation2 + $0x70] sm:$0xff]
  %v47 = vld [vmem:[#allocation2 + $0x78] sm:$0xff]
  %v48 = vld [vmem:[%s0] sm:$0xff]
  %v49 = vld [vmem:[%s0 + $0x8] sm:$0xf]
  %v50 = vld [vmem:[%s0 + $0xc] sm:$0xff]
  %v51 = vld [vmem:[%s0 + $0x14] sm:$0xf]
  %v52 = vld [vmem:[%s0 + $0x18] sm:$0xff]
  %v53 = vld [vmem:[%s0 + $0x20] sm:$0xf]
  %v54 = vld [vmem:[%s0 + $0x24] sm:$0xff]
  %v55 = vld [vmem:[%s0 + $0x2c] sm:$0xf]
  %v56 = vld [vmem:[%s0 + $0x30] sm:$0xff]
  %v57 = vld [vmem:[%s0 + $0x38] sm:$0xf]
  %v58 = vld [vmem:[%s0 + $0x3c] sm:$0xff]
  %v59 = vld [vmem:[%s0 + $0x44] sm:$0xf]
  %v60 = vld [vmem:[%s0 + $0x48] sm:$0xff]
  %v61 = vld [vmem:[%s0 + $0x50] sm:$0xf]
  %v62 = vld [vmem:[%s0 + $0x54] sm:$0xff]
  %v63 = vld [vmem:[%s0 + $0x5c] sm:$0xf]
  %v64 = vld [vmem:[%s0 + $0x60] sm:$0xff]
  %v65 = vld [vmem:[%s0 + $0x68] sm:$0xf]
  %v66 = vld [vmem:[%s0 + $0x6c] sm:$0xff]
  %v67 = vld [vmem:[%s0 + $0x74] sm:$0xf]
  %v68 = vld [vmem:[%s0 + $0x78] sm:$0xff]
  %v69 = vld [vmem:[%s0 + $0x80] sm:$0xf]
  %v70 = vld [vmem:[%s0 + $0x84] sm:$0xff]
  %v71 = vld [vmem:[%s0 + $0x8c] sm:$0xf]
  %v72 = vld [vmem:[%s0 + $0x90] sm:$0xff]
  %v73 = vld [vmem:[%s0 + $0x98] sm:$0xf]
  %v74 = vld [vmem:[%s0 + $0x9c] sm:$0xff]
  %v75 = vld [vmem:[%s0 + $0xa4] sm:$0xf]
  %v76 = vld [vmem:[%s0 + $0xa8] sm:$0xff]
  %v77 = vld [vmem:[%s0 + $0xb0] sm:$0xf]
  %v78 = vld [vmem:[%s0 + $0xb4] sm:$0xff]
  %v79 = vld [vmem:[%s0 + $0xbc] sm:$0xf]
  %v80 = vld [vmem:[%s1] sm:$0xf]
  %v81 = vld [vmem:[%s1 + $0x4] sm:$0xf]
  %v82 = vld [vmem:[%s1 + $0x8] sm:$0xf]
  %v83 = vld [vmem:[%s1 + $0xc] sm:$0xf]
  %v84 = vld [vmem:[%s1 + $0x10] sm:$0xf]
  %v85 = vld [vmem:[%s1 + $0x14] sm:$0xf]
  %v86 = vld [vmem:[%s1 + $0x18] sm:$0xf]
  %v87 = vld [vmem:[%s1 + $0x1c] sm:$0xf]
  %v88 = vld [vmem:[%s1 + $0x20] sm:$0xf]
  %v89 = vld [vmem:[%s1 + $0x24] sm:$0xf]
  %v90 = vld [vmem:[%s1 + $0x28] sm:$0xf]
  %v91 = vld [vmem:[%s1 + $0x2c] sm:$0xf]
  %v92 = vld [vmem:[%s1 + $0x30] sm:$0xf]
  %v93 = vld [vmem:[%s1 + $0x34] sm:$0xf]
  %v94 = vld [vmem:[%s1 + $0x38] sm:$0xf]
  %v95 = vld [vmem:[%s1 + $0x3c] sm:$0xf]
  %v96 = vld [vmem:[%s1 + $0x40] sm:$0xf]
  %v97 = vld [vmem:[%s1 + $0x44] sm:$0xf]
  %v98 = vld [vmem:[%s1 + $0x48] sm:$0xf]
  %v99 = vld [vmem:[%s1 + $0x4c] sm:$0xf]
  %v100 = vld [vmem:[%s1 + $0x50] sm:$0xf]
  %v101 = vld [vmem:[%s1 + $0x54] sm:$0xf]
  %v102 = vld [vmem:[%s1 + $0x58] sm:$0xf]
  %v103 = vld [vmem:[%s1 + $0x5c] sm:$0xf]
  %v104 = vld [vmem:[%s1 + $0x60] sm:$0xf]
  %v105 = vld [vmem:[%s1 + $0x64] sm:$0xf]
  %v106 = vld [vmem:[%s1 + $0x68] sm:$0xf]
  %v107 = vld [vmem:[%s1 + $0x6c] sm:$0xf]
  %v108 = vld [vmem:[%s1 + $0x70] sm:$0xf]
  %v109 = vld [vmem:[%s1 + $0x74] sm:$0xf]
  %v110 = vld [vmem:[%s1 + $0x78] sm:$0xf]
  %v111 = vld [vmem:[%s1 + $0x7c] sm:$0xf]
  %v112 = vld [vmem:[%s1 + $0x80] sm:$0xf]
  %v113 = vld [vmem:[%s1 + $0x84] sm:$0xf]
  %v114 = vld [vmem:[%s1 + $0x88] sm:$0xf]
  %v115 = vld [vmem:[%s1 + $0x8c] sm:$0xf]
  %v116 = vld [vmem:[%s1 + $0x90] sm:$0xf]
  %v117 = vld [vmem:[%s1 + $0x94] sm:$0xf]
  %v118 = vld [vmem:[%s1 + $0x98] sm:$0xf]
  %v119 = vld [vmem:[%s1 + $0x9c] sm:$0xf]
  %v120 = vld [vmem:[%s1 + $0xa0] sm:$0xf]
  %v121 = vld [vmem:[%s1 + $0xa4] sm:$0xf]
  %v122 = vld [vmem:[%s1 + $0xa8] sm:$0xf]
  %v123 = vld [vmem:[%s1 + $0xac] sm:$0xf]
  %v124 = vld [vmem:[%s1 + $0xb0] sm:$0xf]
  %v125 = vld [vmem:[%s1 + $0xb4] sm:$0xf]
  %v126 = vld [vmem:[%s1 + $0xb8] sm:$0xf]
  %v127 = vld [vmem:[%s1 + $0xbc] sm:$0xf]
  %v160 = vunpack.c.l.b16 %v48
  %v161 = vunpack.c.h.b16 %v48
  %v162 = vunpack.c.l.b16 %v49
  %v163 = vunpack.c.l.b16 %v50
  %v164 = vunpack.c.h.b16 %v50
  %v165 = vunpack.c.l.b16 %v51
  %v166 = vunpack.c.l.b16 %v52
  %v167 = vunpack.c.h.b16 %v52
  %v168 = vunpack.c.l.b16 %v53
  %v169 = vunpack.c.l.b16 %v54
  %v170 = vunpack.c.h.b16 %v54
  %v171 = vunpack.c.l.b16 %v55
  %v172 = vunpack.c.l.b16 %v56
  %v173 = vunpack.c.h.b16 %v56
  %v174 = vunpack.c.l.b16 %v57
  %v175 = vunpack.c.l.b16 %v58
  %v176 = vunpack.c.h.b16 %v58
  %v177 = vunpack.c.l.b16 %v59
  %v178 = vunpack.c.l.b16 %v60
  %v179 = vunpack.c.h.b16 %v60
  %v180 = vunpack.c.l.b16 %v61
  %v181 = vunpack.c.l.b16 %v62
  %v182 = vunpack.c.h.b16 %v62
  %v183 = vunpack.c.l.b16 %v63
  %v184 = vunpack.c.l.b16 %v64
  %v185 = vunpack.c.h.b16 %v64
  %v186 = vunpack.c.l.b16 %v65
  %v187 = vunpack.c.l.b16 %v66
  %v188 = vunpack.c.h.b16 %v66
  %v189 = vunpack.c.l.b16 %v67
  %v190 = vunpack.c.l.b16 %v68
  %v191 = vunpack.c.h.b16 %v68
  %v192 = vunpack.c.l.b16 %v69
  %v193 = vunpack.c.l.b16 %v70
  %v194 = vunpack.c.h.b16 %v70
  %v195 = vunpack.c.l.b16 %v71
  %v196 = vunpack.c.l.b16 %v72
  %v197 = vunpack.c.h.b16 %v72
  %v198 = vunpack.c.l.b16 %v73
  %v199 = vunpack.c.l.b16 %v74
  %v200 = vunpack.c.h.b16 %v74
  %v201 = vunpack.c.l.b16 %v75
  %v202 = vunpack.c.l.b16 %v76
  %v203 = vunpack.c.h.b16 %v76
  %v204 = vunpack.c.l.b16 %v77
  %v205 = vunpack.c.l.b16 %v78
  %v206 = vunpack.c.h.b16 %v78
  %v207 = vunpack.c.l.b16 %v79
  %v208 = vpack.c.b16 %v163, %v160
  %v209 = vpack.c.b16 %v164, %v161
  %v210 = vpack.c.b16 %v165, %v162
  %v211 = vpack.c.b16 %v169, %v166
  %v212 = vpack.c.b16 %v170, %v167
  %v213 = vpack.c.b16 %v171, %v168
  %v214 = vpack.c.b16 %v175, %v172
  %v215 = vpack.c.b16 %v176, %v173
  %v216 = vpack.c.b16 %v177, %v174
  %v217 = vpack.c.b16 %v181, %v178
  %v218 = vpack.c.b16 %v182, %v179
  %v219 = vpack.c.b16 %v183, %v180
  %v220 = vpack.c.b16 %v187, %v184
  %v221 = vpack.c.b16 %v188, %v185
  %v222 = vpack.c.b16 %v189, %v186
  %v223 = vpack.c.b16 %v193, %v190
  %v224 = vpack.c.b16 %v194, %v191
  %v225 = vpack.c.b16 %v195, %v192
  %v226 = vpack.c.b16 %v199, %v196
  %v227 = vpack.c.b16 %v200, %v197
  %v228 = vpack.c.b16 %v201, %v198
  %v229 = vpack.c.b16 %v205, %v202
  %v230 = vpack.c.b16 %v206, %v203
  %v231 = vpack.c.b16 %v207, %v204
  %v304 = vunpack.c.l.b16 %v80
  %v305 = vunpack.c.l.b16 %v81
  %v306 = vunpack.c.l.b16 %v82
  %v307 = vunpack.c.l.b16 %v83
  %v308 = vunpack.c.l.b16 %v84
  %v309 = vunpack.c.l.b16 %v85
  %v310 = vunpack.c.l.b16 %v86
  %v311 = vunpack.c.l.b16 %v87
  %v312 = vunpack.c.l.b16 %v88
  %v313 = vunpack.c.l.b16 %v89
  %v314 = vunpack.c.l.b16 %v90
  %v315 = vunpack.c.l.b16 %v91
  %v316 = vunpack.c.l.b16 %v92
  %v317 = vunpack.c.l.b16 %v93
  %v318 = vunpack.c.l.b16 %v94
  %v319 = vunpack.c.l.b16 %v95
  %v320 = vunpack.c.l.b16 %v96
  %v321 = vunpack.c.l.b16 %v97
  %v322 = vunpack.c.l.b16 %v98
  %v323 = vunpack.c.l.b16 %v99
  %v324 = vunpack.c.l.b16 %v100
  %v325 = vunpack.c.l.b16 %v101
  %v326 = vunpack.c.l.b16 %v102
  %v327 = vunpack.c.l.b16 %v103
  %v328 = vunpack.c.l.b16 %v104
  %v329 = vunpack.c.l.b16 %v105
  %v330 = vunpack.c.l.b16 %v106
  %v331 = vunpack.c.l.b16 %v107
  %v332 = vunpack.c.l.b16 %v108
  %v333 = vunpack.c.l.b16 %v109
  %v334 = vunpack.c.l.b16 %v110
  %v335 = vunpack.c.l.b16 %v111
  %v336 = vunpack.c.l.b16 %v112
  %v337 = vunpack.c.l.b16 %v113
  %v338 = vunpack.c.l.b16 %v114
  %v339 = vunpack.c.l.b16 %v115
  %v340 = vunpack.c.l.b16 %v116
  %v341 = vunpack.c.l.b16 %v117
  %v342 = vunpack.c.l.b16 %v118
  %v343 = vunpack.c.l.b16 %v119
  %v344 = vunpack.c.l.b16 %v120
  %v345 = vunpack.c.l.b16 %v121
  %v346 = vunpack.c.l.b16 %v122
  %v347 = vunpack.c.l.b16 %v123
  %v348 = vunpack.c.l.b16 %v124
  %v349 = vunpack.c.l.b16 %v125
  %v350 = vunpack.c.l.b16 %v126
  %v351 = vunpack.c.l.b16 %v127
  %v352 = vpack.c.b16 %v305, %v304
  %v353 = vpack.c.b16 %v307, %v306
  %v354 = vpack.c.b16 %v309, %v308
  %v355 = vpack.c.b16 %v311, %v310
  %v356 = vpack.c.b16 %v313, %v312
  %v357 = vpack.c.b16 %v315, %v314
  %v358 = vpack.c.b16 %v317, %v316
  %v359 = vpack.c.b16 %v319, %v318
  %v360 = vpack.c.b16 %v321, %v320
  %v361 = vpack.c.b16 %v323, %v322
  %v362 = vpack.c.b16 %v325, %v324
  %v363 = vpack.c.b16 %v327, %v326
  %v364 = vpack.c.b16 %v329, %v328
  %v365 = vpack.c.b16 %v331, %v330
  %v366 = vpack.c.b16 %v333, %v332
  %v367 = vpack.c.b16 %v335, %v334
  %v368 = vpack.c.b16 %v337, %v336
  %v369 = vpack.c.b16 %v339, %v338
  %v370 = vpack.c.b16 %v341, %v340
  %v371 = vpack.c.b16 %v343, %v342
  %v372 = vpack.c.b16 %v345, %v344
  %v373 = vpack.c.b16 %v347, %v346
  %v374 = vpack.c.b16 %v349, %v348
  %v375 = vpack.c.b16 %v351, %v350
  %400 = vmatprep.subr.bf16.mxu0 0
  %401 = vmatpush1.bf16.msra.mxu0 %v352
  %402 = vmatprep.subr.bf16.mxu0 0
  %403 = vmatpush1.bf16.msra.mxu0 %v353
  %404 = vmatprep.subr.bf16.mxu0 0
  %405 = vmatpush1.bf16.msra.mxu0 %v354
  %406 = vmatprep.subr.bf16.mxu0 0
  %407 = vmatpush1.bf16.msra.mxu0 %v355
  %408 = vmatprep.subr.bf16.mxu0 0
  %409 = vmatpush1.bf16.msra.mxu0 %v356
  %410 = vmatprep.subr.bf16.mxu0 0
  %411 = vmatpush1.bf16.msra.mxu0 %v357
  %412 = vmatprep.subr.bf16.mxu0 0
  %413 = vmatpush1.bf16.msra.mxu0 %v358
  %414 = vmatprep.subr.bf16.mxu0 0
  %415 = vmatpush1.bf16.msra.mxu0 %v359
  %416 = vmatprep.subr.bf16.mxu0 0
  %417 = vmatpush1.bf16.msra.mxu0 %v360
  %418 = vmatprep.subr.bf16.mxu0 0
  %419 = vmatpush1.bf16.msra.mxu0 %v361
  %420 = vmatprep.subr.bf16.mxu0 0
  %421 = vmatpush1.bf16.msra.mxu0 %v362
  %422 = vmatprep.subr.bf16.mxu0 0
  %423 = vmatpush1.bf16.msra.mxu0 %v363
  %424 = vmatprep.subr.bf16.mxu0 0
  %425 = vmatpush1.bf16.msra.mxu0 %v364
  %426 = vmatprep.subr.bf16.mxu0 0
  %427 = vmatpush1.bf16.msra.mxu0 %v365
  %428 = vmatprep.subr.bf16.mxu0 0
  %429 = vmatpush1.bf16.msra.mxu0 %v366
  %430 = vmatprep.subr.bf16.mxu0 0
  %431 = vmatpush1.bf16.msra.mxu0 %v367
  %432 = vmatprep.mubr.bf16.mxu0 %v209
  %433 = vmatmul.mubr.bf16.gmra.mrb[0].mxu0 %v208
  %v434 = vpop.f32.mrb[0].mxu0
  %v435 = vadd.f32 0.0, %v434
  %v436 = vpop.f32.mrb[0].mxu0
  %v437 = vpop.f32.mrb[0].mxu0
  %v438 = vadd.f32 0.0, %v437
  %v439 = vpop.f32.mrb[0].mxu0
  %440 = vmatprep.mubr.bf16.mxu0 %v212
  %441 = vmatmul.mubr.bf16.gmra.mrb[0].mxu0 %v211
  %v442 = vpop.f32.mrb[0].mxu0
  %v443 = vadd.f32 0.0, %v442
  %v444 = vpop.f32.mrb[0].mxu0
  %v445 = vpop.f32.mrb[0].mxu0
  %v446 = vadd.f32 0.0, %v445
  %v447 = vpop.f32.mrb[0].mxu0
  %448 = vmatprep.mubr.bf16.mxu0 %v215
  %449 = vmatmul.mubr.bf16.gmra.mrb[0].mxu0 %v214
  %v450 = vpop.f32.mrb[0].mxu0
  %v451 = vadd.f32 0.0, %v450
  %v452 = vpop.f32.mrb[0].mxu0
  %v453 = vpop.f32.mrb[0].mxu0
  %v454 = vadd.f32 0.0, %v453
  %v455 = vpop.f32.mrb[0].mxu0
  %456 = vmatprep.mubr.bf16.mxu0 %v218
  %457 = vmatmul.mubr.bf16.gmra.mrb[0].mxu0 %v217
  %v458 = vpop.f32.mrb[0].mxu0
  %v459 = vadd.f32 0.0, %v458
  %v460 = vpop.f32.mrb[0].mxu0
  %v461 = vpop.f32.mrb[0].mxu0
  %v462 = vadd.f32 0.0, %v461
  %v463 = vpop.f32.mrb[0].mxu0
  %464 = vmatprep.mubr.bf16.mxu0 %v221
  %465 = vmatmul.mubr.bf16.gmra.mrb[0].mxu0 %v220
  %v466 = vpop.f32.mrb[0].mxu0
  %v467 = vadd.f32 0.0, %v466
  %v468 = vpop.f32.mrb[0].mxu0
  %v469 = vpop.f32.mrb[0].mxu0
  %v470 = vadd.f32 0.0, %v469
  %v471 = vpop.f32.mrb[0].mxu0
  %472 = vmatprep.mubr.bf16.mxu0 %v224
  %473 = vmatmul.mubr.bf16.gmra.mrb[0].mxu0 %v223
  %v474 = vpop.f32.mrb[0].mxu0
  %v475 = vadd.f32 0.0, %v474
  %v476 = vpop.f32.mrb[0].mxu0
  %v477 = vpop.f32.mrb[0].mxu0
  %v478 = vadd.f32 0.0, %v477
  %v479 = vpop.f32.mrb[0].mxu0
  %480 = vmatprep.mubr.bf16.mxu0 %v227
  %481 = vmatmul.mubr.bf16.gmra.mrb[0].mxu0 %v226
  %v482 = vpop.f32.mrb[0].mxu0
  %v483 = vadd.f32 0.0, %v482
  %v484 = vpop.f32.mrb[0].mxu0
  %v485 = vpop.f32.mrb[0].mxu0
  %v486 = vadd.f32 0.0, %v485
  %v487 = vpop.f32.mrb[0].mxu0
  %488 = vmatprep.mubr.bf16.mxu0 %v230
  %489 = vmatmul.mubr.bf16.gmra.mrb[0].mxu0 %v229
  %v490 = vpop.f32.mrb[0].mxu0
  %v491 = vadd.f32 0.0, %v490
  %v492 = vpop.f32.mrb[0].mxu0
  %v493 = vpop.f32.mrb[0].mxu0
  %v494 = vadd.f32 0.0, %v493
  %v495 = vpop.f32.mrb[0].mxu0
  %496 = vdwg.mxu0
  %497 = vmatprep.subr.bf16.mxu0 0
  %498 = vmatpush1.bf16.msra.mxu0 %v368
  %499 = vmatprep.subr.bf16.mxu0 0
  %500 = vmatpush1.bf16.msra.mxu0 %v369
  %501 = vmatprep.subr.bf16.mxu0 0
  %502 = vmatpush1.bf16.msra.mxu0 %v370
  %503 = vmatprep.subr.bf16.mxu0 0
  %504 = vmatpush1.bf16.msra.mxu0 %v371
  %505 = vmatprep.subr.bf16.mxu0 0
  %506 = vmatpush1.bf16.msra.mxu0 %v372
  %507 = vmatprep.subr.bf16.mxu0 0
  %508 = vmatpush1.bf16.msra.mxu0 %v373
  %509 = vmatprep.subr.bf16.mxu0 0
  %510 = vmatpush1.bf16.msra.mxu0 %v374
  %511 = vmatprep.subr.bf16.mxu0 0
  %512 = vmatpush1.bf16.msra.mxu0 %v375
  %513 = vmatprep.subr.bf16.mxu0 0
  %514 = vmatpush1.bf16.msra.mxu0 0
  %515 = vmatprep.subr.bf16.mxu0 0
  %516 = vmatpush1.bf16.msra.mxu0 0
  %517 = vmatprep.subr.bf16.mxu0 0
  %518 = vmatpush1.bf16.msra.mxu0 0
  %519 = vmatprep.subr.bf16.mxu0 0
  %520 = vmatpush1.bf16.msra.mxu0 0
  %521 = vmatprep.subr.bf16.mxu0 0
  %522 = vmatpush1.bf16.msra.mxu0 0
  %523 = vmatprep.subr.bf16.mxu0 0
  %524 = vmatpush1.bf16.msra.mxu0 0
  %525 = vmatprep.subr.bf16.mxu0 0
  %526 = vmatpush1.bf16.msra.mxu0 0
  %527 = vmatprep.subr.bf16.mxu0 0
  %528 = vmatpush1.bf16.msra.mxu0 0
  %529 = vmatprep.mubr.bf16.mxu0 0
  %530 = vmatmul.mubr.bf16.gmra.mrb[0].mxu0 %v210
  %v531 = vpop.f32.mrb[0].mxu0
  %v532 = vadd.f32 %v435, %v531
  %v533 = vpop.f32.mrb[0].mxu0
  %v534 = vpop.f32.mrb[0].mxu0
  %v535 = vadd.f32 %v438, %v534
  %v536 = vpop.f32.mrb[0].mxu0
  %537 = vmatprep.mubr.bf16.mxu0 0
  %538 = vmatmul.mubr.bf16.gmra.mrb[0].mxu0 %v213
  %v539 = vpop.f32.mrb[0].mxu0
  %v540 = vadd.f32 %v443, %v539
  %v541 = vpop.f32.mrb[0].mxu0
  %v542 = vpop.f32.mrb[0].mxu0
  %v543 = vadd.f32 %v446, %v542
  %v544 = vpop.f32.mrb[0].mxu0
  %545 = vmatprep.mubr.bf16.mxu0 0
  %546 = vmatmul.mubr.bf16.gmra.mrb[0].mxu0 %v216
  %v547 = vpop.f32.mrb[0].mxu0
  %v548 = vadd.f32 %v451, %v547
  %v549 = vpop.f32.mrb[0].mxu0
  %v550 = vpop.f32.mrb[0].mxu0
  %v551 = vadd.f32 %v454, %v550
  %v552 = vpop.f32.mrb[0].mxu0
  %553 = vmatprep.mubr.bf16.mxu0 0
  %554 = vmatmul.mubr.bf16.gmra.mrb[0].mxu0 %v219
  %v555 = vpop.f32.mrb[0].mxu0
  %v556 = vadd.f32 %v459, %v555
  %v557 = vpop.f32.mrb[0].mxu0
  %v558 = vpop.f32.mrb[0].mxu0
  %v559 = vadd.f32 %v462, %v558
  %v560 = vpop.f32.mrb[0].mxu0
  %561 = vmatprep.mubr.bf16.mxu0 0
  %562 = vmatmul.mubr.bf16.gmra.mrb[0].mxu0 %v222
  %v563 = vpop.f32.mrb[0].mxu0
  %v564 = vadd.f32 %v467, %v563
  %v565 = vpop.f32.mrb[0].mxu0
  %v566 = vpop.f32.mrb[0].mxu0
  %v567 = vadd.f32 %v470, %v566
  %v568 = vpop.f32.mrb[0].mxu0
  %569 = vmatprep.mubr.bf16.mxu0 0
  %570 = vmatmul.mubr.bf16.gmra.mrb[0].mxu0 %v225
  %v571 = vpop.f32.mrb[0].mxu0
  %v572 = vadd.f32 %v475, %v571
  %v573 = vpop.f32.mrb[0].mxu0
  %v574 = vpop.f32.mrb[0].mxu0
  %v575 = vadd.f32 %v478, %v574
  %v576 = vpop.f32.mrb[0].mxu0
  %577 = vmatprep.mubr.bf16.mxu0 0
  %578 = vmatmul.mubr.bf16.gmra.mrb[0].mxu0 %v228
  %v579 = vpop.f32.mrb[0].mxu0
  %v580 = vadd.f32 %v483, %v579
  %v581 = vpop.f32.mrb[0].mxu0
  %v582 = vpop.f32.mrb[0].mxu0
  %v583 = vadd.f32 %v486, %v582
  %v584 = vpop.f32.mrb[0].mxu0
  %585 = vmatprep.mubr.bf16.mxu0 0
  %586 = vmatmul.mubr.bf16.gmra.mrb[0].mxu0 %v231
  %v587 = vpop.f32.mrb[0].mxu0
  %v588 = vadd.f32 %v491, %v587
  %v589 = vpop.f32.mrb[0].mxu0
  %v590 = vpop.f32.mrb[0].mxu0
  %v591 = vadd.f32 %v494, %v590
  %v592 = vpop.f32.mrb[0].mxu0
  %593 = vdwg.mxu0
  %v594 = vadd.f32 %v32, %v532
  %v595 = vadd.f32 %v33, %v535
  %v596 = vadd.f32 %v34, %v540
  %v597 = vadd.f32 %v35, %v543
  %v598 = vadd.f32 %v36, %v548
  %v599 = vadd.f32 %v37, %v551
  %v600 = vadd.f32 %v38, %v556
  %v601 = vadd.f32 %v39, %v559
  %v602 = vadd.f32 %v40, %v564
  %v603 = vadd.f32 %v41, %v567
  %v604 = vadd.f32 %v42, %v572
  %v605 = vadd.f32 %v43, %v575
  %v606 = vadd.f32 %v44, %v580
  %v607 = vadd.f32 %v45, %v583
  %v608 = vadd.f32 %v46, %v588
  %v609 = vadd.f32 %v47, %v591
  %610 = vst [vmem:[#allocation2] sm:$0xff] %v594
  %611 = vst [vmem:[#allocation2 + $0x8] sm:$0xff] %v595
  %612 = vst [vmem:[#allocation2 + $0x10] sm:$0xff] %v596
  %613 = vst [vmem:[#allocation2 + $0x18] sm:$0xff] %v597
  %614 = vst [vmem:[#allocation2 + $0x20] sm:$0xff] %v598
  %615 = vst [vmem:[#allocation2 + $0x28] sm:$0xff] %v599
  %616 = vst [vmem:[#allocation2 + $0x30] sm:$0xff] %v600
  %617 = vst [vmem:[#allocation2 + $0x38] sm:$0xff] %v601
  %618 = vst [vmem:[#allocation2 + $0x40] sm:$0xff] %v602
  %619 = vst [vmem:[#allocation2 + $0x48] sm:$0xff] %v603
  %620 = vst [vmem:[#allocation2 + $0x50] sm:$0xff] %v604
  %621 = vst [vmem:[#allocation2 + $0x58] sm:$0xff] %v605
  %622 = vst [vmem:[#allocation2 + $0x60] sm:$0xff] %v606
  %623 = vst [vmem:[#allocation2 + $0x68] sm:$0xff] %v607
  %624 = vst [vmem:[#allocation2 + $0x70] sm:$0xff] %v608
  %625 = vst [vmem:[#allocation2 + $0x78] sm:$0xff] %v609
  // Predicated region
  $region14: #{jvp__.11} parent=0 // pred_check
    %p626 = pneg %p12
  $region15: #{jvp__.11} parent=0 // pred_check_branch
    %628 = sbr.rel (%p626) target = $region17
  $region16: #{jvp__.11} parent=0 // pred_region
    %v629 = vld [vmem:[#allocation2] sm:$0xff]
    %v630 = vld [vmem:[#allocation2 + $0x8] sm:$0xff]
    %v631 = vld [vmem:[#allocation2 + $0x10] sm:$0xff]
    %v632 = vld [vmem:[#allocation2 + $0x18] sm:$0xff]
    %v633 = vld [vmem:[#allocation2 + $0x20] sm:$0xff]
    %v634 = vld [vmem:[#allocation2 + $0x28] sm:$0xff]
    %v635 = vld [vmem:[#allocation2 + $0x30] sm:$0xff]
    %v636 = vld [vmem:[#allocation2 + $0x38] sm:$0xff]
    %v637 = vld [vmem:[#allocation2 + $0x40] sm:$0xff]
    %v638 = vld [vmem:[#allocation2 + $0x48] sm:$0xff]
    %v639 = vld [vmem:[#allocation2 + $0x50] sm:$0xff]
    %v640 = vld [vmem:[#allocation2 + $0x58] sm:$0xff]
    %v641 = vld [vmem:[#allocation2 + $0x60] sm:$0xff]
    %v642 = vld [vmem:[#allocation2 + $0x68] sm:$0xff]
    %v643 = vld [vmem:[#allocation2 + $0x70] sm:$0xff]
    %v644 = vld [vmem:[#allocation2 + $0x78] sm:$0xff]
    %645 = vst [vmem:[%s2] sm:$0xff] %v629
    %646 = vst [vmem:[%s2 + $0x8] sm:$0xff] %v630
    %647 = vst [vmem:[%s2 + $0x10] sm:$0xff] %v631
    %648 = vst [vmem:[%s2 + $0x18] sm:$0xff] %v632
    %649 = vst [vmem:[%s2 + $0x20] sm:$0xff] %v633
    %650 = vst [vmem:[%s2 + $0x28] sm:$0xff] %v634
    %651 = vst [vmem:[%s2 + $0x30] sm:$0xff] %v635
    %652 = vst [vmem:[%s2 + $0x38] sm:$0xff] %v636
    %653 = vst [vmem:[%s2 + $0x40] sm:$0xff] %v637
    %654 = vst [vmem:[%s2 + $0x48] sm:$0xff] %v638
    %655 = vst [vmem:[%s2 + $0x50] sm:$0xff] %v639
    %656 = vst [vmem:[%s2 + $0x58] sm:$0xff] %v640
    %657 = vst [vmem:[%s2 + $0x60] sm:$0xff] %v641
    %658 = vst [vmem:[%s2 + $0x68] sm:$0xff] %v642
    %659 = vst [vmem:[%s2 + $0x70] sm:$0xff] %v643
    %660 = vst [vmem:[%s2 + $0x78] sm:$0xff] %v644
  $region17: #{jvp__.11} parent=0 // pred_fallthru
    _
  // Predicated region
  $region18: #{jvp__.11} parent=0 // pred_check
    _
  $region19: #{jvp__.11} parent=0 // pred_check_branch
    %662 = sbr.rel (0) target = $region21
  $region20: #{jvp__.11} parent=0 // pred_region
    _
  $region21: #{jvp__.11} parent=0 // pred_fallthru
    _
  // Predicated region
  $region22: #{jvp__.11} parent=0 // pred_check
    _
  $region23: #{jvp__.11} parent=0 // pred_check_branch
    %664 = sbr.rel (0) target = $region25
  $region24: #{jvp__.11} parent=0 // pred_region
    _
  $region25: #{jvp__.11} parent=0 // pred_fallthru
    _

// kernel: jvp__.16
$region0: #{jvp__.16}
  #allocation0 [shape = 'u32[]', space=smem, size = 0x4, offset = 0x4, fixed_abs, tag = 'smem constant byte address 0x4 - core index']
  #allocation1 [shape = 'u32[144,128]{1,0:T(1,128)}', space=vmem, size = 0x12000, scoped, tag = 'internal scratch']
  #allocation2 [shape = 'f32[128,256]{1,0:T(8,128)}', space=vmem, size = 0x20000, scoped, tag = 'scratch operand']
  %s0 = inlined_call_operand.vmem [shape: bf16[128,128], index: 0, kind: input, shape index: {}]
  %s1 = inlined_call_operand.vmem [shape: bf16[128,256], index: 1, kind: input, shape index: {}]
  %s2 = inlined_call_operand.vmem [shape: f32[128,256], index: 2, kind: output, shape index: {}]
  %s3 = sld [smem:[#allocation0]]
  $region26: #{jvp__.16} parent=0
    _
  %s5 = ssub.s32 1, %s3
  %s6 = scalar_select 0, %s5, %s3
  // Predicated region
  $region2: #{jvp__.16} parent=0 // pred_check
    _
  $region3: #{jvp__.16} parent=0 // pred_check_branch
    %8 = sbr.rel (0) target = $region5
  $region4: #{jvp__.16} parent=0 // pred_region
    _
  $region5: #{jvp__.16} parent=0 // pred_fallthru
    _
  // Predicated region
  $region6: #{jvp__.16} parent=0 // pred_check
    _
  $region7: #{jvp__.16} parent=0 // pred_check_branch
    %10 = sbr.rel (0) target = $region9
  $region8: #{jvp__.16} parent=0 // pred_region
    _
  $region9: #{jvp__.16} parent=0 // pred_fallthru
    _
  %p12 = scmp.eq.s32.totalorder 0, 0
  // Predicated region
  $region10: #{jvp__.16} parent=0 // pred_check
    %p13 = pneg %p12
  $region11: #{jvp__.16} parent=0 // pred_check_branch
    %15 = sbr.rel (%p13) target = $region13
  $region12: #{jvp__.16} parent=0 // pred_region
    %16 = vst [vmem:[#allocation2] sm:$0xff] 0.0
    %17 = vst [vmem:[#allocation2 + $0x8] sm:$0xff] 0.0
    %18 = vst [vmem:[#allocation2 + $0x10] sm:$0xff] 0.0
    %19 = vst [vmem:[#allocation2 + $0x18] sm:$0xff] 0.0
    %20 = vst [vmem:[#allocation2 + $0x20] sm:$0xff] 0.0
    %21 = vst [vmem:[#allocation2 + $0x28] sm:$0xff] 0.0
    %22 = vst [vmem:[#allocation2 + $0x30] sm:$0xff] 0.0
    %23 = vst [vmem:[#allocation2 + $0x38] sm:$0xff] 0.0
    %24 = vst [vmem:[#allocation2 + $0x40] sm:$0xff] 0.0
    %25 = vst [vmem:[#allocation2 + $0x48] sm:$0xff] 0.0
    %26 = vst [vmem:[#allocation2 + $0x50] sm:$0xff] 0.0
    %27 = vst [vmem:[#allocation2 + $0x58] sm:$0xff] 0.0
    %28 = vst [vmem:[#allocation2 + $0x60] sm:$0xff] 0.0
    %29 = vst [vmem:[#allocation2 + $0x68] sm:$0xff] 0.0
    %30 = vst [vmem:[#allocation2 + $0x70] sm:$0xff] 0.0
    %31 = vst [vmem:[#allocation2 + $0x78] sm:$0xff] 0.0
    %32 = vst [vmem:[#allocation2 + $0x80] sm:$0xff] 0.0
    %33 = vst [vmem:[#allocation2 + $0x88] sm:$0xff] 0.0
    %34 = vst [vmem:[#allocation2 + $0x90] sm:$0xff] 0.0
    %35 = vst [vmem:[#allocation2 + $0x98] sm:$0xff] 0.0
    %36 = vst [vmem:[#allocation2 + $0xa0] sm:$0xff] 0.0
    %37 = vst [vmem:[#allocation2 + $0xa8] sm:$0xff] 0.0
    %38 = vst [vmem:[#allocation2 + $0xb0] sm:$0xff] 0.0
    %39 = vst [vmem:[#allocation2 + $0xb8] sm:$0xff] 0.0
    %40 = vst [vmem:[#allocation2 + $0xc0] sm:$0xff] 0.0
    %41 = vst [vmem:[#allocation2 + $0xc8] sm:$0xff] 0.0
    %42 = vst [vmem:[#allocation2 + $0xd0] sm:$0xff] 0.0
    %43 = vst [vmem:[#allocation2 + $0xd8] sm:$0xff] 0.0
    %44 = vst [vmem:[#allocation2 + $0xe0] sm:$0xff] 0.0
    %45 = vst [vmem:[#allocation2 + $0xe8] sm:$0xff] 0.0
    %46 = vst [vmem:[#allocation2 + $0xf0] sm:$0xff] 0.0
    %47 = vst [vmem:[#allocation2 + $0xf8] sm:$0xff] 0.0
  $region13: #{jvp__.16} parent=0 // pred_fallthru
    _
  %v48 = vld [vmem:[#allocation2] sm:$0xff]
  %v49 = vld [vmem:[#allocation2 + $0x8] sm:$0xff]
  %v50 = vld [vmem:[#allocation2 + $0x10] sm:$0xff]
  %v51 = vld [vmem:[#allocation2 + $0x18] sm:$0xff]
  %v52 = vld [vmem:[#allocation2 + $0x20] sm:$0xff]
  %v53 = vld [vmem:[#allocation2 + $0x28] sm:$0xff]
  %v54 = vld [vmem:[#allocation2 + $0x30] sm:$0xff]
  %v55 = vld [vmem:[#allocation2 + $0x38] sm:$0xff]
  %v56 = vld [vmem:[#allocation2 + $0x40] sm:$0xff]
  %v57 = vld [vmem:[#allocation2 + $0x48] sm:$0xff]
  %v58 = vld [vmem:[#allocation2 + $0x50] sm:$0xff]
  %v59 = vld [vmem:[#allocation2 + $0x58] sm:$0xff]
  %v60 = vld [vmem:[#allocation2 + $0x60] sm:$0xff]
  %v61 = vld [vmem:[#allocation2 + $0x68] sm:$0xff]
  %v62 = vld [vmem:[#allocation2 + $0x70] sm:$0xff]
  %v63 = vld [vmem:[#allocation2 + $0x78] sm:$0xff]
  %v64 = vld [vmem:[#allocation2 + $0x80] sm:$0xff]
  %v65 = vld [vmem:[#allocation2 + $0x88] sm:$0xff]
  %v66 = vld [vmem:[#allocation2 + $0x90] sm:$0xff]
  %v67 = vld [vmem:[#allocation2 + $0x98] sm:$0xff]
  %v68 = vld [vmem:[#allocation2 + $0xa0] sm:$0xff]
  %v69 = vld [vmem:[#allocation2 + $0xa8] sm:$0xff]
  %v70 = vld [vmem:[#allocation2 + $0xb0] sm:$0xff]
  %v71 = vld [vmem:[#allocation2 + $0xb8] sm:$0xff]
  %v72 = vld [vmem:[#allocation2 + $0xc0] sm:$0xff]
  %v73 = vld [vmem:[#allocation2 + $0xc8] sm:$0xff]
  %v74 = vld [vmem:[#allocation2 + $0xd0] sm:$0xff]
  %v75 = vld [vmem:[#allocation2 + $0xd8] sm:$0xff]
  %v76 = vld [vmem:[#allocation2 + $0xe0] sm:$0xff]
  %v77 = vld [vmem:[#allocation2 + $0xe8] sm:$0xff]
  %v78 = vld [vmem:[#allocation2 + $0xf0] sm:$0xff]
  %v79 = vld [vmem:[#allocation2 + $0xf8] sm:$0xff]
  %v80 = vld [vmem:[%s0] sm:$0xf]
  %v81 = vld [vmem:[%s0 + $0x4] sm:$0xf]
  %v82 = vld [vmem:[%s0 + $0x8] sm:$0xf]
  %v83 = vld [vmem:[%s0 + $0xc] sm:$0xf]
  %v84 = vld [vmem:[%s0 + $0x10] sm:$0xf]
  %v85 = vld [vmem:[%s0 + $0x14] sm:$0xf]
  %v86 = vld [vmem:[%s0 + $0x18] sm:$0xf]
  %v87 = vld [vmem:[%s0 + $0x1c] sm:$0xf]
  %v88 = vld [vmem:[%s0 + $0x20] sm:$0xf]
  %v89 = vld [vmem:[%s0 + $0x24] sm:$0xf]
  %v90 = vld [vmem:[%s0 + $0x28] sm:$0xf]
  %v91 = vld [vmem:[%s0 + $0x2c] sm:$0xf]
  %v92 = vld [vmem:[%s0 + $0x30] sm:$0xf]
  %v93 = vld [vmem:[%s0 + $0x34] sm:$0xf]
  %v94 = vld [vmem:[%s0 + $0x38] sm:$0xf]
  %v95 = vld [vmem:[%s0 + $0x3c] sm:$0xf]
  %v96 = vld [vmem:[%s1] sm:$0xff]
  %v97 = vld [vmem:[%s1 + $0x8] sm:$0xff]
  %v98 = vld [vmem:[%s1 + $0x10] sm:$0xff]
  %v99 = vld [vmem:[%s1 + $0x18] sm:$0xff]
  %v100 = vld [vmem:[%s1 + $0x20] sm:$0xff]
  %v101 = vld [vmem:[%s1 + $0x28] sm:$0xff]
  %v102 = vld [vmem:[%s1 + $0x30] sm:$0xff]
  %v103 = vld [vmem:[%s1 + $0x38] sm:$0xff]
  %v104 = vld [vmem:[%s1 + $0x40] sm:$0xff]
  %v105 = vld [vmem:[%s1 + $0x48] sm:$0xff]
  %v106 = vld [vmem:[%s1 + $0x50] sm:$0xff]
  %v107 = vld [vmem:[%s1 + $0x58] sm:$0xff]
  %v108 = vld [vmem:[%s1 + $0x60] sm:$0xff]
  %v109 = vld [vmem:[%s1 + $0x68] sm:$0xff]
  %v110 = vld [vmem:[%s1 + $0x70] sm:$0xff]
  %v111 = vld [vmem:[%s1 + $0x78] sm:$0xff]
  %v128 = vunpack.c.l.b16 %v80
  %v129 = vunpack.c.l.b16 %v81
  %v130 = vunpack.c.l.b16 %v82
  %v131 = vunpack.c.l.b16 %v83
  %v132 = vunpack.c.l.b16 %v84
  %v133 = vunpack.c.l.b16 %v85
  %v134 = vunpack.c.l.b16 %v86
  %v135 = vunpack.c.l.b16 %v87
  %v136 = vunpack.c.l.b16 %v88
  %v137 = vunpack.c.l.b16 %v89
  %v138 = vunpack.c.l.b16 %v90
  %v139 = vunpack.c.l.b16 %v91
  %v140 = vunpack.c.l.b16 %v92
  %v141 = vunpack.c.l.b16 %v93
  %v142 = vunpack.c.l.b16 %v94
  %v143 = vunpack.c.l.b16 %v95
  %v144 = vpack.c.b16 %v129, %v128
  %v145 = vpack.c.b16 %v131, %v130
  %v146 = vpack.c.b16 %v133, %v132
  %v147 = vpack.c.b16 %v135, %v134
  %v148 = vpack.c.b16 %v137, %v136
  %v149 = vpack.c.b16 %v139, %v138
  %v150 = vpack.c.b16 %v141, %v140
  %v151 = vpack.c.b16 %v143, %v142
  %v176 = vunpack.c.l.b16 %v96
  %v177 = vunpack.c.h.b16 %v96
  %v178 = vunpack.c.l.b16 %v97
  %v179 = vunpack.c.h.b16 %v97
  %v180 = vunpack.c.l.b16 %v98
  %v181 = vunpack.c.h.b16 %v98
  %v182 = vunpack.c.l.b16 %v99
  %v183 = vunpack.c.h.b16 %v99
  %v184 = vunpack.c.l.b16 %v100
  %v185 = vunpack.c.h.b16 %v100
  %v186 = vunpack.c.l.b16 %v101
  %v187 = vunpack.c.h.b16 %v101
  %v188 = vunpack.c.l.b16 %v102
  %v189 = vunpack.c.h.b16 %v102
  %v190 = vunpack.c.l.b16 %v103
  %v191 = vunpack.c.h.b16 %v103
  %v192 = vunpack.c.l.b16 %v104
  %v193 = vunpack.c.h.b16 %v104
  %v194 = vunpack.c.l.b16 %v105
  %v195 = vunpack.c.h.b16 %v105
  %v196 = vunpack.c.l.b16 %v106
  %v197 = vunpack.c.h.b16 %v106
  %v198 = vunpack.c.l.b16 %v107
  %v199 = vunpack.c.h.b16 %v107
  %v200 = vunpack.c.l.b16 %v108
  %v201 = vunpack.c.h.b16 %v108
  %v202 = vunpack.c.l.b16 %v109
  %v203 = vunpack.c.h.b16 %v109
  %v204 = vunpack.c.l.b16 %v110
  %v205 = vunpack.c.h.b16 %v110
  %v206 = vunpack.c.l.b16 %v111
  %v207 = vunpack.c.h.b16 %v111
  %v208 = vpack.c.b16 %v178, %v176
  %v209 = vpack.c.b16 %v179, %v177
  %v210 = vpack.c.b16 %v182, %v180
  %v211 = vpack.c.b16 %v183, %v181
  %v212 = vpack.c.b16 %v186, %v184
  %v213 = vpack.c.b16 %v187, %v185
  %v214 = vpack.c.b16 %v190, %v188
  %v215 = vpack.c.b16 %v191, %v189
  %v216 = vpack.c.b16 %v194, %v192
  %v217 = vpack.c.b16 %v195, %v193
  %v218 = vpack.c.b16 %v198, %v196
  %v219 = vpack.c.b16 %v199, %v197
  %v220 = vpack.c.b16 %v202, %v200
  %v221 = vpack.c.b16 %v203, %v201
  %v222 = vpack.c.b16 %v206, %v204
  %v223 = vpack.c.b16 %v207, %v205
  %240 = vmatprep.subr.bf16.mxu0 %v209
  %241 = vmatpush1.bf16.msra.mxu0 %v208
  %242 = vmatprep.subr.bf16.mxu0 %v211
  %243 = vmatpush1.bf16.msra.mxu0 %v210
  %244 = vmatprep.subr.bf16.mxu0 %v213
  %245 = vmatpush1.bf16.msra.mxu0 %v212
  %246 = vmatprep.subr.bf16.mxu0 %v215
  %247 = vmatpush1.bf16.msra.mxu0 %v214
  %248 = vmatprep.subr.bf16.mxu0 %v217
  %249 = vmatpush1.bf16.msra.mxu0 %v216
  %250 = vmatprep.subr.bf16.mxu0 %v219
  %251 = vmatpush1.bf16.msra.mxu0 %v218
  %252 = vmatprep.subr.bf16.mxu0 %v221
  %253 = vmatpush1.bf16.msra.mxu0 %v220
  %254 = vmatprep.subr.bf16.mxu0 %v223
  %255 = vmatpush1.bf16.msra.mxu0 %v222
  %256 = vmatprep.subr.bf16.mxu0 0
  %257 = vmatpush1.bf16.msra.mxu0 0
  %258 = vmatprep.subr.bf16.mxu0 0
  %259 = vmatpush1.bf16.msra.mxu0 0
  %260 = vmatprep.subr.bf16.mxu0 0
  %261 = vmatpush1.bf16.msra.mxu0 0
  %262 = vmatprep.subr.bf16.mxu0 0
  %263 = vmatpush1.bf16.msra.mxu0 0
  %264 = vmatprep.subr.bf16.mxu0 0
  %265 = vmatpush1.bf16.msra.mxu0 0
  %266 = vmatprep.subr.bf16.mxu0 0
  %267 = vmatpush1.bf16.msra.mxu0 0
  %268 = vmatprep.subr.bf16.mxu0 0
  %269 = vmatpush1.bf16.msra.mxu0 0
  %270 = vmatprep.subr.bf16.mxu0 0
  %271 = vmatpush1.bf16.msra.mxu0 0
  %272 = vmatprep.mubr.bf16.mxu0 0
  %273 = vmatmul.mubr.bf16.gmra.mrb[0].mxu0 %v144
  %v274 = vpop.f32.mrb[0].mxu0
  %v275 = vadd.f32 0.0, %v274
  %v276 = vpop.f32.mrb[0].mxu0
  %v277 = vadd.f32 0.0, %v276
  %v278 = vpop.f32.mrb[0].mxu0
  %v279 = vadd.f32 0.0, %v278
  %v280 = vpop.f32.mrb[0].mxu0
  %v281 = vadd.f32 0.0, %v280
  %282 = vmatprep.mubr.bf16.mxu0 0
  %283 = vmatmul.mubr.bf16.gmra.mrb[0].mxu0 %v145
  %v284 = vpop.f32.mrb[0].mxu0
  %v285 = vadd.f32 0.0, %v284
  %v286 = vpop.f32.mrb[0].mxu0
  %v287 = vadd.f32 0.0, %v286
  %v288 = vpop.f32.mrb[0].mxu0
  %v289 = vadd.f32 0.0, %v288
  %v290 = vpop.f32.mrb[0].mxu0
  %v291 = vadd.f32 0.0, %v290
  %292 = vmatprep.mubr.bf16.mxu0 0
  %293 = vmatmul.mubr.bf16.gmra.mrb[0].mxu0 %v146
  %v294 = vpop.f32.mrb[0].mxu0
  %v295 = vadd.f32 0.0, %v294
  %v296 = vpop.f32.mrb[0].mxu0
  %v297 = vadd.f32 0.0, %v296
  %v298 = vpop.f32.mrb[0].mxu0
  %v299 = vadd.f32 0.0, %v298
  %v300 = vpop.f32.mrb[0].mxu0
  %v301 = vadd.f32 0.0, %v300
  %302 = vmatprep.mubr.bf16.mxu0 0
  %303 = vmatmul.mubr.bf16.gmra.mrb[0].mxu0 %v147
  %v304 = vpop.f32.mrb[0].mxu0
  %v305 = vadd.f32 0.0, %v304
  %v306 = vpop.f32.mrb[0].mxu0
  %v307 = vadd.f32 0.0, %v306
  %v308 = vpop.f32.mrb[0].mxu0
  %v309 = vadd.f32 0.0, %v308
  %v310 = vpop.f32.mrb[0].mxu0
  %v311 = vadd.f32 0.0, %v310
  %312 = vmatprep.mubr.bf16.mxu0 0
  %313 = vmatmul.mubr.bf16.gmra.mrb[0].mxu0 %v148
  %v314 = vpop.f32.mrb[0].mxu0
  %v315 = vadd.f32 0.0, %v314
  %v316 = vpop.f32.mrb[0].mxu0
  %v317 = vadd.f32 0.0, %v316
  %v318 = vpop.f32.mrb[0].mxu0
  %v319 = vadd.f32 0.0, %v318
  %v320 = vpop.f32.mrb[0].mxu0
  %v321 = vadd.f32 0.0, %v320
  %322 = vmatprep.mubr.bf16.mxu0 0
  %323 = vmatmul.mubr.bf16.gmra.mrb[0].mxu0 %v149
  %v324 = vpop.f32.mrb[0].mxu0
  %v325 = vadd.f32 0.0, %v324
  %v326 = vpop.f32.mrb[0].mxu0
  %v327 = vadd.f32 0.0, %v326
  %v328 = vpop.f32.mrb[0].mxu0
  %v329 = vadd.f32 0.0, %v328
  %v330 = vpop.f32.mrb[0].mxu0
  %v331 = vadd.f32 0.0, %v330
  %332 = vmatprep.mubr.bf16.mxu0 0
  %333 = vmatmul.mubr.bf16.gmra.mrb[0].mxu0 %v150
  %v334 = vpop.f32.mrb[0].mxu0
  %v335 = vadd.f32 0.0, %v334
  %v336 = vpop.f32.mrb[0].mxu0
  %v337 = vadd.f32 0.0, %v336
  %v338 = vpop.f32.mrb[0].mxu0
  %v339 = vadd.f32 0.0, %v338
  %v340 = vpop.f32.mrb[0].mxu0
  %v341 = vadd.f32 0.0, %v340
  %342 = vmatprep.mubr.bf16.mxu0 0
  %343 = vmatmul.mubr.bf16.gmra.mrb[0].mxu0 %v151
  %v344 = vpop.f32.mrb[0].mxu0
  %v345 = vadd.f32 0.0, %v344
  %v346 = vpop.f32.mrb[0].mxu0
  %v347 = vadd.f32 0.0, %v346
  %v348 = vpop.f32.mrb[0].mxu0
  %v349 = vadd.f32 0.0, %v348
  %v350 = vpop.f32.mrb[0].mxu0
  %v351 = vadd.f32 0.0, %v350
  %352 = vdwg.mxu0
  %v353 = vadd.f32 %v48, %v275
  %v354 = vadd.f32 %v49, %v277
  %v355 = vadd.f32 %v50, %v279
  %v356 = vadd.f32 %v51, %v281
  %v357 = vadd.f32 %v52, %v285
  %v358 = vadd.f32 %v53, %v287
  %v359 = vadd.f32 %v54, %v289
  %v360 = vadd.f32 %v55, %v291
  %v361 = vadd.f32 %v56, %v295
  %v362 = vadd.f32 %v57, %v297
  %v363 = vadd.f32 %v58, %v299
  %v364 = vadd.f32 %v59, %v301
  %v365 = vadd.f32 %v60, %v305
  %v366 = vadd.f32 %v61, %v307
  %v367 = vadd.f32 %v62, %v309
  %v368 = vadd.f32 %v63, %v311
  %v369 = vadd.f32 %v64, %v315
  %v370 = vadd.f32 %v65, %v317
  %v371 = vadd.f32 %v66, %v319
  %v372 = vadd.f32 %v67, %v321
  %v373 = vadd.f32 %v68, %v325
  %v374 = vadd.f32 %v69, %v327
  %v375 = vadd.f32 %v70, %v329
  %v376 = vadd.f32 %v71, %v331
  %v377 = vadd.f32 %v72, %v335
  %v378 = vadd.f32 %v73, %v337
  %v379 = vadd.f32 %v74, %v339
  %v380 = vadd.f32 %v75, %v341
  %v381 = vadd.f32 %v76, %v345
  %v382 = vadd.f32 %v77, %v347
  %v383 = vadd.f32 %v78, %v349
  %v384 = vadd.f32 %v79, %v351
  %385 = vst [vmem:[#allocation2] sm:$0xff] %v353
  %386 = vst [vmem:[#allocation2 + $0x8] sm:$0xff] %v354
  %387 = vst [vmem:[#allocation2 + $0x10] sm:$0xff] %v355
  %388 = vst [vmem:[#allocation2 + $0x18] sm:$0xff] %v356
  %389 = vst [vmem:[#allocation2 + $0x20] sm:$0xff] %v357
  %390 = vst [vmem:[#allocation2 + $0x28] sm:$0xff] %v358
  %391 = vst [vmem:[#allocation2 + $0x30] sm:$0xff] %v359
  %392 = vst [vmem:[#allocation2 + $0x38] sm:$0xff] %v360
  %393 = vst [vmem:[#allocation2 + $0x40] sm:$0xff] %v361
  %394 = vst [vmem:[#allocation2 + $0x48] sm:$0xff] %v362
  %395 = vst [vmem:[#allocation2 + $0x50] sm:$0xff] %v363
  %396 = vst [vmem:[#allocation2 + $0x58] sm:$0xff] %v364
  %397 = vst [vmem:[#allocation2 + $0x60] sm:$0xff] %v365
  %398 = vst [vmem:[#allocation2 + $0x68] sm:$0xff] %v366
  %399 = vst [vmem:[#allocation2 + $0x70] sm:$0xff] %v367
  %400 = vst [vmem:[#allocation2 + $0x78] sm:$0xff] %v368
  %401 = vst [vmem:[#allocation2 + $0x80] sm:$0xff] %v369
  %402 = vst [vmem:[#allocation2 + $0x88] sm:$0xff] %v370
  %403 = vst [vmem:[#allocation2 + $0x90] sm:$0xff] %v371
  %404 = vst [vmem:[#allocation2 + $0x98] sm:$0xff] %v372
  %405 = vst [vmem:[#allocation2 + $0xa0] sm:$0xff] %v373
  %406 = vst [vmem:[#allocation2 + $0xa8] sm:$0xff] %v374
  %407 = vst [vmem:[#allocation2 + $0xb0] sm:$0xff] %v375
  %408 = vst [vmem:[#allocation2 + $0xb8] sm:$0xff] %v376
  %409 = vst [vmem:[#allocation2 + $0xc0] sm:$0xff] %v377
  %410 = vst [vmem:[#allocation2 + $0xc8] sm:$0xff] %v378
  %411 = vst [vmem:[#allocation2 + $0xd0] sm:$0xff] %v379
  %412 = vst [vmem:[#allocation2 + $0xd8] sm:$0xff] %v380
  %413 = vst [vmem:[#allocation2 + $0xe0] sm:$0xff] %v381
  %414 = vst [vmem:[#allocation2 + $0xe8] sm:$0xff] %v382
  %415 = vst [vmem:[#allocation2 + $0xf0] sm:$0xff] %v383
  %416 = vst [vmem:[#allocation2 + $0xf8] sm:$0xff] %v384
  // Predicated region
  $region14: #{jvp__.16} parent=0 // pred_check
    %p417 = pneg %p12
  $region15: #{jvp__.16} parent=0 // pred_check_branch
    %419 = sbr.rel (%p417) target = $region17
  $region16: #{jvp__.16} parent=0 // pred_region
    %v420 = vld [vmem:[#allocation2] sm:$0xff]
    %v421 = vld [vmem:[#allocation2 + $0x8] sm:$0xff]
    %v422 = vld [vmem:[#allocation2 + $0x10] sm:$0xff]
    %v423 = vld [vmem:[#allocation2 + $0x18] sm:$0xff]
    %v424 = vld [vmem:[#allocation2 + $0x20] sm:$0xff]
    %v425 = vld [vmem:[#allocation2 + $0x28] sm:$0xff]
    %v426 = vld [vmem:[#allocation2 + $0x30] sm:$0xff]
    %v427 = vld [vmem:[#allocation2 + $0x38] sm:$0xff]
    %v428 = vld [vmem:[#allocation2 + $0x40] sm:$0xff]
    %v429 = vld [vmem:[#allocation2 + $0x48] sm:$0xff]
    %v430 = vld [vmem:[#allocation2 + $0x50] sm:$0xff]
    %v431 = vld [vmem:[#allocation2 + $0x58] sm:$0xff]
    %v432 = vld [vmem:[#allocation2 + $0x60] sm:$0xff]
    %v433 = vld [vmem:[#allocation2 + $0x68] sm:$0xff]
    %v434 = vld [vmem:[#allocation2 + $0x70] sm:$0xff]
    %v435 = vld [vmem:[#allocation2 + $0x78] sm:$0xff]
    %v436 = vld [vmem:[#allocation2 + $0x80] sm:$0xff]
    %v437 = vld [vmem:[#allocation2 + $0x88] sm:$0xff]
    %v438 = vld [vmem:[#allocation2 + $0x90] sm:$0xff]
    %v439 = vld [vmem:[#allocation2 + $0x98] sm:$0xff]
    %v440 = vld [vmem:[#allocation2 + $0xa0] sm:$0xff]
    %v441 = vld [vmem:[#allocation2 + $0xa8] sm:$0xff]
    %v442 = vld [vmem:[#allocation2 + $0xb0] sm:$0xff]
    %v443 = vld [vmem:[#allocation2 + $0xb8] sm:$0xff]
    %v444 = vld [vmem:[#allocation2 + $0xc0] sm:$0xff]
    %v445 = vld [vmem:[#allocation2 + $0xc8] sm:$0xff]
    %v446 = vld [vmem:[#allocation2 + $0xd0] sm:$0xff]
    %v447 = vld [vmem:[#allocation2 + $0xd8] sm:$0xff]
    %v448 = vld [vmem:[#allocation2 + $0xe0] sm:$0xff]
    %v449 = vld [vmem:[#allocation2 + $0xe8] sm:$0xff]
    %v450 = vld [vmem:[#allocation2 + $0xf0] sm:$0xff]
    %v451 = vld [vmem:[#allocation2 + $0xf8] sm:$0xff]
    %452 = vst [vmem:[%s2] sm:$0xff] %v420
    %453 = vst [vmem:[%s2 + $0x8] sm:$0xff] %v421
    %454 = vst [vmem:[%s2 + $0x10] sm:$0xff] %v422
    %455 = vst [vmem:[%s2 + $0x18] sm:$0xff] %v423
    %456 = vst [vmem:[%s2 + $0x20] sm:$0xff] %v424
    %457 = vst [vmem:[%s2 + $0x28] sm:$0xff] %v425
    %458 = vst [vmem:[%s2 + $0x30] sm:$0xff] %v426
    %459 = vst [vmem:[%s2 + $0x38] sm:$0xff] %v427
    %460 = vst [vmem:[%s2 + $0x40] sm:$0xff] %v428
    %461 = vst [vmem:[%s2 + $0x48] sm:$0xff] %v429
    %462 = vst [vmem:[%s2 + $0x50] sm:$0xff] %v430
    %463 = vst [vmem:[%s2 + $0x58] sm:$0xff] %v431
    %464 = vst [vmem:[%s2 + $0x60] sm:$0xff] %v432
    %465 = vst [vmem:[%s2 + $0x68] sm:$0xff] %v433
    %466 = vst [vmem:[%s2 + $0x70] sm:$0xff] %v434
    %467 = vst [vmem:[%s2 + $0x78] sm:$0xff] %v435
    %468 = vst [vmem:[%s2 + $0x80] sm:$0xff] %v436
    %469 = vst [vmem:[%s2 + $0x88] sm:$0xff] %v437
    %470 = vst [vmem:[%s2 + $0x90] sm:$0xff] %v438
    %471 = vst [vmem:[%s2 + $0x98] sm:$0xff] %v439
    %472 = vst [vmem:[%s2 + $0xa0] sm:$0xff] %v440
    %473 = vst [vmem:[%s2 + $0xa8] sm:$0xff] %v441
    %474 = vst [vmem:[%s2 + $0xb0] sm:$0xff] %v442
    %475 = vst [vmem:[%s2 + $0xb8] sm:$0xff] %v443
    %476 = vst [vmem:[%s2 + $0xc0] sm:$0xff] %v444
    %477 = vst [vmem:[%s2 + $0xc8] sm:$0xff] %v445
    %478 = vst [vmem:[%s2 + $0xd0] sm:$0xff] %v446
    %479 = vst [vmem:[%s2 + $0xd8] sm:$0xff] %v447
    %480 = vst [vmem:[%s2 + $0xe0] sm:$0xff] %v448
    %481 = vst [vmem:[%s2 + $0xe8] sm:$0xff] %v449
    %482 = vst [vmem:[%s2 + $0xf0] sm:$0xff] %v450
    %483 = vst [vmem:[%s2 + $0xf8] sm:$0xff] %v451
  $region17: #{jvp__.16} parent=0 // pred_fallthru
    _
  // Predicated region
  $region18: #{jvp__.16} parent=0 // pred_check
    _
  $region19: #{jvp__.16} parent=0 // pred_check_branch
    %485 = sbr.rel (0) target = $region21
  $region20: #{jvp__.16} parent=0 // pred_region
    _
  $region21: #{jvp__.16} parent=0 // pred_fallthru
    _
  // Predicated region
  $region22: #{jvp__.16} parent=0 // pred_check
    _
  $region23: #{jvp__.16} parent=0 // pred_check_branch
    %487 = sbr.rel (0) target = $region25
  $region24: #{jvp__.16} parent=0 // pred_region
    _
  $region25: #{jvp__.16} parent=0 // pred_fallthru
    _

// kernel: jvp__.15
$region0: #{jvp__.15}
  #allocation0 [shape = 'u32[]', space=smem, size = 0x4, offset = 0x4, fixed_abs, tag = 'smem constant byte address 0x4 - core index']
  #allocation1 [shape = 'u32[144,128]{1,0:T(1,128)}', space=vmem, size = 0x12000, scoped, tag = 'internal scratch']
  #allocation2 [shape = 'f32[128,128]{1,0:T(8,128)}', space=vmem, size = 0x10000, scoped, tag = 'scratch operand']
  %s0 = inlined_call_operand.vmem [shape: bf16[128,640], index: 0, kind: input, shape index: {}]
  %s1 = inlined_call_operand.vmem [shape: bf16[640,128], index: 1, kind: input, shape index: {}]
  %s2 = inlined_call_operand.vmem [shape: f32[128,128], index: 2, kind: output, shape index: {}]
  %s3 = sld [smem:[#allocation0]]
  $region90: #{jvp__.15} parent=0
    _
  %s5 = ssub.s32 1, %s3
  %s6 = scalar_select 0, %s5, %s3
  $region1: #{jvp__.15} parent=0
    #allocation3 [shape = 'u8[65536]{0}', space=vmem, size = 0x10000, scoped, tag = 'input window, operand 0']
    loop: start=0, step=1, limit=7
    $region2: #{jvp__.15} parent=1 // loop_pre_header
      _
    $region3: #{jvp__.15} parent=1 // loop_header
      %s8 = sphi 0, %s12
      %p9 = scmp.ge.s32.totalorder %s8, 7
      %s15 = sphi 0, %s34
      %s16 = sphi 0, %s30
      %s17 = sphi 0, %s26
      %s18 = sphi 0, %s15
      %s19 = sphi 0, %s16
      %s20 = sphi 0, %s17
      %s21 = sphi 0, %s18
      %s22 = sphi 0, %s19
      %s23 = sphi 0, %s20
      %s39 = sphi 0, %s41
      %s42 = sphi 0, %s39
      %s43 = sphi 0, %s42
      %s59 = sphi 0, %s43
      %s67 = sphi 0, %s69
      %s70 = sphi 0, %s67
      %s71 = sphi 0, %s70
      %s87 = sphi 0, %s71
      %s95 = sphi 0, %s97
      %s98 = sphi 0, %s95
      %s99 = sphi 0, %s98
      %s115 = sphi 0, %s99
    $region4: #{jvp__.15} parent=1 // loop_header_branch
      %11 = sbr.rel (%p9) target = $region8
    $region5: #{jvp__.15} parent=1 // loop_body
      %s13 = ssub.s32 %s8, 1
      %s14 = ssub.s32 %s8, 2
      %s24 = sadd.s32 1, %s17
      %p25 = scmp.ge.s32.totalorder %s24, 5
      %s26 = scalar_select %p25, 0, %s24
      %s27 = sadd.s32 1, %s16
      %s28 = scalar_select %p25, %s27, %s16
      %p29 = scmp.ge.s32.totalorder %s28, 1
      %s30 = scalar_select %p29, 0, %s28
      %s31 = sadd.s32 1, %s15
      %s32 = scalar_select %p29, %s31, %s15
      %p33 = scmp.ge.s32.totalorder %s32, 1
      %s34 = scalar_select %p33, 0, %s32
      %s35 = ssub.s32 %s15, %s34
      %s36 = ssub.s32 %s17, %s26
      %s37 = sor.u32 %s35, %s36
      %p38 = scmp.eq.s32.totalorder %s37, 0
      %s40 = sadd.s32 %s39, 1
      %s41 = scalar_select %p38, %s39, %s40
      %p44 = pneg %p38
      %p45 = scmp.eq.s32.totalorder %s8, 4
      %p46 = por %p44, %p45
      %p47 = scmp.ne.s32.totalorder %s39, %s42
      %p48 = scmp.eq.s32.totalorder %s8, 0
      %p49 = por %p47, %p48
      %p50 = scmp.ne.s32.totalorder %s39, %s42
      %p51 = scmp.eq.s32.totalorder %s13, 4
      %p52 = por %p50, %p51
      %p53 = scmp.ne.s32.totalorder %s42, %s43
      %p54 = scmp.eq.s32.totalorder %s13, 0
      %p55 = por %p53, %p54
      %p56 = scmp.ne.s32.totalorder %s42, %s43
      %p57 = scmp.eq.s32.totalorder %s14, 4
      %p58 = por %p56, %p57
      %p60 = scmp.ne.s32.totalorder %s43, %s59
      %p61 = scmp.eq.s32.totalorder %s14, 0
      %p62 = por %p60, %p61
      %s63 = ssub.s32 %s17, %s26
      %s64 = ssub.s32 %s16, %s30
      %s65 = sor.u32 %s63, %s64
      %p66 = scmp.eq.s32.totalorder %s65, 0
      %s68 = sadd.s32 %s67, 1
      %s69 = scalar_select %p66, %s67, %s68
      %p72 = pneg %p66
      %p73 = scmp.eq.s32.totalorder %s8, 4
      %p74 = por %p72, %p73
      %p75 = scmp.ne.s32.totalorder %s67, %s70
      %p76 = scmp.eq.s32.totalorder %s8, 0
      %p77 = por %p75, %p76
      %p78 = scmp.ne.s32.totalorder %s67, %s70
      %p79 = scmp.eq.s32.totalorder %s13, 4
      %p80 = por %p78, %p79
      %p81 = scmp.ne.s32.totalorder %s70, %s71
      %p82 = scmp.eq.s32.totalorder %s13, 0
      %p83 = por %p81, %p82
      %p84 = scmp.ne.s32.totalorder %s70, %s71
      %p85 = scmp.eq.s32.totalorder %s14, 4
      %p86 = por %p84, %p85
      %p88 = scmp.ne.s32.totalorder %s71, %s87
      %p89 = scmp.eq.s32.totalorder %s14, 0
      %p90 = por %p88, %p89
      %s91 = ssub.s32 %s15, %s34
      %s92 = ssub.s32 %s16, %s30
      %s93 = sor.u32 %s91, %s92
      %p94 = scmp.eq.s32.totalorder %s93, 0
      %s96 = sadd.s32 %s95, 1
      %s97 = scalar_select %p94, %s95, %s96
      %p100 = pneg %p94
      %p101 = scmp.eq.s32.totalorder %s8, 4
      %p102 = por %p100, %p101
      %p103 = scmp.ne.s32.totalorder %s95, %s98
      %p104 = scmp.eq.s32.totalorder %s8, 0
      %p105 = por %p103, %p104
      %p106 = scmp.ne.s32.totalorder %s95, %s98
      %p107 = scmp.eq.s32.totalorder %s13, 4
      %p108 = por %p106, %p107
      %p109 = scmp.ne.s32.totalorder %s98, %s99
      %p110 = scmp.eq.s32.totalorder %s13, 0
      %p111 = por %p109, %p110
      %p112 = scmp.ne.s32.totalorder %s98, %s99
      %p113 = scmp.eq.s32.totalorder %s14, 4
      %p114 = por %p112, %p113
      %p116 = scmp.ne.s32.totalorder %s99, %s115
      %p117 = scmp.eq.s32.totalorder %s14, 0
      %p118 = por %p116, %p117
      %p119 = scmp.le.s32.totalorder 1, %s8
      %p120 = scmp.lt.s32.totalorder %s8, 6
      %p121 = pnand %p119, %p120
      %p122 = pneg %p121
      // Predicated region
      $region9: #{jvp__.15} parent=5 // pred_check
        _
      $region10: #{jvp__.15} parent=5 // pred_check_branch
        %124 = sbr.rel (%p121) target = $region12
      $region11: #{jvp__.15} parent=5 // pred_region
        %s125 = ssub.s32 %s8, 1
      $region12: #{jvp__.15} parent=5 // pred_fallthru
        _
      %p126 = scmp.lt.s32.totalorder %s8, 5
      // Predicated region
      $region13: #{jvp__.15} parent=5 // pred_check
        %p127 = pneg %p126
      $region14: #{jvp__.15} parent=5 // pred_check_branch
        %129 = sbr.rel (%p127) target = $region16
      $region15: #{jvp__.15} parent=5 // pred_region
        // Predicated region
        $region17: #{jvp__.15} parent=15 // pred_check
          %p130 = pneg %p49
        $region18: #{jvp__.15} parent=15 // pred_check_branch
          %132 = sbr.rel (%p130) target = $region20
        $region19: #{jvp__.15} parent=15 // pred_region
          %s133 = sand.u32 %s39, 1
          %s134 = sand.u32 %s39, 1
          %s135 = smul.addr %s134, 64
          %s136 = scalar_lea.vmem [#allocation3], %s135
          %s137 = smul.u32 16, %s15
          %s138 = smul.addr %s137, 5
          %s139 = sadd.s32 %s17, %s138
          %s140 = smul.addr %s139, 4
          %s141 = scalar_lea.vmem %s0, %s140
          // Predicated region
          $region21: #{jvp__.15} parent=19 // pred_check
            _
          $region22: #{jvp__.15} parent=19 // pred_check_branch
            %143 = sbr.rel (0) target = $region24
          $region23: #{jvp__.15} parent=19 // pred_region
            // Predicated region
            $region25: #{jvp__.15} parent=23 // pred_check
              _
            $region26: #{jvp__.15} parent=23 // pred_check_branch
              %145 = sbr.rel target = $region28
            $region27: #{jvp__.15} parent=23 // pred_region
              // Predicated region
              $region40: #{jvp__.15} parent=27 // pred_check
                _
              $region41: #{jvp__.15} parent=27 // pred_check_branch
                %190 = sbr.rel (0) target = $region43
              $region42: #{jvp__.15} parent=27 // pred_region
                loop: start=0, step=1, limit=1
                $region44: #{jvp__.15} parent=42 // loop_pre_header
                  _
                $region45: #{jvp__.15} parent=42 // loop_header
                  %s192 = sphi 0, %s196
                  %p193 = scmp.ge.s32.totalorder %s192, 1
                  %s197 = sphi %s141, %s141
                  %s198 = sphi %s136, %s136
                $region46: #{jvp__.15} parent=42 // loop_header_branch
                  %195 = sbr.rel (%p193) target = $region50
                $region47: #{jvp__.15} parent=42 // loop_body
                  _
                $region48: #{jvp__.15} parent=42 // loop_footer
                  %s196 = sadd.s32 1, %s192
                $region49: #{jvp__.15} parent=42 // loop_footer_branch
                  %191 = sbr.rel target = $region45
                $region50: #{jvp__.15} parent=42 // loop_exit
                  _
                loop: start=0, step=1, limit=1
                $region51: #{jvp__.15} parent=42 // loop_pre_header
                  _
                $region52: #{jvp__.15} parent=42 // loop_header
                  %s201 = sphi 0, %s205
                  %p202 = scmp.ge.s32.totalorder %s201, 1
                  %s206 = sphi %s141, %s141
                  %s207 = sphi %s136, %s136
                $region53: #{jvp__.15} parent=42 // loop_header_branch
                  %204 = sbr.rel (%p202) target = $region57
                $region54: #{jvp__.15} parent=42 // loop_body
                  %v208 = vld [vmem:[%s206] sm:$0xf]
                  %209 = vst [vmem:[%s207] sm:$0xf] %v208
                  %v210 = vld [vmem:[%s206 + $0x14] sm:$0xf]
                  %211 = vst [vmem:[%s207 + $0x4] sm:$0xf] %v210
                  %v212 = vld [vmem:[%s206 + $0x28] sm:$0xf]
                  %213 = vst [vmem:[%s207 + $0x8] sm:$0xf] %v212
                  %v214 = vld [vmem:[%s206 + $0x3c] sm:$0xf]
                  %215 = vst [vmem:[%s207 + $0xc] sm:$0xf] %v214
                  %v216 = vld [vmem:[%s206 + $0x50] sm:$0xf]
                  %217 = vst [vmem:[%s207 + $0x10] sm:$0xf] %v216
                  %v218 = vld [vmem:[%s206 + $0x64] sm:$0xf]
                  %219 = vst [vmem:[%s207 + $0x14] sm:$0xf] %v218
                  %v220 = vld [vmem:[%s206 + $0x78] sm:$0xf]
                  %221 = vst [vmem:[%s207 + $0x18] sm:$0xf] %v220
                  %v222 = vld [vmem:[%s206 + $0x8c] sm:$0xf]
                  %223 = vst [vmem:[%s207 + $0x1c] sm:$0xf] %v222
                  %v224 = vld [vmem:[%s206 + $0xa0] sm:$0xf]
                  %225 = vst [vmem:[%s207 + $0x20] sm:$0xf] %v224
                  %v226 = vld [vmem:[%s206 + $0xb4] sm:$0xf]
                  %227 = vst [vmem:[%s207 + $0x24] sm:$0xf] %v226
                  %v228 = vld [vmem:[%s206 + $0xc8] sm:$0xf]
                  %229 = vst [vmem:[%s207 + $0x28] sm:$0xf] %v228
                  %v230 = vld [vmem:[%s206 + $0xdc] sm:$0xf]
                  %231 = vst [vmem:[%s207 + $0x2c] sm:$0xf] %v230
                  %v232 = vld [vmem:[%s206 + $0xf0] sm:$0xf]
                  %233 = vst [vmem:[%s207 + $0x30] sm:$0xf] %v232
                  %v234 = vld [vmem:[%s206 + $0x104] sm:$0xf]
                  %235 = vst [vmem:[%s207 + $0x34] sm:$0xf] %v234
                  %v236 = vld [vmem:[%s206 + $0x118] sm:$0xf]
                  %237 = vst [vmem:[%s207 + $0x38] sm:$0xf] %v236
                  %v238 = vld [vmem:[%s206 + $0x12c] sm:$0xf]
                  %239 = vst [vmem:[%s207 + $0x3c] sm:$0xf] %v238
                $region55: #{jvp__.15} parent=42 // loop_footer
                  %s205 = sadd.s32 1, %s201
                $region56: #{jvp__.15} parent=42 // loop_footer_branch
                  %200 = sbr.rel target = $region52
                $region57: #{jvp__.15} parent=42 // loop_exit
                  _
              $region43: #{jvp__.15} parent=27 // pred_fallthru
                _
            $region28: #{jvp__.15} parent=23 // pred_fallthru
              _
            // Predicated region
            $region29: #{jvp__.15} parent=23 // pred_check
              _
            $region30: #{jvp__.15} parent=23 // pred_check_branch
              %147 = sbr.rel (0) target = $region32
            $region31: #{jvp__.15} parent=23 // pred_region
              loop: start=0, step=1, limit=1
              $region33: #{jvp__.15} parent=31 // loop_pre_header
                _
              $region34: #{jvp__.15} parent=31 // loop_header
                %s150 = sphi 0, %s154
                %p151 = scmp.ge.s32.totalorder %s150, 1
                %s155 = sphi %s141, %s141
                %s156 = sphi %s136, %s136
              $region35: #{jvp__.15} parent=31 // loop_header_branch
                %153 = sbr.rel (%p151) target = $region39
              $region36: #{jvp__.15} parent=31 // loop_body
                %v157 = vld [vmem:[%s155] sm:$0xf]
                %158 = vst [vmem:[%s156] sm:$0xf] %v157
                %v159 = vld [vmem:[%s155 + $0x14] sm:$0xf]
                %160 = vst [vmem:[%s156 + $0x4] sm:$0xf] %v159
                %v161 = vld [vmem:[%s155 + $0x28] sm:$0xf]
                %162 = vst [vmem:[%s156 + $0x8] sm:$0xf] %v161
                %v163 = vld [vmem:[%s155 + $0x3c] sm:$0xf]
                %164 = vst [vmem:[%s156 + $0xc] sm:$0xf] %v163
                %v165 = vld [vmem:[%s155 + $0x50] sm:$0xf]
                %166 = vst [vmem:[%s156 + $0x10] sm:$0xf] %v165
                %v167 = vld [vmem:[%s155 + $0x64] sm:$0xf]
                %168 = vst [vmem:[%s156 + $0x14] sm:$0xf] %v167
                %v169 = vld [vmem:[%s155 + $0x78] sm:$0xf]
                %170 = vst [vmem:[%s156 + $0x18] sm:$0xf] %v169
                %v171 = vld [vmem:[%s155 + $0x8c] sm:$0xf]
                %172 = vst [vmem:[%s156 + $0x1c] sm:$0xf] %v171
                %v173 = vld [vmem:[%s155 + $0xa0] sm:$0xf]
                %174 = vst [vmem:[%s156 + $0x20] sm:$0xf] %v173
                %v175 = vld [vmem:[%s155 + $0xb4] sm:$0xf]
                %176 = vst [vmem:[%s156 + $0x24] sm:$0xf] %v175
                %v177 = vld [vmem:[%s155 + $0xc8] sm:$0xf]
                %178 = vst [vmem:[%s156 + $0x28] sm:$0xf] %v177
                %v179 = vld [vmem:[%s155 + $0xdc] sm:$0xf]
                %180 = vst [vmem:[%s156 + $0x2c] sm:$0xf] %v179
                %v181 = vld [vmem:[%s155 + $0xf0] sm:$0xf]
                %182 = vst [vmem:[%s156 + $0x30] sm:$0xf] %v181
                %v183 = vld [vmem:[%s155 + $0x104] sm:$0xf]
                %184 = vst [vmem:[%s156 + $0x34] sm:$0xf] %v183
                %v185 = vld [vmem:[%s155 + $0x118] sm:$0xf]
                %186 = vst [vmem:[%s156 + $0x38] sm:$0xf] %v185
                %v187 = vld [vmem:[%s155 + $0x12c] sm:$0xf]
                %188 = vst [vmem:[%s156 + $0x3c] sm:$0xf] %v187
              $region37: #{jvp__.15} parent=31 // loop_footer
                %s154 = sadd.s32 1, %s150
              $region38: #{jvp__.15} parent=31 // loop_footer_branch
                %149 = sbr.rel target = $region34
              $region39: #{jvp__.15} parent=31 // loop_exit
                _
            $region32: #{jvp__.15} parent=23 // pred_fallthru
              _
          $region24: #{jvp__.15} parent=19 // pred_fallthru
            _
          %240 = vnop
        $region20: #{jvp__.15} parent=15 // pred_fallthru
          _
        // Predicated region
        $region58: #{jvp__.15} parent=15 // pred_check
          %p241 = pneg %p77
        $region59: #{jvp__.15} parent=15 // pred_check_branch
          %243 = sbr.rel (%p241) target = $region61
        $region60: #{jvp__.15} parent=15 // pred_region
          %s244 = smul.u32 16, %s17
          %p245 = scmp.lt.s32.totalorder %s244, 79
          %s246 = scalar_select %p245, %s244, 79
          %p247 = scmp.lt.s32.totalorder %s16, 0
          %s248 = scalar_select %p247, %s16, 0
          %s249 = sadd.s32 %s248, %s246
          %s250 = smul.addr %s249, 4
          %s251 = scalar_lea.vmem %s1, %s250
          %s252 = smul.u32 16, %s17
        $region61: #{jvp__.15} parent=15 // pred_fallthru
          _
      $region16: #{jvp__.15} parent=5 // pred_fallthru
        _
      %p253 = scmp.le.s32.totalorder 1, %s8
      %p254 = scmp.lt.s32.totalorder %s8, 6
      %p255 = pnand %p253, %p254
      %p256 = pneg %p255
      // Predicated region
      $region62: #{jvp__.15} parent=5 // pred_check
        _
      $region63: #{jvp__.15} parent=5 // pred_check_branch
        %258 = sbr.rel (%p255) target = $region65
      $region64: #{jvp__.15} parent=5 // pred_region
        %s259 = ssub.s32 %s8, 1
        %s260 = sand.u32 %s42, 1
        %s261 = sand.u32 %s42, 1
        %s262 = smul.addr %s261, 64
        %s263 = scalar_lea.vmem [#allocation3], %s262
        // Predicated region
        $region66: #{jvp__.15} parent=64 // pred_check
          %p264 = pneg %p55
        $region67: #{jvp__.15} parent=64 // pred_check_branch
          %266 = sbr.rel (%p264) target = $region69
        $region68: #{jvp__.15} parent=64 // pred_region
          _
        $region69: #{jvp__.15} parent=64 // pred_fallthru
          _
        %s267 = sand.u32 %s42, 1
        %s268 = sand.u32 %s42, 1
        %s269 = smul.addr %s268, 64
        %s270 = scalar_lea.vmem [#allocation3], %s269
        %p271 = pneg %p55
        %p272 = pneg %p52
        %s273 = smul.u32 16, %s20
        %p274 = scmp.lt.s32.totalorder %s273, 79
        %s275 = scalar_select %p274, %s273, 79
        %p276 = scmp.lt.s32.totalorder %s19, 0
        %s277 = scalar_select %p276, %s19, 0
        %s278 = sadd.s32 %s277, %s275
        %s279 = smul.addr %s278, 4
        %s280 = scalar_lea.vmem %s1, %s279
        %p281 = pneg %p83
        %p282 = pneg %p80
        %p283 = pneg %p111
        %p284 = pneg %p108
        %s285 = smul.u32 16, %s18
        %p286 = scmp.lt.s32.totalorder %s285, 15
        %s287 = scalar_select %p286, %s285, 15
        %p288 = scmp.lt.s32.totalorder %s19, 0
        %s289 = scalar_select %p288, %s19, 0
        %s290 = sadd.s32 %s289, %s287
        %s291 = smul.addr %s290, 8
        %s292 = scalar_lea.vmem %s2, %s291
        %s293 = smul.u32 16, %s18
        %s294 = smul.u32 16, %s20
        %p295 = scmp.lt.s32.totalorder %s294, 79
        %s296 = scalar_select %p295, %s294, 79
        %p297 = scmp.lt.s32.totalorder %s19, 0
        %s298 = scalar_select %p297, %s19, 0
        %s299 = sadd.s32 %s298, %s296
        %s300 = smul.addr %s299, 4
        %s301 = scalar_lea.vmem %s1, %s300
        %s302 = smul.u32 16, %s20
        %s303 = smul.u32 16, %s18
        %p304 = scmp.lt.s32.totalorder %s303, 15
        %s305 = scalar_select %p304, %s303, 15
        %p306 = scmp.lt.s32.totalorder %s19, 0
        %s307 = scalar_select %p306, %s19, 0
        %s308 = sadd.s32 %s307, %s305
        %s309 = smul.addr %s308, 8
        %s310 = scalar_lea.vmem %s2, %s309
        %s311 = smul.u32 16, %s18
        %p313 = scmp.eq.s32.totalorder %s20, 0
        // Predicated region
        $region70: #{jvp__.15} parent=64 // pred_check
          %p314 = pneg %p313
        $region71: #{jvp__.15} parent=64 // pred_check_branch
          %316 = sbr.rel (%p314) target = $region73
        $region72: #{jvp__.15} parent=64 // pred_region
          %317 = vst [vmem:[#allocation2] sm:$0xff] 0.0
          %318 = vst [vmem:[#allocation2 + $0x8] sm:$0xff] 0.0
          %319 = vst [vmem:[#allocation2 + $0x10] sm:$0xff] 0.0
          %320 = vst [vmem:[#allocation2 + $0x18] sm:$0xff] 0.0
          %321 = vst [vmem:[#allocation2 + $0x20] sm:$0xff] 0.0
          %322 = vst [vmem:[#allocation2 + $0x28] sm:$0xff] 0.0
          %323 = vst [vmem:[#allocation2 + $0x30] sm:$0xff] 0.0
          %324 = vst [vmem:[#allocation2 + $0x38] sm:$0xff] 0.0
          %325 = vst [vmem:[#allocation2 + $0x40] sm:$0xff] 0.0
          %326 = vst [vmem:[#allocation2 + $0x48] sm:$0xff] 0.0
          %327 = vst [vmem:[#allocation2 + $0x50] sm:$0xff] 0.0
          %328 = vst [vmem:[#allocation2 + $0x58] sm:$0xff] 0.0
          %329 = vst [vmem:[#allocation2 + $0x60] sm:$0xff] 0.0
          %330 = vst [vmem:[#allocation2 + $0x68] sm:$0xff] 0.0
          %331 = vst [vmem:[#allocation2 + $0x70] sm:$0xff] 0.0
          %332 = vst [vmem:[#allocation2 + $0x78] sm:$0xff] 0.0
        $region73: #{jvp__.15} parent=64 // pred_fallthru
          _
        %v333 = vld [vmem:[#allocation2] sm:$0xff]
        %v334 = vld [vmem:[#allocation2 + $0x8] sm:$0xff]
        %v335 = vld [vmem:[#allocation2 + $0x10] sm:$0xff]
        %v336 = vld [vmem:[#allocation2 + $0x18] sm:$0xff]
        %v337 = vld [vmem:[#allocation2 + $0x20] sm:$0xff]
        %v338 = vld [vmem:[#allocation2 + $0x28] sm:$0xff]
        %v339 = vld [vmem:[#allocation2 + $0x30] sm:$0xff]
        %v340 = vld [vmem:[#allocation2 + $0x38] sm:$0xff]
        %v341 = vld [vmem:[#allocation2 + $0x40] sm:$0xff]
        %v342 = vld [vmem:[#allocation2 + $0x48] sm:$0xff]
        %v343 = vld [vmem:[#allocation2 + $0x50] sm:$0xff]
        %v344 = vld [vmem:[#allocation2 + $0x58] sm:$0xff]
        %v345 = vld [vmem:[#allocation2 + $0x60] sm:$0xff]
        %v346 = vld [vmem:[#allocation2 + $0x68] sm:$0xff]
        %v347 = vld [vmem:[#allocation2 + $0x70] sm:$0xff]
        %v348 = vld [vmem:[#allocation2 + $0x78] sm:$0xff]
        %v349 = vld [vmem:[%s263] sm:$0xf]
        %v350 = vld [vmem:[%s263 + $0x4] sm:$0xf]
        %v351 = vld [vmem:[%s263 + $0x8] sm:$0xf]
        %v352 = vld [vmem:[%s263 + $0xc] sm:$0xf]
        %v353 = vld [vmem:[%s263 + $0x10] sm:$0xf]
        %v354 = vld [vmem:[%s263 + $0x14] sm:$0xf]
        %v355 = vld [vmem:[%s263 + $0x18] sm:$0xf]
        %v356 = vld [vmem:[%s263 + $0x1c] sm:$0xf]
        %v357 = vld [vmem:[%s263 + $0x20] sm:$0xf]
        %v358 = vld [vmem:[%s263 + $0x24] sm:$0xf]
        %v359 = vld [vmem:[%s263 + $0x28] sm:$0xf]
        %v360 = vld [vmem:[%s263 + $0x2c] sm:$0xf]
        %v361 = vld [vmem:[%s263 + $0x30] sm:$0xf]
        %v362 = vld [vmem:[%s263 + $0x34] sm:$0xf]
        %v363 = vld [vmem:[%s263 + $0x38] sm:$0xf]
        %v364 = vld [vmem:[%s263 + $0x3c] sm:$0xf]
        %v365 = vld [vmem:[%s301] sm:$0xf]
        %v366 = vld [vmem:[%s301 + $0x4] sm:$0xf]
        %v367 = vld [vmem:[%s301 + $0x8] sm:$0xf]
        %v368 = vld [vmem:[%s301 + $0xc] sm:$0xf]
        %v369 = vld [vmem:[%s301 + $0x10] sm:$0xf]
        %v370 = vld [vmem:[%s301 + $0x14] sm:$0xf]
        %v371 = vld [vmem:[%s301 + $0x18] sm:$0xf]
        %v372 = vld [vmem:[%s301 + $0x1c] sm:$0xf]
        %v373 = vld [vmem:[%s301 + $0x20] sm:$0xf]
        %v374 = vld [vmem:[%s301 + $0x24] sm:$0xf]
        %v375 = vld [vmem:[%s301 + $0x28] sm:$0xf]
        %v376 = vld [vmem:[%s301 + $0x2c] sm:$0xf]
        %v377 = vld [vmem:[%s301 + $0x30] sm:$0xf]
        %v378 = vld [vmem:[%s301 + $0x34] sm:$0xf]
        %v379 = vld [vmem:[%s301 + $0x38] sm:$0xf]
        %v380 = vld [vmem:[%s301 + $0x3c] sm:$0xf]
        %v397 = vunpack.c.l.b16 %v349
        %v398 = vunpack.c.l.b16 %v350
        %v399 = vunpack.c.l.b16 %v351
        %v400 = vunpack.c.l.b16 %v352
        %v401 = vunpack.c.l.b16 %v353
        %v402 = vunpack.c.l.b16 %v354
        %v403 = vunpack.c.l.b16 %v355
        %v404 = vunpack.c.l.b16 %v356
        %v405 = vunpack.c.l.b16 %v357
        %v406 = vunpack.c.l.b16 %v358
        %v407 = vunpack.c.l.b16 %v359
        %v408 = vunpack.c.l.b16 %v360
        %v409 = vunpack.c.l.b16 %v361
        %v410 = vunpack.c.l.b16 %v362
        %v411 = vunpack.c.l.b16 %v363
        %v412 = vunpack.c.l.b16 %v364
        %v413 = vpack.c.b16 %v398, %v397
        %v414 = vpack.c.b16 %v400, %v399
        %v415 = vpack.c.b16 %v402, %v401
        %v416 = vpack.c.b16 %v404, %v403
        %v417 = vpack.c.b16 %v406, %v405
        %v418 = vpack.c.b16 %v408, %v407
        %v419 = vpack.c.b16 %v410, %v409
        %v420 = vpack.c.b16 %v412, %v411
        %v445 = vunpack.c.l.b16 %v365
        %v446 = vunpack.c.l.b16 %v366
        %v447 = vunpack.c.l.b16 %v367
        %v448 = vunpack.c.l.b16 %v368
        %v449 = vunpack.c.l.b16 %v369
        %v450 = vunpack.c.l.b16 %v370
        %v451 = vunpack.c.l.b16 %v371
        %v452 = vunpack.c.l.b16 %v372
        %v453 = vunpack.c.l.b16 %v373
        %v454 = vunpack.c.l.b16 %v374
        %v455 = vunpack.c.l.b16 %v375
        %v456 = vunpack.c.l.b16 %v376
        %v457 = vunpack.c.l.b16 %v377
        %v458 = vunpack.c.l.b16 %v378
        %v459 = vunpack.c.l.b16 %v379
        %v460 = vunpack.c.l.b16 %v380
        %v461 = vpack.c.b16 %v446, %v445
        %v462 = vpack.c.b16 %v448, %v447
        %v463 = vpack.c.b16 %v450, %v449
        %v464 = vpack.c.b16 %v452, %v451
        %v465 = vpack.c.b16 %v454, %v453
        %v466 = vpack.c.b16 %v456, %v455
        %v467 = vpack.c.b16 %v458, %v457
        %v468 = vpack.c.b16 %v460, %v459
        %477 = vmatprep.subr.bf16.mxu0 0
        %478 = vmatpush1.bf16.msra.mxu0 %v461
        %479 = vmatprep.subr.bf16.mxu0 0
        %480 = vmatpush1.bf16.msra.mxu0 %v462
        %481 = vmatprep.subr.bf16.mxu0 0
        %482 = vmatpush1.bf16.msra.mxu0 %v463
        %483 = vmatprep.subr.bf16.mxu0 0
        %484 = vmatpush1.bf16.msra.mxu0 %v464
        %485 = vmatprep.subr.bf16.mxu0 0
        %486 = vmatpush1.bf16.msra.mxu0 %v465
        %487 = vmatprep.subr.bf16.mxu0 0
        %488 = vmatpush1.bf16.msra.mxu0 %v466
        %489 = vmatprep.subr.bf16.mxu0 0
        %490 = vmatpush1.bf16.msra.mxu0 %v467
        %491 = vmatprep.subr.bf16.mxu0 0
        %492 = vmatpush1.bf16.msra.mxu0 %v468
        %493 = vmatprep.subr.bf16.mxu0 0
        %494 = vmatpush1.bf16.msra.mxu0 0
        %495 = vmatprep.subr.bf16.mxu0 0
        %496 = vmatpush1.bf16.msra.mxu0 0
        %497 = vmatprep.subr.bf16.mxu0 0
        %498 = vmatpush1.bf16.msra.mxu0 0
        %499 = vmatprep.subr.bf16.mxu0 0
        %500 = vmatpush1.bf16.msra.mxu0 0
        %501 = vmatprep.subr.bf16.mxu0 0
        %502 = vmatpush1.bf16.msra.mxu0 0
        %503 = vmatprep.subr.bf16.mxu0 0
        %504 = vmatpush1.bf16.msra.mxu0 0
        %505 = vmatprep.subr.bf16.mxu0 0
        %506 = vmatpush1.bf16.msra.mxu0 0
        %507 = vmatprep.subr.bf16.mxu0 0
        %508 = vmatpush1.bf16.msra.mxu0 0
        %509 = vmatprep.mubr.bf16.mxu0 0
        %510 = vmatmul.mubr.bf16.gmra.mrb[0].mxu0 %v413
        %v511 = vpop.f32.mrb[0].mxu0
        %v512 = vadd.f32 0.0, %v511
        %v513 = vpop.f32.mrb[0].mxu0
        %v514 = vpop.f32.mrb[0].mxu0
        %v515 = vadd.f32 0.0, %v514
        %v516 = vpop.f32.mrb[0].mxu0
        %517 = vmatprep.mubr.bf16.mxu0 0
        %518 = vmatmul.mubr.bf16.gmra.mrb[0].mxu0 %v414
        %v519 = vpop.f32.mrb[0].mxu0
        %v520 = vadd.f32 0.0, %v519
        %v521 = vpop.f32.mrb[0].mxu0
        %v522 = vpop.f32.mrb[0].mxu0
        %v523 = vadd.f32 0.0, %v522
        %v524 = vpop.f32.mrb[0].mxu0
        %525 = vmatprep.mubr.bf16.mxu0 0
        %526 = vmatmul.mubr.bf16.gmra.mrb[0].mxu0 %v415
        %v527 = vpop.f32.mrb[0].mxu0
        %v528 = vadd.f32 0.0, %v527
        %v529 = vpop.f32.mrb[0].mxu0
        %v530 = vpop.f32.mrb[0].mxu0
        %v531 = vadd.f32 0.0, %v530
        %v532 = vpop.f32.mrb[0].mxu0
        %533 = vmatprep.mubr.bf16.mxu0 0
        %534 = vmatmul.mubr.bf16.gmra.mrb[0].mxu0 %v416
        %v535 = vpop.f32.mrb[0].mxu0
        %v536 = vadd.f32 0.0, %v535
        %v537 = vpop.f32.mrb[0].mxu0
        %v538 = vpop.f32.mrb[0].mxu0
        %v539 = vadd.f32 0.0, %v538
        %v540 = vpop.f32.mrb[0].mxu0
        %541 = vmatprep.mubr.bf16.mxu0 0
        %542 = vmatmul.mubr.bf16.gmra.mrb[0].mxu0 %v417
        %v543 = vpop.f32.mrb[0].mxu0
        %v544 = vadd.f32 0.0, %v543
        %v545 = vpop.f32.mrb[0].mxu0
        %v546 = vpop.f32.mrb[0].mxu0
        %v547 = vadd.f32 0.0, %v546
        %v548 = vpop.f32.mrb[0].mxu0
        %549 = vmatprep.mubr.bf16.mxu0 0
        %550 = vmatmul.mubr.bf16.gmra.mrb[0].mxu0 %v418
        %v551 = vpop.f32.mrb[0].mxu0
        %v552 = vadd.f32 0.0, %v551
        %v553 = vpop.f32.mrb[0].mxu0
        %v554 = vpop.f32.mrb[0].mxu0
        %v555 = vadd.f32 0.0, %v554
        %v556 = vpop.f32.mrb[0].mxu0
        %557 = vmatprep.mubr.bf16.mxu0 0
        %558 = vmatmul.mubr.bf16.gmra.mrb[0].mxu0 %v419
        %v559 = vpop.f32.mrb[0].mxu0
        %v560 = vadd.f32 0.0, %v559
        %v561 = vpop.f32.mrb[0].mxu0
        %v562 = vpop.f32.mrb[0].mxu0
        %v563 = vadd.f32 0.0, %v562
        %v564 = vpop.f32.mrb[0].mxu0
        %565 = vmatprep.mubr.bf16.mxu0 0
        %566 = vmatmul.mubr.bf16.gmra.mrb[0].mxu0 %v420
        %v567 = vpop.f32.mrb[0].mxu0
        %v568 = vadd.f32 0.0, %v567
        %v569 = vpop.f32.mrb[0].mxu0
        %v570 = vpop.f32.mrb[0].mxu0
        %v571 = vadd.f32 0.0, %v570
        %v572 = vpop.f32.mrb[0].mxu0
        %573 = vdwg.mxu0
        %v574 = vadd.f32 %v333, %v512
        %v575 = vadd.f32 %v334, %v515
        %v576 = vadd.f32 %v335, %v520
        %v577 = vadd.f32 %v336, %v523
        %v578 = vadd.f32 %v337, %v528
        %v579 = vadd.f32 %v338, %v531
        %v580 = vadd.f32 %v339, %v536
        %v581 = vadd.f32 %v340, %v539
        %v582 = vadd.f32 %v341, %v544
        %v583 = vadd.f32 %v342, %v547
        %v584 = vadd.f32 %v343, %v552
        %v585 = vadd.f32 %v344, %v555
        %v586 = vadd.f32 %v345, %v560
        %v587 = vadd.f32 %v346, %v563
        %v588 = vadd.f32 %v347, %v568
        %v589 = vadd.f32 %v348, %v571
        %590 = vst [vmem:[#allocation2] sm:$0xff] %v574
        %591 = vst [vmem:[#allocation2 + $0x8] sm:$0xff] %v575
        %592 = vst [vmem:[#allocation2 + $0x10] sm:$0xff] %v576
        %593 = vst [vmem:[#allocation2 + $0x18] sm:$0xff] %v577
        %594 = vst [vmem:[#allocation2 + $0x20] sm:$0xff] %v578
        %595 = vst [vmem:[#allocation2 + $0x28] sm:$0xff] %v579
        %596 = vst [vmem:[#allocation2 + $0x30] sm:$0xff] %v580
        %597 = vst [vmem:[#allocation2 + $0x38] sm:$0xff] %v581
        %598 = vst [vmem:[#allocation2 + $0x40] sm:$0xff] %v582
        %599 = vst [vmem:[#allocation2 + $0x48] sm:$0xff] %v583
        %600 = vst [vmem:[#allocation2 + $0x50] sm:$0xff] %v584
        %601 = vst [vmem:[#allocation2 + $0x58] sm:$0xff] %v585
        %602 = vst [vmem:[#allocation2 + $0x60] sm:$0xff] %v586
        %603 = vst [vmem:[#allocation2 + $0x68] sm:$0xff] %v587
        %604 = vst [vmem:[#allocation2 + $0x70] sm:$0xff] %v588
        %605 = vst [vmem:[#allocation2 + $0x78] sm:$0xff] %v589
        %p606 = scmp.eq.s32.totalorder %s20, 4
        // Predicated region
        $region74: #{jvp__.15} parent=64 // pred_check
          %p607 = pneg %p606
        $region75: #{jvp__.15} parent=64 // pred_check_branch
          %609 = sbr.rel (%p607) target = $region77
        $region76: #{jvp__.15} parent=64 // pred_region
          %v610 = vld [vmem:[#allocation2] sm:$0xff]
          %v611 = vld [vmem:[#allocation2 + $0x8] sm:$0xff]
          %v612 = vld [vmem:[#allocation2 + $0x10] sm:$0xff]
          %v613 = vld [vmem:[#allocation2 + $0x18] sm:$0xff]
          %v614 = vld [vmem:[#allocation2 + $0x20] sm:$0xff]
          %v615 = vld [vmem:[#allocation2 + $0x28] sm:$0xff]
          %v616 = vld [vmem:[#allocation2 + $0x30] sm:$0xff]
          %v617 = vld [vmem:[#allocation2 + $0x38] sm:$0xff]
          %v618 = vld [vmem:[#allocation2 + $0x40] sm:$0xff]
          %v619 = vld [vmem:[#allocation2 + $0x48] sm:$0xff]
          %v620 = vld [vmem:[#allocation2 + $0x50] sm:$0xff]
          %v621 = vld [vmem:[#allocation2 + $0x58] sm:$0xff]
          %v622 = vld [vmem:[#allocation2 + $0x60] sm:$0xff]
          %v623 = vld [vmem:[#allocation2 + $0x68] sm:$0xff]
          %v624 = vld [vmem:[#allocation2 + $0x70] sm:$0xff]
          %v625 = vld [vmem:[#allocation2 + $0x78] sm:$0xff]
          %626 = vst [vmem:[%s310] sm:$0xff] %v610
          %627 = vst [vmem:[%s310 + $0x8] sm:$0xff] %v611
          %628 = vst [vmem:[%s310 + $0x10] sm:$0xff] %v612
          %629 = vst [vmem:[%s310 + $0x18] sm:$0xff] %v613
          %630 = vst [vmem:[%s310 + $0x20] sm:$0xff] %v614
          %631 = vst [vmem:[%s310 + $0x28] sm:$0xff] %v615
          %632 = vst [vmem:[%s310 + $0x30] sm:$0xff] %v616
          %633 = vst [vmem:[%s310 + $0x38] sm:$0xff] %v617
          %634 = vst [vmem:[%s310 + $0x40] sm:$0xff] %v618
          %635 = vst [vmem:[%s310 + $0x48] sm:$0xff] %v619
          %636 = vst [vmem:[%s310 + $0x50] sm:$0xff] %v620
          %637 = vst [vmem:[%s310 + $0x58] sm:$0xff] %v621
          %638 = vst [vmem:[%s310 + $0x60] sm:$0xff] %v622
          %639 = vst [vmem:[%s310 + $0x68] sm:$0xff] %v623
          %640 = vst [vmem:[%s310 + $0x70] sm:$0xff] %v624
          %641 = vst [vmem:[%s310 + $0x78] sm:$0xff] %v625
        $region77: #{jvp__.15} parent=64 // pred_fallthru
          _
        %s642 = smul.u32 16, %s18
        %p643 = scmp.lt.s32.totalorder %s642, 15
        %s644 = scalar_select %p643, %s642, 15
        %p645 = scmp.lt.s32.totalorder %s19, 0
        %s646 = scalar_select %p645, %s19, 0
        %s647 = sadd.s32 %s646, %s644
        %s648 = smul.addr %s647, 8
        %s649 = scalar_lea.vmem %s2, %s648
        // Predicated region
        $region78: #{jvp__.15} parent=64 // pred_check
          %p650 = pneg %p108
        $region79: #{jvp__.15} parent=64 // pred_check_branch
          %652 = sbr.rel (%p650) target = $region81
        $region80: #{jvp__.15} parent=64 // pred_region
          %s653 = smul.u32 16, %s18
        $region81: #{jvp__.15} parent=64 // pred_fallthru
          _
        // Predicated region
        $region82: #{jvp__.15} parent=64 // pred_check
          %p654 = pneg %p108
        $region83: #{jvp__.15} parent=64 // pred_check_branch
          %656 = sbr.rel (%p654) target = $region85
        $region84: #{jvp__.15} parent=64 // pred_region
          %s657 = smul.u32 16, %s18
          %p658 = scmp.lt.s32.totalorder %s657, 15
          %s659 = scalar_select %p658, %s657, 15
          %p660 = scmp.lt.s32.totalorder %s19, 0
          %s661 = scalar_select %p660, %s19, 0
          %s662 = sadd.s32 %s661, %s659
          %s663 = smul.addr %s662, 8
          %s664 = scalar_lea.vmem %s2, %s663
        $region85: #{jvp__.15} parent=64 // pred_fallthru
          _
      $region65: #{jvp__.15} parent=5 // pred_fallthru
        _
      %p665 = scmp.le.s32.totalorder 2, %s8
      // Predicated region
      $region86: #{jvp__.15} parent=5 // pred_check
        %p666 = pneg %p665
      $region87: #{jvp__.15} parent=5 // pred_check_branch
        %668 = sbr.rel (%p666) target = $region89
      $region88: #{jvp__.15} parent=5 // pred_region
        %s669 = ssub.s32 %s8, 2
      $region89: #{jvp__.15} parent=5 // pred_fallthru
        _
    $region6: #{jvp__.15} parent=1 // loop_footer
      %s12 = sadd.s32 1, %s8
    $region7: #{jvp__.15} parent=1 // loop_footer_branch
      %7 = sbr.rel target = $region3
    $region8: #{jvp__.15} parent=1 // loop_exit
      _

// kernel: resnet_grad_forward.10
$region0: #{resnet_grad_forward.10}
  #allocation0 [shape = 'u32[]', space=smem, size = 0x4, offset = 0x4, fixed_abs, tag = 'smem constant byte address 0x4 - core index']
  #allocation1 [shape = 'u32[144,128]{1,0:T(1,128)}', space=vmem, size = 0x12000, scoped, tag = 'internal scratch']
  %s0 = inlined_call_operand.vmem [shape: f32[8,512], index: 0, kind: input, shape index: {}]
  %s1 = inlined_call_operand.vmem [shape: f32[8,512], index: 1, kind: input, shape index: {}]
  %s2 = inlined_call_operand.vmem [shape: f32[8,512], index: 2, kind: output, shape index: {}]
  %s3 = sld [smem:[#allocation0]]
  $region18: #{resnet_grad_forward.10} parent=0
    _
  %s5 = ssub.s32 1, %s3
  %s6 = scalar_select 0, %s5, %s3
  // Predicated region
  $region2: #{resnet_grad_forward.10} parent=0 // pred_check
    _
  $region3: #{resnet_grad_forward.10} parent=0 // pred_check_branch
    %8 = sbr.rel (0) target = $region5
  $region4: #{resnet_grad_forward.10} parent=0 // pred_region
    _
  $region5: #{resnet_grad_forward.10} parent=0 // pred_fallthru
    _
  // Predicated region
  $region6: #{resnet_grad_forward.10} parent=0 // pred_check
    _
  $region7: #{resnet_grad_forward.10} parent=0 // pred_check_branch
    %10 = sbr.rel (0) target = $region9
  $region8: #{resnet_grad_forward.10} parent=0 // pred_region
    _
  $region9: #{resnet_grad_forward.10} parent=0 // pred_fallthru
    _
  %v11 = vld [vmem:[%s0] sm:$0xff]
  %v12 = vld [vmem:[%s0 + $0x8] sm:$0xff]
  %v13 = vld [vmem:[%s0 + $0x10] sm:$0xff]
  %v14 = vld [vmem:[%s0 + $0x18] sm:$0xff]
  %v15 = vld [vmem:[%s1] sm:$0xff]
  %v16 = vld [vmem:[%s1 + $0x8] sm:$0xff]
  %v17 = vld [vmem:[%s1 + $0x10] sm:$0xff]
  %v18 = vld [vmem:[%s1 + $0x18] sm:$0xff]
  %vm19 = vcmp.gt.f32.partialorder %v15, 0.0
  %vm20 = vcmp.gt.f32.partialorder %v16, 0.0
  %vm21 = vcmp.gt.f32.partialorder %v17, 0.0
  %vm22 = vcmp.gt.f32.partialorder %v18, 0.0
  %v23 = vsel %vm19, 1, 0
  %v24 = vsel %vm20, 1, 0
  %v25 = vsel %vm21, 1, 0
  %v26 = vsel %vm22, 1, 0
  %v27 = vcvt.s32.f32 %v23
  %v28 = vcvt.s32.f32 %v24
  %v29 = vcvt.s32.f32 %v25
  %v30 = vcvt.s32.f32 %v26
  %v31 = vmul.f32 %v11, %v27
  %v32 = vmul.f32 %v12, %v28
  %v33 = vmul.f32 %v13, %v29
  %v34 = vmul.f32 %v14, %v30
  %35 = vst [vmem:[%s2] sm:$0xff] %v31
  %36 = vst [vmem:[%s2 + $0x8] sm:$0xff] %v32
  %37 = vst [vmem:[%s2 + $0x10] sm:$0xff] %v33
  %38 = vst [vmem:[%s2 + $0x18] sm:$0xff] %v34
  // Predicated region
  $region10: #{resnet_grad_forward.10} parent=0 // pred_check
    _
  $region11: #{resnet_grad_forward.10} parent=0 // pred_check_branch
    %40 = sbr.rel (0) target = $region13
  $region12: #{resnet_grad_forward.10} parent=0 // pred_region
    _
  $region13: #{resnet_grad_forward.10} parent=0 // pred_fallthru
    _
  // Predicated region
  $region14: #{resnet_grad_forward.10} parent=0 // pred_check
    _
  $region15: #{resnet_grad_forward.10} parent=0 // pred_check_branch
    %42 = sbr.rel (0) target = $region17
  $region16: #{resnet_grad_forward.10} parent=0 // pred_region
    _
  $region17: #{resnet_grad_forward.10} parent=0 // pred_fallthru
    _

</llo_original>
